<compile_context>
chip_gen: v5e
topology: v5e:2x2
jax: 0.10.0
libtpu: 0.0.40
codegen_flags: <defaults>
</compile_context>

<pallas_src>
import functools

import jax
import jax.numpy as jnp
from jax.experimental import pallas as pl
from jax.experimental.pallas import tpu as pltpu


_PARAM_ORDER = ("wqkv", "bqkv", "wo", "bo", "w1", "b1", "w2", "b2",
                "ln1_g", "ln1_b", "ln2_g", "ln2_b", "ln3_g", "ln3_b")


# ----------------------------------------------------------------------------- kernel

def _encoder_stack_kernel(starts_ref,                     # scalar prefetch: (n_enc,) int32, SMEM
                          x_ref,
                          wqkv_ref, bqkv_ref, wo_ref, bo_ref,
                          w1_ref, b1_ref, w2_ref, b2_ref,
                          ln1_g_ref, ln1_b_ref, ln2_g_ref, ln2_b_ref,
                          ln3_g_ref, ln3_b_ref,
                          o_ref,
                          *, n_heads, d_head, eps=1e-5):
    e = pl.program_id(0)
    start = starts_ref[e]                                 # first valid timestep for this encoder

    x = x_ref[...]                                        # (B, L, D) f32
    B, L, D = x.shape
    H, dh = n_heads, d_head
    hd = H * dh

    x2d = x.reshape(B * L, D)                             # leading-dim merge only (free)
    xb = x2d.astype(jnp.bfloat16)                         # MXU operand precision

    def layernorm(v, g, b):                               # f32 statistics throughout
        mu = jnp.mean(v, axis=-1, keepdims=True)
        var = jnp.mean((v - mu) ** 2, axis=-1, keepdims=True)
        return (v - mu) * jax.lax.rsqrt(var + eps) * g + b

    # --- AttentionLayer: fused QKV projection on (B*L, D); scale pre-folded into Q columns ---
    qkv = jnp.dot(xb, wqkv_ref[0], preferred_element_type=jnp.float32) + bqkv_ref[0]

    def heads(t):                                         # (B*L, H*dh) -> (B*H, L, dh) bf16
        t = t.reshape(B, L, hd).reshape(B, L, H, dh)      # leading split, then lane split
        return t.transpose(0, 2, 1, 3).reshape(B * H, L, dh).astype(jnp.bfloat16)

    qh = heads(qkv[:, :hd])
    kh = heads(qkv[:, hd:2 * hd])
    vh = heads(qkv[:, 2 * hd:])

    # --- FullAttention: all (batch, head) pairs in two leading-batch einsums ---
    s = jnp.einsum('bqd,bkd->bqk', qh, kh, preferred_element_type=jnp.float32)
    kpos = jax.lax.broadcasted_iota(jnp.int32, s.shape, 2)
    s = jnp.where(kpos >= start, s, -1e30)                # mask keys outside this encoder's window
    s = s - jnp.max(s, axis=-1, keepdims=True)
    p = jnp.exp(s)
    p = p * pl.reciprocal(jnp.sum(p, axis=-1, keepdims=True), approx=True)   # EUP divide

    ctx = jnp.einsum('bqk,bkd->bqd', p.astype(jnp.bfloat16), vh,
                     preferred_element_type=jnp.float32)
    ctx = (ctx.reshape(B, H, L, dh).transpose(0, 2, 1, 3)  # back to row-major (B*L, H*dh)
              .reshape(B, L, hd).reshape(B * L, hd))
    attn = jnp.dot(ctx.astype(jnp.bfloat16), wo_ref[0],
                   preferred_element_type=jnp.float32) + bo_ref[0]

    # --- EncoderLayer: residual + norm1, FFN (Conv1d k=1 == per-position matmul), res + norm2 ---
    x1 = layernorm(x2d + attn, ln1_g_ref[0], ln1_b_ref[0])
    y = jnp.dot(x1.astype(jnp.bfloat16), w1_ref[0],
                preferred_element_type=jnp.float32) + b1_ref[0]
    y = jnp.maximum(y, 0.0)                               # activation="relu"
    y = jnp.dot(y.astype(jnp.bfloat16), w2_ref[0],
                preferred_element_type=jnp.float32) + b2_ref[0]
    x2 = layernorm(x1 + y, ln2_g_ref[0], ln2_b_ref[0])

    # --- Encoder final norm_layer ---
    out = layernorm(x2, ln3_g_ref[0], ln3_b_ref[0])
    o_ref[0] = out.reshape(B, L, D).astype(o_ref.dtype)   # leading-dim split only (free)


# ----------------------------------------------------------------------------- wrapper

def encoder_stack_forward(x, stacked_params, inp_lens, n_heads):
    """Mirrors EncoderStack.forward.  Runs all encoders in ONE fused pallas_call (padded to the
    full sequence; a scalar-prefetched start table masks each encoder to its trailing window),
    then concatenates outputs [0] and [2] along the sequence axis exactly as the PyTorch spec
    (x_stack[1] is intentionally dropped)."""
    B, L, D = x.shape
    n_enc = len(inp_lens)
    lens = [L // (2 ** il) for il in inp_lens]
    starts = jnp.asarray([L - l for l in lens], dtype=jnp.int32)
    d_head = (stacked_params["wqkv"].shape[-1] // 3) // n_heads
    plist = [stacked_params[name] for name in _PARAM_ORDER]

    kernel = functools.partial(_encoder_stack_kernel, n_heads=n_heads, d_head=d_head)

    def param_spec(p):                                    # pick encoder e's weight slab
        nd = p.ndim
        return pl.BlockSpec((1,) + p.shape[1:],
                            lambda e, _s, _nd=nd: (e,) + (0,) * (_nd - 1))

    out = pl.pallas_call(
        kernel,
        out_shape=jax.ShapeDtypeStruct((n_enc, B, L, D), x.dtype),
        grid_spec=pltpu.PrefetchScalarGridSpec(
            num_scalar_prefetch=1,
            grid=(n_enc,),
            in_specs=[pl.BlockSpec((B, L, D), lambda e, _s: (0, 0, 0))]   # x resident across steps
                     + [param_spec(p) for p in plist],
            out_specs=pl.BlockSpec((1, B, L, D), lambda e, _s: (e, 0, 0, 0)),
        ),
        compiler_params=pltpu.CompilerParams(
            dimension_semantics=("parallel",),            # v7x: encoders split across both TCs
            # vmem_limit_bytes=96 << 20,                  # raise at production Informer sizes
        ),
    )(starts, x, *plist)

    x_stack = [out[i, :, L - lens[i]:, :] for i in range(n_enc)]
    attns = [[None] for _ in range(n_enc)]                # FullAttention(output_attention=False)
    x_out = jnp.concatenate((x_stack[0], x_stack[2]), axis=-2)
    return x_out, attns


# ----------------------------------------------------------------------------- param init

def init_encoder_params(key, d_model, n_heads, d_ff):
    dk = d_model // n_heads
    hd = n_heads * dk
    scale = 1.0 / (float(dk) ** 0.5)
    ks = jax.random.split(key, 12)

    def lin(k, fi, fo):
        # NOTE: weights stored (in, out) for the x @ W convention; loading a real PyTorch
        # checkpoint needs nn.Linear weights transposed and Conv1d(k=1) weights squeezed + T'd.
        return jax.random.normal(k, (fi, fo), jnp.float32) / jnp.sqrt(float(fi))

    def bias(k, n):
        return 0.01 * jax.random.normal(k, (1, n), jnp.float32)

    wq, wk, wv = lin(ks[0], d_model, hd), lin(ks[2], d_model, hd), lin(ks[4], d_model, hd)
    bq, bk, bv = bias(ks[1], hd), bias(ks[3], hd), bias(ks[5], hd)
    # Fold the 1/sqrt(d_head) attention scale into the Q projection (removes the (H,L,L) multiply).
    wq, bq = wq * scale, bq * scale

    bf = jnp.bfloat16
    return dict(
        # fused QKV; matmul weights cast to bf16 (MXU-native); biases / LN params stay fp32
        wqkv=jnp.concatenate([wq, wk, wv], axis=1).astype(bf),
        bqkv=jnp.concatenate([bq, bk, bv], axis=1),
        wo=lin(ks[6], hd, d_model).astype(bf),      bo=bias(ks[7], d_model),
        w1=lin(ks[8], d_model, d_ff).astype(bf),    b1=bias(ks[9], d_ff),
        w2=lin(ks[10], d_ff, d_model).astype(bf),   b2=bias(ks[11], d_model),
        ln1_g=jnp.ones((1, d_model), jnp.float32), ln1_b=jnp.zeros((1, d_model), jnp.float32),
        ln2_g=jnp.ones((1, d_model), jnp.float32), ln2_b=jnp.zeros((1, d_model), jnp.float32),
        ln3_g=jnp.ones((1, d_model), jnp.float32), ln3_b=jnp.zeros((1, d_model), jnp.float32),
    )


def stack_encoder_params(per_encoder):
    """Stack per-encoder params along a leading axis so one pallas_call can index them per step."""
    return {k: jnp.stack([p[k] for p in per_encoder], axis=0) for k in _PARAM_ORDER}


# ----------------------------------------------------------------------------- main

if __name__ == "__main__":
    B, L, D = 2, 16, 32
    n_heads, d_ff = 4, 64
    inp_lens = [0, 1, 2]          # encoder i sees the last L // 2**inp_lens[i] timesteps

    key = jax.random.PRNGKey(0)
    kx, kp = jax.random.split(key)
    x = jax.random.normal(kx, (B, L, D), jnp.float32)

    per_encoder = [init_encoder_params(jax.random.fold_in(kp, i), D, n_heads, d_ff)
                   for i in range(len(inp_lens))]
    stacked = stack_encoder_params(per_encoder)

    # TODO(synk): nn.Dropout layers are eval-mode identities here (no RNG masking in-kernel).
    x_out, attns = encoder_stack_forward(x, stacked, inp_lens, n_heads)
    jax.block_until_ready(x_out)

    expected_L = L + L // (2 ** inp_lens[2])      # cat(x_stack[0], x_stack[2], dim=-2)
    assert x_out.shape == (B, expected_L, D), x_out.shape
    assert len(attns) == len(inp_lens)
    print("KERNEL_OK")
</pallas_src>

<mosaic_0001>
module attributes {stable_mosaic.version = 11 : i64} {
  func.func @_encoder_stack_kernel(%arg0: i32, %arg1: memref<3xi32, #tpu.memory_space<smem>>, %arg2: memref<2x16x32xf32, #tpu.memory_space<vmem>>, %arg3: memref<1x32x96xbf16, #tpu.memory_space<vmem>>, %arg4: memref<1x1x96xf32, #tpu.memory_space<vmem>>, %arg5: memref<1x32x32xbf16, #tpu.memory_space<vmem>>, %arg6: memref<1x1x32xf32, #tpu.memory_space<vmem>>, %arg7: memref<1x32x64xbf16, #tpu.memory_space<vmem>>, %arg8: memref<1x1x64xf32, #tpu.memory_space<vmem>>, %arg9: memref<1x64x32xbf16, #tpu.memory_space<vmem>>, %arg10: memref<1x1x32xf32, #tpu.memory_space<vmem>>, %arg11: memref<1x1x32xf32, #tpu.memory_space<vmem>>, %arg12: memref<1x1x32xf32, #tpu.memory_space<vmem>>, %arg13: memref<1x1x32xf32, #tpu.memory_space<vmem>>, %arg14: memref<1x1x32xf32, #tpu.memory_space<vmem>>, %arg15: memref<1x1x32xf32, #tpu.memory_space<vmem>>, %arg16: memref<1x1x32xf32, #tpu.memory_space<vmem>>, %arg17: memref<1x2x16x32xf32, #tpu.memory_space<vmem>>) attributes {dimension_semantics = [#tpu.dimension_semantics<parallel>], iteration_bounds = array<i64: 3>, scalar_prefetch = 1 : i64, scratch_operands = 0 : i64, tpu.core_type = #tpu.core_type<tc>, window_params = [{pipeline_mode = #tpu.pipeline_mode<synchronous>, transform_indices = @transform_0, window_bounds = array<i64: 2, 16, 32>}, {transform_indices = @transform_1, window_bounds = array<i64: 1, 32, 96>}, {transform_indices = @transform_2, window_bounds = array<i64: 1, 1, 96>}, {transform_indices = @transform_3, window_bounds = array<i64: 1, 32, 32>}, {transform_indices = @transform_4, window_bounds = array<i64: 1, 1, 32>}, {transform_indices = @transform_5, window_bounds = array<i64: 1, 32, 64>}, {transform_indices = @transform_6, window_bounds = array<i64: 1, 1, 64>}, {transform_indices = @transform_7, window_bounds = array<i64: 1, 64, 32>}, {transform_indices = @transform_8, window_bounds = array<i64: 1, 1, 32>}, {transform_indices = @transform_9, window_bounds = array<i64: 1, 1, 32>}, {transform_indices = @transform_10, window_bounds = array<i64: 1, 1, 32>}, {transform_indices = @transform_11, window_bounds = array<i64: 1, 1, 32>}, {transform_indices = @transform_12, window_bounds = array<i64: 1, 1, 32>}, {transform_indices = @transform_13, window_bounds = array<i64: 1, 1, 32>}, {transform_indices = @transform_14, window_bounds = array<i64: 1, 1, 32>}, {transform_indices = @transform_15, window_bounds = array<i64: 1, 2, 16, 32>}]} {
    %0 = arith.index_cast %arg0 : i32 to index
    %1 = memref.load %arg1[%0] : memref<3xi32, #tpu.memory_space<smem>>
    %c0 = arith.constant 0 : index
    %c0_0 = arith.constant 0 : index
    %c0_1 = arith.constant 0 : index
    %2 = vector.load %arg2[%c0, %c0_0, %c0_1] : memref<2x16x32xf32, #tpu.memory_space<vmem>>, vector<2x16x32xf32>
    %3 = vector.shape_cast %2 : vector<2x16x32xf32> to vector<32x32xf32>
    %4 = arith.truncf %3 : vector<32x32xf32> to vector<32x32xbf16>
    %c0_2 = arith.constant 0 : index
    %c0_3 = arith.constant 0 : index
    %c0_4 = arith.constant 0 : index
    %5 = vector.load %arg3[%c0_2, %c0_3, %c0_4] : memref<1x32x96xbf16, #tpu.memory_space<vmem>>, vector<1x32x96xbf16>
    %6 = vector.shape_cast %5 : vector<1x32x96xbf16> to vector<32x96xbf16>
    %cst = arith.constant dense<0.000000e+00> : vector<32x96xf32>
    %7 = tpu.matmul %4, %6, %cst {dimension_numbers = #tpu.dot_dimension_numbers<[1], [0], [0], [1], [0, 0, 1, 1], [], []>} : vector<32x32xbf16>, vector<32x96xbf16>, vector<32x96xf32> -> vector<32x96xf32>
    %c0_5 = arith.constant 0 : index
    %c0_6 = arith.constant 0 : index
    %c0_7 = arith.constant 0 : index
    %8 = vector.load %arg4[%c0_5, %c0_6, %c0_7] : memref<1x1x96xf32, #tpu.memory_space<vmem>>, vector<1x1x96xf32>
    %9 = vector.shape_cast %8 : vector<1x1x96xf32> to vector<1x96xf32>
    %10 = vector.broadcast %9 : vector<1x96xf32> to vector<32x96xf32>
    %11 = arith.addf %7, %10 : vector<32x96xf32>
    %12 = vector.extract_strided_slice %11 {offsets = [0, 0], sizes = [32, 32], strides = [1, 1]} : vector<32x96xf32> to vector<32x32xf32>
    %13 = vector.shape_cast %12 : vector<32x32xf32> to vector<2x16x32xf32>
    %14 = vector.shape_cast %13 : vector<2x16x32xf32> to vector<2x16x4x8xf32>
    %15 = tpu.transpose %14, [0, 2, 1, 3] : vector<2x16x4x8xf32> -> vector<2x4x16x8xf32>
    %16 = vector.shape_cast %15 : vector<2x4x16x8xf32> to vector<8x16x8xf32>
    %17 = arith.truncf %16 : vector<8x16x8xf32> to vector<8x16x8xbf16>
    %18 = vector.extract_strided_slice %11 {offsets = [0, 32], sizes = [32, 32], strides = [1, 1]} : vector<32x96xf32> to vector<32x32xf32>
    %19 = vector.shape_cast %18 : vector<32x32xf32> to vector<2x16x32xf32>
    %20 = vector.shape_cast %19 : vector<2x16x32xf32> to vector<2x16x4x8xf32>
    %21 = tpu.transpose %20, [0, 2, 1, 3] : vector<2x16x4x8xf32> -> vector<2x4x16x8xf32>
    %22 = vector.shape_cast %21 : vector<2x4x16x8xf32> to vector<8x16x8xf32>
    %23 = arith.truncf %22 : vector<8x16x8xf32> to vector<8x16x8xbf16>
    %24 = vector.extract_strided_slice %11 {offsets = [0, 64], sizes = [32, 32], strides = [1, 1]} : vector<32x96xf32> to vector<32x32xf32>
    %25 = vector.shape_cast %24 : vector<32x32xf32> to vector<2x16x32xf32>
    %26 = vector.shape_cast %25 : vector<2x16x32xf32> to vector<2x16x4x8xf32>
    %27 = tpu.transpose %26, [0, 2, 1, 3] : vector<2x16x4x8xf32> -> vector<2x4x16x8xf32>
    %28 = vector.shape_cast %27 : vector<2x4x16x8xf32> to vector<8x16x8xf32>
    %29 = arith.truncf %28 : vector<8x16x8xf32> to vector<8x16x8xbf16>
    "tpu.trace_start"() <{level = 10 : i32, message = "bqd,bkd->bqk"}> : () -> ()
    %cst_8 = arith.constant dense<0.000000e+00> : vector<8x16x16xf32>
    %30 = tpu.matmul %17, %23, %cst_8 {dimension_numbers = #tpu.dot_dimension_numbers<[2], [2], [1], [1], [0, 0, 0, 1, 1, 1], [0], [0]>} : vector<8x16x8xbf16>, vector<8x16x8xbf16>, vector<8x16x16xf32> -> vector<8x16x16xf32>
    "tpu.trace_stop"() : () -> ()
    %31 = tpu.iota {dimensions = array<i32: 2>} : vector<8x16x16xi32>
    %32 = vector.broadcast %1 : i32 to vector<8x16x16xi32>
    %33 = arith.cmpi sge, %31, %32 : vector<8x16x16xi32>
    %cst_9 = arith.constant -1.000000e+30 : f32
    %34 = vector.broadcast %cst_9 : f32 to vector<8x16x16xf32>
    %35 = arith.select %33, %30, %34 : vector<8x16x16xi1>, vector<8x16x16xf32>
    %cst_10 = arith.constant dense<0xFF800000> : vector<8x16xf32>
    %36 = vector.multi_reduction <maximumf>, %35, %cst_10 [2] : vector<8x16x16xf32> to vector<8x16xf32>
    %37 = vector.shape_cast %36 : vector<8x16xf32> to vector<8x16x1xf32>
    %38 = vector.broadcast %37 : vector<8x16x1xf32> to vector<8x16x16xf32>
    %39 = arith.subf %35, %38 : vector<8x16x16xf32>
    %40 = math.exp %39 : vector<8x16x16xf32>
    %cst_11 = arith.constant dense<0.000000e+00> : vector<8x16xf32>
    %41 = vector.multi_reduction <add>, %40, %cst_11 [2] : vector<8x16x16xf32> to vector<8x16xf32>
    %42 = vector.shape_cast %41 : vector<8x16xf32> to vector<8x16x1xf32>
    %43 = tpu.reciprocal %42 {approx = true} : vector<8x16x1xf32> -> vector<8x16x1xf32>
    %44 = vector.broadcast %43 : vector<8x16x1xf32> to vector<8x16x16xf32>
    %45 = arith.mulf %40, %44 : vector<8x16x16xf32>
    %46 = arith.truncf %45 : vector<8x16x16xf32> to vector<8x16x16xbf16>
    "tpu.trace_start"() <{level = 10 : i32, message = "bqk,bkd->bqd"}> : () -> ()
    %cst_12 = arith.constant dense<0.000000e+00> : vector<8x16x8xf32>
    %47 = tpu.matmul %46, %29, %cst_12 {dimension_numbers = #tpu.dot_dimension_numbers<[2], [1], [1], [2], [0, 0, 0, 1, 1, 2], [0], [0]>} : vector<8x16x16xbf16>, vector<8x16x8xbf16>, vector<8x16x8xf32> -> vector<8x16x8xf32>
    "tpu.trace_stop"() : () -> ()
    %48 = vector.shape_cast %47 : vector<8x16x8xf32> to vector<2x4x16x8xf32>
    %49 = tpu.transpose %48, [0, 2, 1, 3] : vector<2x4x16x8xf32> -> vector<2x16x4x8xf32>
    %50 = vector.shape_cast %49 : vector<2x16x4x8xf32> to vector<2x16x32xf32>
    %51 = vector.shape_cast %50 : vector<2x16x32xf32> to vector<32x32xf32>
    %52 = arith.truncf %51 : vector<32x32xf32> to vector<32x32xbf16>
    %c0_13 = arith.constant 0 : index
    %c0_14 = arith.constant 0 : index
    %c0_15 = arith.constant 0 : index
    %53 = vector.load %arg5[%c0_13, %c0_14, %c0_15] : memref<1x32x32xbf16, #tpu.memory_space<vmem>>, vector<1x32x32xbf16>
    %54 = vector.shape_cast %53 : vector<1x32x32xbf16> to vector<32x32xbf16>
    %cst_16 = arith.constant dense<0.000000e+00> : vector<32x32xf32>
    %55 = tpu.matmul %52, %54, %cst_16 {dimension_numbers = #tpu.dot_dimension_numbers<[1], [0], [0], [1], [0, 0, 1, 1], [], []>} : vector<32x32xbf16>, vector<32x32xbf16>, vector<32x32xf32> -> vector<32x32xf32>
    %c0_17 = arith.constant 0 : index
    %c0_18 = arith.constant 0 : index
    %c0_19 = arith.constant 0 : index
    %56 = vector.load %arg6[%c0_17, %c0_18, %c0_19] : memref<1x1x32xf32, #tpu.memory_space<vmem>>, vector<1x1x32xf32>
    %57 = vector.shape_cast %56 : vector<1x1x32xf32> to vector<1x32xf32>
    %58 = vector.broadcast %57 : vector<1x32xf32> to vector<32x32xf32>
    %59 = arith.addf %55, %58 : vector<32x32xf32>
    %60 = arith.addf %3, %59 : vector<32x32xf32>
    %c0_20 = arith.constant 0 : index
    %c0_21 = arith.constant 0 : index
    %c0_22 = arith.constant 0 : index
    %61 = vector.load %arg11[%c0_20, %c0_21, %c0_22] : memref<1x1x32xf32, #tpu.memory_space<vmem>>, vector<1x1x32xf32>
    %62 = vector.shape_cast %61 : vector<1x1x32xf32> to vector<1x32xf32>
    %c0_23 = arith.constant 0 : index
    %c0_24 = arith.constant 0 : index
    %c0_25 = arith.constant 0 : index
    %63 = vector.load %arg12[%c0_23, %c0_24, %c0_25] : memref<1x1x32xf32, #tpu.memory_space<vmem>>, vector<1x1x32xf32>
    %64 = vector.shape_cast %63 : vector<1x1x32xf32> to vector<1x32xf32>
    %cst_26 = arith.constant dense<0.000000e+00> : vector<32xf32>
    %65 = vector.multi_reduction <add>, %60, %cst_26 [1] : vector<32x32xf32> to vector<32xf32>
    %66 = vector.shape_cast %65 : vector<32xf32> to vector<32x1xf32>
    %cst_27 = arith.constant 3.200000e+01 : f32
    %67 = vector.broadcast %cst_27 : f32 to vector<32x1xf32>
    %68 = arith.divf %66, %67 : vector<32x1xf32>
    %69 = vector.broadcast %68 : vector<32x1xf32> to vector<32x32xf32>
    %70 = arith.subf %60, %69 : vector<32x32xf32>
    %71 = arith.mulf %70, %70 : vector<32x32xf32>
    %cst_28 = arith.constant dense<0.000000e+00> : vector<32xf32>
    %72 = vector.multi_reduction <add>, %71, %cst_28 [1] : vector<32x32xf32> to vector<32xf32>
    %73 = vector.shape_cast %72 : vector<32xf32> to vector<32x1xf32>
    %cst_29 = arith.constant 3.200000e+01 : f32
    %74 = vector.broadcast %cst_29 : f32 to vector<32x1xf32>
    %75 = arith.divf %73, %74 : vector<32x1xf32>
    %76 = vector.broadcast %68 : vector<32x1xf32> to vector<32x32xf32>
    %77 = arith.subf %60, %76 : vector<32x32xf32>
    %cst_30 = arith.constant 9.99999974E-6 : f32
    %78 = vector.broadcast %cst_30 : f32 to vector<32x1xf32>
    %79 = arith.addf %75, %78 : vector<32x1xf32>
    %80 = math.rsqrt %79 : vector<32x1xf32>
    %81 = vector.broadcast %80 : vector<32x1xf32> to vector<32x32xf32>
    %82 = arith.mulf %77, %81 : vector<32x32xf32>
    %83 = vector.broadcast %62 : vector<1x32xf32> to vector<32x32xf32>
    %84 = arith.mulf %82, %83 : vector<32x32xf32>
    %85 = vector.broadcast %64 : vector<1x32xf32> to vector<32x32xf32>
    %86 = arith.addf %84, %85 : vector<32x32xf32>
    %87 = arith.truncf %86 : vector<32x32xf32> to vector<32x32xbf16>
    %c0_31 = arith.constant 0 : index
    %c0_32 = arith.constant 0 : index
    %c0_33 = arith.constant 0 : index
    %88 = vector.load %arg7[%c0_31, %c0_32, %c0_33] : memref<1x32x64xbf16, #tpu.memory_space<vmem>>, vector<1x32x64xbf16>
    %89 = vector.shape_cast %88 : vector<1x32x64xbf16> to vector<32x64xbf16>
    %cst_34 = arith.constant dense<0.000000e+00> : vector<32x64xf32>
    %90 = tpu.matmul %87, %89, %cst_34 {dimension_numbers = #tpu.dot_dimension_numbers<[1], [0], [0], [1], [0, 0, 1, 1], [], []>} : vector<32x32xbf16>, vector<32x64xbf16>, vector<32x64xf32> -> vector<32x64xf32>
    %c0_35 = arith.constant 0 : index
    %c0_36 = arith.constant 0 : index
    %c0_37 = arith.constant 0 : index
    %91 = vector.load %arg8[%c0_35, %c0_36, %c0_37] : memref<1x1x64xf32, #tpu.memory_space<vmem>>, vector<1x1x64xf32>
    %92 = vector.shape_cast %91 : vector<1x1x64xf32> to vector<1x64xf32>
    %93 = vector.broadcast %92 : vector<1x64xf32> to vector<32x64xf32>
    %94 = arith.addf %90, %93 : vector<32x64xf32>
    %cst_38 = arith.constant 0.000000e+00 : f32
    %95 = vector.broadcast %cst_38 : f32 to vector<32x64xf32>
    %96 = arith.maximumf %94, %95 : vector<32x64xf32>
    %97 = arith.truncf %96 : vector<32x64xf32> to vector<32x64xbf16>
    %c0_39 = arith.constant 0 : index
    %c0_40 = arith.constant 0 : index
    %c0_41 = arith.constant 0 : index
    %98 = vector.load %arg9[%c0_39, %c0_40, %c0_41] : memref<1x64x32xbf16, #tpu.memory_space<vmem>>, vector<1x64x32xbf16>
    %99 = vector.shape_cast %98 : vector<1x64x32xbf16> to vector<64x32xbf16>
    %cst_42 = arith.constant dense<0.000000e+00> : vector<32x32xf32>
    %100 = tpu.matmul %97, %99, %cst_42 {dimension_numbers = #tpu.dot_dimension_numbers<[1], [0], [0], [1], [0, 0, 1, 1], [], []>} : vector<32x64xbf16>, vector<64x32xbf16>, vector<32x32xf32> -> vector<32x32xf32>
    %c0_43 = arith.constant 0 : index
    %c0_44 = arith.constant 0 : index
    %c0_45 = arith.constant 0 : index
    %101 = vector.load %arg10[%c0_43, %c0_44, %c0_45] : memref<1x1x32xf32, #tpu.memory_space<vmem>>, vector<1x1x32xf32>
    %102 = vector.shape_cast %101 : vector<1x1x32xf32> to vector<1x32xf32>
    %103 = vector.broadcast %102 : vector<1x32xf32> to vector<32x32xf32>
    %104 = arith.addf %100, %103 : vector<32x32xf32>
    %105 = arith.addf %86, %104 : vector<32x32xf32>
    %c0_46 = arith.constant 0 : index
    %c0_47 = arith.constant 0 : index
    %c0_48 = arith.constant 0 : index
    %106 = vector.load %arg13[%c0_46, %c0_47, %c0_48] : memref<1x1x32xf32, #tpu.memory_space<vmem>>, vector<1x1x32xf32>
    %107 = vector.shape_cast %106 : vector<1x1x32xf32> to vector<1x32xf32>
    %c0_49 = arith.constant 0 : index
    %c0_50 = arith.constant 0 : index
    %c0_51 = arith.constant 0 : index
    %108 = vector.load %arg14[%c0_49, %c0_50, %c0_51] : memref<1x1x32xf32, #tpu.memory_space<vmem>>, vector<1x1x32xf32>
    %109 = vector.shape_cast %108 : vector<1x1x32xf32> to vector<1x32xf32>
    %cst_52 = arith.constant dense<0.000000e+00> : vector<32xf32>
    %110 = vector.multi_reduction <add>, %105, %cst_52 [1] : vector<32x32xf32> to vector<32xf32>
    %111 = vector.shape_cast %110 : vector<32xf32> to vector<32x1xf32>
    %cst_53 = arith.constant 3.200000e+01 : f32
    %112 = vector.broadcast %cst_53 : f32 to vector<32x1xf32>
    %113 = arith.divf %111, %112 : vector<32x1xf32>
    %114 = vector.broadcast %113 : vector<32x1xf32> to vector<32x32xf32>
    %115 = arith.subf %105, %114 : vector<32x32xf32>
    %116 = arith.mulf %115, %115 : vector<32x32xf32>
    %cst_54 = arith.constant dense<0.000000e+00> : vector<32xf32>
    %117 = vector.multi_reduction <add>, %116, %cst_54 [1] : vector<32x32xf32> to vector<32xf32>
    %118 = vector.shape_cast %117 : vector<32xf32> to vector<32x1xf32>
    %cst_55 = arith.constant 3.200000e+01 : f32
    %119 = vector.broadcast %cst_55 : f32 to vector<32x1xf32>
    %120 = arith.divf %118, %119 : vector<32x1xf32>
    %121 = vector.broadcast %113 : vector<32x1xf32> to vector<32x32xf32>
    %122 = arith.subf %105, %121 : vector<32x32xf32>
    %cst_56 = arith.constant 9.99999974E-6 : f32
    %123 = vector.broadcast %cst_56 : f32 to vector<32x1xf32>
    %124 = arith.addf %120, %123 : vector<32x1xf32>
    %125 = math.rsqrt %124 : vector<32x1xf32>
    %126 = vector.broadcast %125 : vector<32x1xf32> to vector<32x32xf32>
    %127 = arith.mulf %122, %126 : vector<32x32xf32>
    %128 = vector.broadcast %107 : vector<1x32xf32> to vector<32x32xf32>
    %129 = arith.mulf %127, %128 : vector<32x32xf32>
    %130 = vector.broadcast %109 : vector<1x32xf32> to vector<32x32xf32>
    %131 = arith.addf %129, %130 : vector<32x32xf32>
    %c0_57 = arith.constant 0 : index
    %c0_58 = arith.constant 0 : index
    %c0_59 = arith.constant 0 : index
    %132 = vector.load %arg15[%c0_57, %c0_58, %c0_59] : memref<1x1x32xf32, #tpu.memory_space<vmem>>, vector<1x1x32xf32>
    %133 = vector.shape_cast %132 : vector<1x1x32xf32> to vector<1x32xf32>
    %c0_60 = arith.constant 0 : index
    %c0_61 = arith.constant 0 : index
    %c0_62 = arith.constant 0 : index
    %134 = vector.load %arg16[%c0_60, %c0_61, %c0_62] : memref<1x1x32xf32, #tpu.memory_space<vmem>>, vector<1x1x32xf32>
    %135 = vector.shape_cast %134 : vector<1x1x32xf32> to vector<1x32xf32>
    %cst_63 = arith.constant dense<0.000000e+00> : vector<32xf32>
    %136 = vector.multi_reduction <add>, %131, %cst_63 [1] : vector<32x32xf32> to vector<32xf32>
    %137 = vector.shape_cast %136 : vector<32xf32> to vector<32x1xf32>
    %cst_64 = arith.constant 3.200000e+01 : f32
    %138 = vector.broadcast %cst_64 : f32 to vector<32x1xf32>
    %139 = arith.divf %137, %138 : vector<32x1xf32>
    %140 = vector.broadcast %139 : vector<32x1xf32> to vector<32x32xf32>
    %141 = arith.subf %131, %140 : vector<32x32xf32>
    %142 = arith.mulf %141, %141 : vector<32x32xf32>
    %cst_65 = arith.constant dense<0.000000e+00> : vector<32xf32>
    %143 = vector.multi_reduction <add>, %142, %cst_65 [1] : vector<32x32xf32> to vector<32xf32>
    %144 = vector.shape_cast %143 : vector<32xf32> to vector<32x1xf32>
    %cst_66 = arith.constant 3.200000e+01 : f32
    %145 = vector.broadcast %cst_66 : f32 to vector<32x1xf32>
    %146 = arith.divf %144, %145 : vector<32x1xf32>
    %147 = vector.broadcast %139 : vector<32x1xf32> to vector<32x32xf32>
    %148 = arith.subf %131, %147 : vector<32x32xf32>
    %cst_67 = arith.constant 9.99999974E-6 : f32
    %149 = vector.broadcast %cst_67 : f32 to vector<32x1xf32>
    %150 = arith.addf %146, %149 : vector<32x1xf32>
    %151 = math.rsqrt %150 : vector<32x1xf32>
    %152 = vector.broadcast %151 : vector<32x1xf32> to vector<32x32xf32>
    %153 = arith.mulf %148, %152 : vector<32x32xf32>
    %154 = vector.broadcast %133 : vector<1x32xf32> to vector<32x32xf32>
    %155 = arith.mulf %153, %154 : vector<32x32xf32>
    %156 = vector.broadcast %135 : vector<1x32xf32> to vector<32x32xf32>
    %157 = arith.addf %155, %156 : vector<32x32xf32>
    %158 = vector.shape_cast %157 : vector<32x32xf32> to vector<2x16x32xf32>
    %c0_68 = arith.constant 0 : index
    %c0_69 = arith.constant 0 : index
    %c0_70 = arith.constant 0 : index
    %c0_71 = arith.constant 0 : index
    %159 = vector.load %arg17[%c0_68, %c0_69, %c0_70, %c0_71] : memref<1x2x16x32xf32, #tpu.memory_space<vmem>>, vector<1x2x16x32xf32>
    %160 = vector.shape_cast %159 : vector<1x2x16x32xf32> to vector<2x16x32xf32>
    %161 = vector.shape_cast %158 : vector<2x16x32xf32> to vector<1x2x16x32xf32>
    tpu.vector_store %arg17[%c0_68, %c0_69, %c0_70, %c0_71], %161 {strides = array<i32>} : memref<1x2x16x32xf32, #tpu.memory_space<vmem>>, vector<1x2x16x32xf32>,
    return
  }
  func.func @transform_0(%arg0: i32, %arg1: memref<3xi32, #tpu.memory_space<smem>>) -> (i32, i32, i32) {
    %c0_i32 = arith.constant 0 : i32
    %c0_i32_0 = arith.constant 0 : i32
    %c0_i32_1 = arith.constant 0 : i32
    %c0_i32_2 = arith.constant 0 : i32
    return %c0_i32, %c0_i32_0, %c0_i32_1 : i32, i32, i32
  }
  func.func @transform_1(%arg0: i32, %arg1: memref<3xi32, #tpu.memory_space<smem>>) -> (i32, i32, i32) {
    %c0_i32 = arith.constant 0 : i32
    %c0_i32_0 = arith.constant 0 : i32
    %c0_i32_1 = arith.constant 0 : i32
    return %arg0, %c0_i32, %c0_i32_0 : i32, i32, i32
  }
  func.func @transform_2(%arg0: i32, %arg1: memref<3xi32, #tpu.memory_space<smem>>) -> (i32, i32, i32) {
    %c0_i32 = arith.constant 0 : i32
    %c0_i32_0 = arith.constant 0 : i32
    %c0_i32_1 = arith.constant 0 : i32
    return %arg0, %c0_i32, %c0_i32_0 : i32, i32, i32
  }
  func.func @transform_3(%arg0: i32, %arg1: memref<3xi32, #tpu.memory_space<smem>>) -> (i32, i32, i32) {
    %c0_i32 = arith.constant 0 : i32
    %c0_i32_0 = arith.constant 0 : i32
    %c0_i32_1 = arith.constant 0 : i32
    return %arg0, %c0_i32, %c0_i32_0 : i32, i32, i32
  }
  func.func @transform_4(%arg0: i32, %arg1: memref<3xi32, #tpu.memory_space<smem>>) -> (i32, i32, i32) {
    %c0_i32 = arith.constant 0 : i32
    %c0_i32_0 = arith.constant 0 : i32
    %c0_i32_1 = arith.constant 0 : i32
    return %arg0, %c0_i32, %c0_i32_0 : i32, i32, i32
  }
  func.func @transform_5(%arg0: i32, %arg1: memref<3xi32, #tpu.memory_space<smem>>) -> (i32, i32, i32) {
    %c0_i32 = arith.constant 0 : i32
    %c0_i32_0 = arith.constant 0 : i32
    %c0_i32_1 = arith.constant 0 : i32
    return %arg0, %c0_i32, %c0_i32_0 : i32, i32, i32
  }
  func.func @transform_6(%arg0: i32, %arg1: memref<3xi32, #tpu.memory_space<smem>>) -> (i32, i32, i32) {
    %c0_i32 = arith.constant 0 : i32
    %c0_i32_0 = arith.constant 0 : i32
    %c0_i32_1 = arith.constant 0 : i32
    return %arg0, %c0_i32, %c0_i32_0 : i32, i32, i32
  }
  func.func @transform_7(%arg0: i32, %arg1: memref<3xi32, #tpu.memory_space<smem>>) -> (i32, i32, i32) {
    %c0_i32 = arith.constant 0 : i32
    %c0_i32_0 = arith.constant 0 : i32
    %c0_i32_1 = arith.constant 0 : i32
    return %arg0, %c0_i32, %c0_i32_0 : i32, i32, i32
  }
  func.func @transform_8(%arg0: i32, %arg1: memref<3xi32, #tpu.memory_space<smem>>) -> (i32, i32, i32) {
    %c0_i32 = arith.constant 0 : i32
    %c0_i32_0 = arith.constant 0 : i32
    %c0_i32_1 = arith.constant 0 : i32
    return %arg0, %c0_i32, %c0_i32_0 : i32, i32, i32
  }
  func.func @transform_9(%arg0: i32, %arg1: memref<3xi32, #tpu.memory_space<smem>>) -> (i32, i32, i32) {
    %c0_i32 = arith.constant 0 : i32
    %c0_i32_0 = arith.constant 0 : i32
    %c0_i32_1 = arith.constant 0 : i32
    return %arg0, %c0_i32, %c0_i32_0 : i32, i32, i32
  }
  func.func @transform_10(%arg0: i32, %arg1: memref<3xi32, #tpu.memory_space<smem>>) -> (i32, i32, i32) {
    %c0_i32 = arith.constant 0 : i32
    %c0_i32_0 = arith.constant 0 : i32
    %c0_i32_1 = arith.constant 0 : i32
    return %arg0, %c0_i32, %c0_i32_0 : i32, i32, i32
  }
  func.func @transform_11(%arg0: i32, %arg1: memref<3xi32, #tpu.memory_space<smem>>) -> (i32, i32, i32) {
    %c0_i32 = arith.constant 0 : i32
    %c0_i32_0 = arith.constant 0 : i32
    %c0_i32_1 = arith.constant 0 : i32
    return %arg0, %c0_i32, %c0_i32_0 : i32, i32, i32
  }
  func.func @transform_12(%arg0: i32, %arg1: memref<3xi32, #tpu.memory_space<smem>>) -> (i32, i32, i32) {
    %c0_i32 = arith.constant 0 : i32
    %c0_i32_0 = arith.constant 0 : i32
    %c0_i32_1 = arith.constant 0 : i32
    return %arg0, %c0_i32, %c0_i32_0 : i32, i32, i32
  }
  func.func @transform_13(%arg0: i32, %arg1: memref<3xi32, #tpu.memory_space<smem>>) -> (i32, i32, i32) {
    %c0_i32 = arith.constant 0 : i32
    %c0_i32_0 = arith.constant 0 : i32
    %c0_i32_1 = arith.constant 0 : i32
    return %arg0, %c0_i32, %c0_i32_0 : i32, i32, i32
  }
  func.func @transform_14(%arg0: i32, %arg1: memref<3xi32, #tpu.memory_space<smem>>) -> (i32, i32, i32) {
    %c0_i32 = arith.constant 0 : i32
    %c0_i32_0 = arith.constant 0 : i32
    %c0_i32_1 = arith.constant 0 : i32
    return %arg0, %c0_i32, %c0_i32_0 : i32, i32, i32
  }
  func.func @transform_15(%arg0: i32, %arg1: memref<3xi32, #tpu.memory_space<smem>>) -> (i32, i32, i32, i32) {
    %c0_i32 = arith.constant 0 : i32
    %c0_i32_0 = arith.constant 0 : i32
    %c0_i32_1 = arith.constant 0 : i32
    %c0_i32_2 = arith.constant 0 : i32
    return %arg0, %c0_i32, %c0_i32_0, %c0_i32_1 : i32, i32, i32, i32
  }
}

</mosaic_0001>

<llo_original>
// kernel: tpu_custom_call.1
$region0: #{tpu_custom_call.1}
  #allocation0 [shape = 'u32[]', space=smem, size = 0x4, offset = 0x4, fixed_abs, tag = 'smem constant byte address 0x4 - core index']
  #allocation1 [shape = 'u32[72,128]{1,0:T(1,128)}', space=vmem, size = 0x9000, scoped, tag = 'internal scratch']
  #allocation2 [shape = 's32[1]{0}', space=sflag, size = 0x4, scoped, tag = 'scoped memory for tpu_custom_call.1']
  #allocation3 [shape = 'u8[512]{0}', space=smem, size = 0x200, scoped, tag = 'prefetched SMEM operand 0']
  %s0 = inlined_call_operand.hbm [shape: s32[3], index: 0, kind: input, shape index: {}]
  %s1 = inlined_call_operand.hbm [shape: f32[2,16,32], index: 1, kind: input, shape index: {}]
  %s2 = inlined_call_operand.vmem [shape: bf16[3,32,96], index: 2, kind: input, shape index: {}]
  %s3 = inlined_call_operand.hbm [shape: f32[3,1,96], index: 3, kind: input, shape index: {}]
  %s4 = inlined_call_operand.vmem [shape: bf16[3,32,32], index: 4, kind: input, shape index: {}]
  %s5 = inlined_call_operand.vmem [shape: f32[3,1,32], index: 5, kind: input, shape index: {}]
  %s6 = inlined_call_operand.vmem [shape: bf16[3,32,64], index: 6, kind: input, shape index: {}]
  %s7 = inlined_call_operand.hbm [shape: f32[3,1,64], index: 7, kind: input, shape index: {}]
  %s8 = inlined_call_operand.vmem [shape: bf16[3,64,32], index: 8, kind: input, shape index: {}]
  %s9 = inlined_call_operand.vmem [shape: f32[3,1,32], index: 9, kind: input, shape index: {}]
  %s10 = inlined_call_operand.vmem [shape: f32[3,1,32], index: 10, kind: input, shape index: {}]
  %s11 = inlined_call_operand.hbm [shape: f32[3,1,32], index: 11, kind: input, shape index: {}]
  %s12 = inlined_call_operand.hbm [shape: f32[3,1,32], index: 12, kind: input, shape index: {}]
  %s13 = inlined_call_operand.hbm [shape: f32[3,1,32], index: 13, kind: input, shape index: {}]
  %s14 = inlined_call_operand.vmem [shape: f32[3,1,32], index: 14, kind: input, shape index: {}]
  %s15 = inlined_call_operand.hbm [shape: f32[3,1,32], index: 15, kind: input, shape index: {}]
  %s16 = inlined_call_operand.hbm [shape: f32[3,2,16,32], index: 16, kind: output, shape index: {}]
  %s17 = sld [smem:[#allocation0]]
  $region121: #{tpu_custom_call.1} parent=0
    _
  %s19 = ssub.s32 1, %s17
  %s20 = scalar_select 0, %s19, %s17
  %s22 = sshll.u32 %s0, 4
  %s23 = int_to_ptr.hbm [resolvable:$true] %s22
  %25 = dma.hbm_to_smem %s23, 16, [#allocation3], [#allocation2]
  %27 = dma.done [#allocation2], 16
  %28 = sfence
  $region1: #{tpu_custom_call.1} parent=0
    #allocation4 [shape = 'u8[16384]{0}', space=vmem, size = 0x4000, scoped, tag = 'input window, operand 1, single buffered']
    #allocation5 [shape = 's32[2]{0}', space=sflag, size = 0x8, scoped, tag = 'scoped memory for tpu_custom_call.1']
    #allocation6 [shape = 's32[2]{0}', space=sflag, size = 0x8, scoped, tag = 'scoped memory for tpu_custom_call.1']
    #allocation7 [shape = 'u8[1024]{0}', space=vmem, size = 0x400, scoped, tag = 'input window, operand 3']
    #allocation8 [shape = 's32[2]{0}', space=sflag, size = 0x8, scoped, tag = 'scoped memory for tpu_custom_call.1']
    #allocation9 [shape = 'u8[1024]{0}', space=vmem, size = 0x400, scoped, tag = 'input window, operand 7']
    #allocation10 [shape = 'u8[1024]{0}', space=vmem, size = 0x400, scoped, tag = 'input window, operand 11']
    #allocation11 [shape = 's32[2]{0}', space=sflag, size = 0x8, scoped, tag = 'scoped memory for tpu_custom_call.1']
    #allocation12 [shape = 'u8[1024]{0}', space=vmem, size = 0x400, scoped, tag = 'input window, operand 12']
    #allocation13 [shape = 'u8[1024]{0}', space=vmem, size = 0x400, scoped, tag = 'input window, operand 13']
    #allocation14 [shape = 's32[2]{0}', space=sflag, size = 0x8, scoped, tag = 'scoped memory for tpu_custom_call.1']
    #allocation15 [shape = 'u8[1024]{0}', space=vmem, size = 0x400, scoped, tag = 'input window, operand 15']
    #allocation16 [shape = 'u8[32768]{0}', space=vmem, size = 0x8000, scoped, tag = 'output window, operand 0']
    %29 = vsyncpa [#allocation5], 0
    %30 = vsyncpa [#allocation8], 0
    %s31 = scalar_lea.sflag [#allocation8], 1
    %32 = vsyncpa %s31, 0
    %33 = vsyncpa [#allocation11], 0
    %s34 = scalar_lea.sflag [#allocation11], 1
    %35 = vsyncpa %s34, 0
    %36 = vsyncpa [#allocation14], 0
    %s37 = scalar_lea.sflag [#allocation14], 1
    %38 = vsyncpa %s37, 0
    %39 = vsyncpa [#allocation6], 0
    %s40 = scalar_lea.sflag [#allocation6], 1
    %41 = vsyncpa %s40, 0
    loop: start=0, step=1, limit=5
    $region2: #{tpu_custom_call.1} parent=1 // loop_pre_header
      _
    $region3: #{tpu_custom_call.1} parent=1 // loop_header
      %s43 = sphi 0, %s47
      %p44 = scmp.ge.s32.totalorder %s43, 5
      %s51 = sphi 0, %s51
      %s53 = sphi 0, %s51
      %s54 = sphi 0, %s53
      %s68 = sphi 0, %s54
      %s74 = sphi 0, %s76
      %s77 = sphi 0, %s74
      %s78 = sphi 0, %s77
      %s94 = sphi 0, %s78
      %s100 = sphi 0, %s102
      %s103 = sphi 0, %s100
      %s104 = sphi 0, %s103
      %s120 = sphi 0, %s104
      %s126 = sphi 0, %s128
      %s129 = sphi 0, %s126
      %s130 = sphi 0, %s129
      %s146 = sphi 0, %s130
      %s152 = sphi 0, %s154
      %s155 = sphi 0, %s152
      %s156 = sphi 0, %s155
      %s172 = sphi 0, %s156
      %s178 = sphi 0, %s180
      %s181 = sphi 0, %s178
      %s182 = sphi 0, %s181
      %s198 = sphi 0, %s182
      %s204 = sphi 0, %s206
      %s207 = sphi 0, %s204
      %s208 = sphi 0, %s207
      %s224 = sphi 0, %s208
      %s230 = sphi 0, %s232
      %s233 = sphi 0, %s230
      %s234 = sphi 0, %s233
      %s250 = sphi 0, %s234
      %s256 = sphi 0, %s258
      %s259 = sphi 0, %s256
      %s260 = sphi 0, %s259
      %s276 = sphi 0, %s260
      %s282 = sphi 0, %s284
      %s285 = sphi 0, %s282
      %s286 = sphi 0, %s285
      %s302 = sphi 0, %s286
      %s308 = sphi 0, %s310
      %s311 = sphi 0, %s308
      %s312 = sphi 0, %s311
      %s328 = sphi 0, %s312
      %s334 = sphi 0, %s336
      %s337 = sphi 0, %s334
      %s338 = sphi 0, %s337
      %s354 = sphi 0, %s338
      %s360 = sphi 0, %s362
      %s363 = sphi 0, %s360
      %s364 = sphi 0, %s363
      %s380 = sphi 0, %s364
      %s386 = sphi 0, %s388
      %s389 = sphi 0, %s386
      %s390 = sphi 0, %s389
      %s406 = sphi 0, %s390
      %s412 = sphi 0, %s414
      %s415 = sphi 0, %s412
      %s416 = sphi 0, %s415
      %s432 = sphi 0, %s416
      %s438 = sphi 0, %s440
      %s441 = sphi 0, %s438
      %s442 = sphi 0, %s441
      %s458 = sphi 0, %s442
    $region4: #{tpu_custom_call.1} parent=1 // loop_header_branch
      %46 = sbr.rel (%p44) target = $region8
    $region5: #{tpu_custom_call.1} parent=1 // loop_body
      %s48 = ssub.s32 %s43, 1
      %s49 = ssub.s32 %s43, 2
      %s50 = sadd.s32 %s43, 1
      %s52 = sadd.s32 %s51, 1
      %p55 = scmp.eq.s32.totalorder %s43, 2
      %p56 = scmp.ne.s32.totalorder %s51, %s53
      %p57 = scmp.eq.s32.totalorder %s43, 0
      %p58 = por %p56, %p57
      %p59 = scmp.ne.s32.totalorder %s51, %s53
      %p60 = scmp.eq.s32.totalorder %s48, 2
      %p61 = por %p59, %p60
      %p62 = scmp.ne.s32.totalorder %s53, %s54
      %p63 = scmp.eq.s32.totalorder %s48, 0
      %p64 = por %p62, %p63
      %p65 = scmp.ne.s32.totalorder %s53, %s54
      %p66 = scmp.eq.s32.totalorder %s49, 2
      %p67 = por %p65, %p66
      %p69 = scmp.ne.s32.totalorder %s54, %s68
      %p70 = scmp.eq.s32.totalorder %s49, 0
      %p71 = por %p69, %p70
      %s72 = ssub.s32 %s43, %s50
      %p73 = scmp.eq.s32.totalorder %s72, 0
      %s75 = sadd.s32 %s74, 1
      %s76 = scalar_select %p73, %s74, %s75
      %p79 = pneg %p73
      %p80 = scmp.eq.s32.totalorder %s43, 2
      %p81 = por %p79, %p80
      %p82 = scmp.ne.s32.totalorder %s74, %s77
      %p83 = scmp.eq.s32.totalorder %s43, 0
      %p84 = por %p82, %p83
      %p85 = scmp.ne.s32.totalorder %s74, %s77
      %p86 = scmp.eq.s32.totalorder %s48, 2
      %p87 = por %p85, %p86
      %p88 = scmp.ne.s32.totalorder %s77, %s78
      %p89 = scmp.eq.s32.totalorder %s48, 0
      %p90 = por %p88, %p89
      %p91 = scmp.ne.s32.totalorder %s77, %s78
      %p92 = scmp.eq.s32.totalorder %s49, 2
      %p93 = por %p91, %p92
      %p95 = scmp.ne.s32.totalorder %s78, %s94
      %p96 = scmp.eq.s32.totalorder %s49, 0
      %p97 = por %p95, %p96
      %s98 = ssub.s32 %s43, %s50
      %p99 = scmp.eq.s32.totalorder %s98, 0
      %s101 = sadd.s32 %s100, 1
      %s102 = scalar_select %p99, %s100, %s101
      %p105 = pneg %p99
      %p106 = scmp.eq.s32.totalorder %s43, 2
      %p107 = por %p105, %p106
      %p108 = scmp.ne.s32.totalorder %s100, %s103
      %p109 = scmp.eq.s32.totalorder %s43, 0
      %p110 = por %p108, %p109
      %p111 = scmp.ne.s32.totalorder %s100, %s103
      %p112 = scmp.eq.s32.totalorder %s48, 2
      %p113 = por %p111, %p112
      %p114 = scmp.ne.s32.totalorder %s103, %s104
      %p115 = scmp.eq.s32.totalorder %s48, 0
      %p116 = por %p114, %p115
      %p117 = scmp.ne.s32.totalorder %s103, %s104
      %p118 = scmp.eq.s32.totalorder %s49, 2
      %p119 = por %p117, %p118
      %p121 = scmp.ne.s32.totalorder %s104, %s120
      %p122 = scmp.eq.s32.totalorder %s49, 0
      %p123 = por %p121, %p122
      %s124 = ssub.s32 %s43, %s50
      %p125 = scmp.eq.s32.totalorder %s124, 0
      %s127 = sadd.s32 %s126, 1
      %s128 = scalar_select %p125, %s126, %s127
      %p131 = pneg %p125
      %p132 = scmp.eq.s32.totalorder %s43, 2
      %p133 = por %p131, %p132
      %p134 = scmp.ne.s32.totalorder %s126, %s129
      %p135 = scmp.eq.s32.totalorder %s43, 0
      %p136 = por %p134, %p135
      %p137 = scmp.ne.s32.totalorder %s126, %s129
      %p138 = scmp.eq.s32.totalorder %s48, 2
      %p139 = por %p137, %p138
      %p140 = scmp.ne.s32.totalorder %s129, %s130
      %p141 = scmp.eq.s32.totalorder %s48, 0
      %p142 = por %p140, %p141
      %p143 = scmp.ne.s32.totalorder %s129, %s130
      %p144 = scmp.eq.s32.totalorder %s49, 2
      %p145 = por %p143, %p144
      %p147 = scmp.ne.s32.totalorder %s130, %s146
      %p148 = scmp.eq.s32.totalorder %s49, 0
      %p149 = por %p147, %p148
      %s150 = ssub.s32 %s43, %s50
      %p151 = scmp.eq.s32.totalorder %s150, 0
      %s153 = sadd.s32 %s152, 1
      %s154 = scalar_select %p151, %s152, %s153
      %p157 = pneg %p151
      %p158 = scmp.eq.s32.totalorder %s43, 2
      %p159 = por %p157, %p158
      %p160 = scmp.ne.s32.totalorder %s152, %s155
      %p161 = scmp.eq.s32.totalorder %s43, 0
      %p162 = por %p160, %p161
      %p163 = scmp.ne.s32.totalorder %s152, %s155
      %p164 = scmp.eq.s32.totalorder %s48, 2
      %p165 = por %p163, %p164
      %p166 = scmp.ne.s32.totalorder %s155, %s156
      %p167 = scmp.eq.s32.totalorder %s48, 0
      %p168 = por %p166, %p167
      %p169 = scmp.ne.s32.totalorder %s155, %s156
      %p170 = scmp.eq.s32.totalorder %s49, 2
      %p171 = por %p169, %p170
      %p173 = scmp.ne.s32.totalorder %s156, %s172
      %p174 = scmp.eq.s32.totalorder %s49, 0
      %p175 = por %p173, %p174
      %s176 = ssub.s32 %s43, %s50
      %p177 = scmp.eq.s32.totalorder %s176, 0
      %s179 = sadd.s32 %s178, 1
      %s180 = scalar_select %p177, %s178, %s179
      %p183 = pneg %p177
      %p184 = scmp.eq.s32.totalorder %s43, 2
      %p185 = por %p183, %p184
      %p186 = scmp.ne.s32.totalorder %s178, %s181
      %p187 = scmp.eq.s32.totalorder %s43, 0
      %p188 = por %p186, %p187
      %p189 = scmp.ne.s32.totalorder %s178, %s181
      %p190 = scmp.eq.s32.totalorder %s48, 2
      %p191 = por %p189, %p190
      %p192 = scmp.ne.s32.totalorder %s181, %s182
      %p193 = scmp.eq.s32.totalorder %s48, 0
      %p194 = por %p192, %p193
      %p195 = scmp.ne.s32.totalorder %s181, %s182
      %p196 = scmp.eq.s32.totalorder %s49, 2
      %p197 = por %p195, %p196
      %p199 = scmp.ne.s32.totalorder %s182, %s198
      %p200 = scmp.eq.s32.totalorder %s49, 0
      %p201 = por %p199, %p200
      %s202 = ssub.s32 %s43, %s50
      %p203 = scmp.eq.s32.totalorder %s202, 0
      %s205 = sadd.s32 %s204, 1
      %s206 = scalar_select %p203, %s204, %s205
      %p209 = pneg %p203
      %p210 = scmp.eq.s32.totalorder %s43, 2
      %p211 = por %p209, %p210
      %p212 = scmp.ne.s32.totalorder %s204, %s207
      %p213 = scmp.eq.s32.totalorder %s43, 0
      %p214 = por %p212, %p213
      %p215 = scmp.ne.s32.totalorder %s204, %s207
      %p216 = scmp.eq.s32.totalorder %s48, 2
      %p217 = por %p215, %p216
      %p218 = scmp.ne.s32.totalorder %s207, %s208
      %p219 = scmp.eq.s32.totalorder %s48, 0
      %p220 = por %p218, %p219
      %p221 = scmp.ne.s32.totalorder %s207, %s208
      %p222 = scmp.eq.s32.totalorder %s49, 2
      %p223 = por %p221, %p222
      %p225 = scmp.ne.s32.totalorder %s208, %s224
      %p226 = scmp.eq.s32.totalorder %s49, 0
      %p227 = por %p225, %p226
      %s228 = ssub.s32 %s43, %s50
      %p229 = scmp.eq.s32.totalorder %s228, 0
      %s231 = sadd.s32 %s230, 1
      %s232 = scalar_select %p229, %s230, %s231
      %p235 = pneg %p229
      %p236 = scmp.eq.s32.totalorder %s43, 2
      %p237 = por %p235, %p236
      %p238 = scmp.ne.s32.totalorder %s230, %s233
      %p239 = scmp.eq.s32.totalorder %s43, 0
      %p240 = por %p238, %p239
      %p241 = scmp.ne.s32.totalorder %s230, %s233
      %p242 = scmp.eq.s32.totalorder %s48, 2
      %p243 = por %p241, %p242
      %p244 = scmp.ne.s32.totalorder %s233, %s234
      %p245 = scmp.eq.s32.totalorder %s48, 0
      %p246 = por %p244, %p245
      %p247 = scmp.ne.s32.totalorder %s233, %s234
      %p248 = scmp.eq.s32.totalorder %s49, 2
      %p249 = por %p247, %p248
      %p251 = scmp.ne.s32.totalorder %s234, %s250
      %p252 = scmp.eq.s32.totalorder %s49, 0
      %p253 = por %p251, %p252
      %s254 = ssub.s32 %s43, %s50
      %p255 = scmp.eq.s32.totalorder %s254, 0
      %s257 = sadd.s32 %s256, 1
      %s258 = scalar_select %p255, %s256, %s257
      %p261 = pneg %p255
      %p262 = scmp.eq.s32.totalorder %s43, 2
      %p263 = por %p261, %p262
      %p264 = scmp.ne.s32.totalorder %s256, %s259
      %p265 = scmp.eq.s32.totalorder %s43, 0
      %p266 = por %p264, %p265
      %p267 = scmp.ne.s32.totalorder %s256, %s259
      %p268 = scmp.eq.s32.totalorder %s48, 2
      %p269 = por %p267, %p268
      %p270 = scmp.ne.s32.totalorder %s259, %s260
      %p271 = scmp.eq.s32.totalorder %s48, 0
      %p272 = por %p270, %p271
      %p273 = scmp.ne.s32.totalorder %s259, %s260
      %p274 = scmp.eq.s32.totalorder %s49, 2
      %p275 = por %p273, %p274
      %p277 = scmp.ne.s32.totalorder %s260, %s276
      %p278 = scmp.eq.s32.totalorder %s49, 0
      %p279 = por %p277, %p278
      %s280 = ssub.s32 %s43, %s50
      %p281 = scmp.eq.s32.totalorder %s280, 0
      %s283 = sadd.s32 %s282, 1
      %s284 = scalar_select %p281, %s282, %s283
      %p287 = pneg %p281
      %p288 = scmp.eq.s32.totalorder %s43, 2
      %p289 = por %p287, %p288
      %p290 = scmp.ne.s32.totalorder %s282, %s285
      %p291 = scmp.eq.s32.totalorder %s43, 0
      %p292 = por %p290, %p291
      %p293 = scmp.ne.s32.totalorder %s282, %s285
      %p294 = scmp.eq.s32.totalorder %s48, 2
      %p295 = por %p293, %p294
      %p296 = scmp.ne.s32.totalorder %s285, %s286
      %p297 = scmp.eq.s32.totalorder %s48, 0
      %p298 = por %p296, %p297
      %p299 = scmp.ne.s32.totalorder %s285, %s286
      %p300 = scmp.eq.s32.totalorder %s49, 2
      %p301 = por %p299, %p300
      %p303 = scmp.ne.s32.totalorder %s286, %s302
      %p304 = scmp.eq.s32.totalorder %s49, 0
      %p305 = por %p303, %p304
      %s306 = ssub.s32 %s43, %s50
      %p307 = scmp.eq.s32.totalorder %s306, 0
      %s309 = sadd.s32 %s308, 1
      %s310 = scalar_select %p307, %s308, %s309
      %p313 = pneg %p307
      %p314 = scmp.eq.s32.totalorder %s43, 2
      %p315 = por %p313, %p314
      %p316 = scmp.ne.s32.totalorder %s308, %s311
      %p317 = scmp.eq.s32.totalorder %s43, 0
      %p318 = por %p316, %p317
      %p319 = scmp.ne.s32.totalorder %s308, %s311
      %p320 = scmp.eq.s32.totalorder %s48, 2
      %p321 = por %p319, %p320
      %p322 = scmp.ne.s32.totalorder %s311, %s312
      %p323 = scmp.eq.s32.totalorder %s48, 0
      %p324 = por %p322, %p323
      %p325 = scmp.ne.s32.totalorder %s311, %s312
      %p326 = scmp.eq.s32.totalorder %s49, 2
      %p327 = por %p325, %p326
      %p329 = scmp.ne.s32.totalorder %s312, %s328
      %p330 = scmp.eq.s32.totalorder %s49, 0
      %p331 = por %p329, %p330
      %s332 = ssub.s32 %s43, %s50
      %p333 = scmp.eq.s32.totalorder %s332, 0
      %s335 = sadd.s32 %s334, 1
      %s336 = scalar_select %p333, %s334, %s335
      %p339 = pneg %p333
      %p340 = scmp.eq.s32.totalorder %s43, 2
      %p341 = por %p339, %p340
      %p342 = scmp.ne.s32.totalorder %s334, %s337
      %p343 = scmp.eq.s32.totalorder %s43, 0
      %p344 = por %p342, %p343
      %p345 = scmp.ne.s32.totalorder %s334, %s337
      %p346 = scmp.eq.s32.totalorder %s48, 2
      %p347 = por %p345, %p346
      %p348 = scmp.ne.s32.totalorder %s337, %s338
      %p349 = scmp.eq.s32.totalorder %s48, 0
      %p350 = por %p348, %p349
      %p351 = scmp.ne.s32.totalorder %s337, %s338
      %p352 = scmp.eq.s32.totalorder %s49, 2
      %p353 = por %p351, %p352
      %p355 = scmp.ne.s32.totalorder %s338, %s354
      %p356 = scmp.eq.s32.totalorder %s49, 0
      %p357 = por %p355, %p356
      %s358 = ssub.s32 %s43, %s50
      %p359 = scmp.eq.s32.totalorder %s358, 0
      %s361 = sadd.s32 %s360, 1
      %s362 = scalar_select %p359, %s360, %s361
      %p365 = pneg %p359
      %p366 = scmp.eq.s32.totalorder %s43, 2
      %p367 = por %p365, %p366
      %p368 = scmp.ne.s32.totalorder %s360, %s363
      %p369 = scmp.eq.s32.totalorder %s43, 0
      %p370 = por %p368, %p369
      %p371 = scmp.ne.s32.totalorder %s360, %s363
      %p372 = scmp.eq.s32.totalorder %s48, 2
      %p373 = por %p371, %p372
      %p374 = scmp.ne.s32.totalorder %s363, %s364
      %p375 = scmp.eq.s32.totalorder %s48, 0
      %p376 = por %p374, %p375
      %p377 = scmp.ne.s32.totalorder %s363, %s364
      %p378 = scmp.eq.s32.totalorder %s49, 2
      %p379 = por %p377, %p378
      %p381 = scmp.ne.s32.totalorder %s364, %s380
      %p382 = scmp.eq.s32.totalorder %s49, 0
      %p383 = por %p381, %p382
      %s384 = ssub.s32 %s43, %s50
      %p385 = scmp.eq.s32.totalorder %s384, 0
      %s387 = sadd.s32 %s386, 1
      %s388 = scalar_select %p385, %s386, %s387
      %p391 = pneg %p385
      %p392 = scmp.eq.s32.totalorder %s43, 2
      %p393 = por %p391, %p392
      %p394 = scmp.ne.s32.totalorder %s386, %s389
      %p395 = scmp.eq.s32.totalorder %s43, 0
      %p396 = por %p394, %p395
      %p397 = scmp.ne.s32.totalorder %s386, %s389
      %p398 = scmp.eq.s32.totalorder %s48, 2
      %p399 = por %p397, %p398
      %p400 = scmp.ne.s32.totalorder %s389, %s390
      %p401 = scmp.eq.s32.totalorder %s48, 0
      %p402 = por %p400, %p401
      %p403 = scmp.ne.s32.totalorder %s389, %s390
      %p404 = scmp.eq.s32.totalorder %s49, 2
      %p405 = por %p403, %p404
      %p407 = scmp.ne.s32.totalorder %s390, %s406
      %p408 = scmp.eq.s32.totalorder %s49, 0
      %p409 = por %p407, %p408
      %s410 = ssub.s32 %s43, %s50
      %p411 = scmp.eq.s32.totalorder %s410, 0
      %s413 = sadd.s32 %s412, 1
      %s414 = scalar_select %p411, %s412, %s413
      %p417 = pneg %p411
      %p418 = scmp.eq.s32.totalorder %s43, 2
      %p419 = por %p417, %p418
      %p420 = scmp.ne.s32.totalorder %s412, %s415
      %p421 = scmp.eq.s32.totalorder %s43, 0
      %p422 = por %p420, %p421
      %p423 = scmp.ne.s32.totalorder %s412, %s415
      %p424 = scmp.eq.s32.totalorder %s48, 2
      %p425 = por %p423, %p424
      %p426 = scmp.ne.s32.totalorder %s415, %s416
      %p427 = scmp.eq.s32.totalorder %s48, 0
      %p428 = por %p426, %p427
      %p429 = scmp.ne.s32.totalorder %s415, %s416
      %p430 = scmp.eq.s32.totalorder %s49, 2
      %p431 = por %p429, %p430
      %p433 = scmp.ne.s32.totalorder %s416, %s432
      %p434 = scmp.eq.s32.totalorder %s49, 0
      %p435 = por %p433, %p434
      %s436 = ssub.s32 %s43, %s50
      %p437 = scmp.eq.s32.totalorder %s436, 0
      %s439 = sadd.s32 %s438, 1
      %s440 = scalar_select %p437, %s438, %s439
      %p443 = pneg %p437
      %p444 = scmp.eq.s32.totalorder %s43, 2
      %p445 = por %p443, %p444
      %p446 = scmp.ne.s32.totalorder %s438, %s441
      %p447 = scmp.eq.s32.totalorder %s43, 0
      %p448 = por %p446, %p447
      %p449 = scmp.ne.s32.totalorder %s438, %s441
      %p450 = scmp.eq.s32.totalorder %s48, 2
      %p451 = por %p449, %p450
      %p452 = scmp.ne.s32.totalorder %s441, %s442
      %p453 = scmp.eq.s32.totalorder %s48, 0
      %p454 = por %p452, %p453
      %p455 = scmp.ne.s32.totalorder %s441, %s442
      %p456 = scmp.eq.s32.totalorder %s49, 2
      %p457 = por %p455, %p456
      %p459 = scmp.ne.s32.totalorder %s442, %s458
      %p460 = scmp.eq.s32.totalorder %s49, 0
      %p461 = por %p459, %p460
      %p462 = scmp.le.s32.totalorder 1, %s43
      %p463 = scmp.lt.s32.totalorder %s43, 4
      %p464 = pnand %p462, %p463
      %p465 = pneg %p464
      // Predicated region
      $region9: #{tpu_custom_call.1} parent=5 // pred_check
        _
      $region10: #{tpu_custom_call.1} parent=5 // pred_check_branch
        %467 = sbr.rel (%p464) target = $region12
      $region11: #{tpu_custom_call.1} parent=5 // pred_region
        %s468 = ssub.s32 %s43, 1
        // Predicated region
        $region13: #{tpu_custom_call.1} parent=11 // pred_check
          %p469 = pneg %p64
        $region14: #{tpu_custom_call.1} parent=11 // pred_check_branch
          %471 = sbr.rel (%p469) target = $region16
        $region15: #{tpu_custom_call.1} parent=11 // pred_region
          %473 = vsyncadd [#allocation5], 0
          %s474 = sshll.u32 %s1, 4
          %s475 = int_to_ptr.hbm [resolvable:$true] %s474
          %s476 = sshll.u32 [#allocation4], 4
          %s477 = int_to_ptr.vmem [resolvable:$true] %s476
          %482 = dma.hbm_to_vmem [thread:$0]  %s475, 512, %s477, [#allocation5], 128, 128, 8
        $region16: #{tpu_custom_call.1} parent=11 // pred_fallthru
          _
      $region12: #{tpu_custom_call.1} parent=5 // pred_fallthru
        _
      %p483 = scmp.lt.s32.totalorder %s43, 3
      // Predicated region
      $region17: #{tpu_custom_call.1} parent=5 // pred_check
        %p484 = pneg %p483
      $region18: #{tpu_custom_call.1} parent=5 // pred_check_branch
        %486 = sbr.rel (%p484) target = $region20
      $region19: #{tpu_custom_call.1} parent=5 // pred_region
        // Predicated region
        $region21: #{tpu_custom_call.1} parent=19 // pred_check
          %p487 = pneg %p84
        $region22: #{tpu_custom_call.1} parent=19 // pred_check_branch
          %489 = sbr.rel (%p487) target = $region24
        $region23: #{tpu_custom_call.1} parent=19 // pred_region
          %p490 = scmp.lt.s32.totalorder %s43, 2
          %s491 = scalar_select %p490, %s43, 2
          %s492 = smul.addr %s491, 4
          %s493 = smul.addr %s492, 4
          %s494 = scalar_lea.vmem %s2, %s493
        $region24: #{tpu_custom_call.1} parent=19 // pred_fallthru
          _
        // Predicated region
        $region25: #{tpu_custom_call.1} parent=19 // pred_check
          %p495 = pneg %p110
        $region26: #{tpu_custom_call.1} parent=19 // pred_check_branch
          %497 = sbr.rel (%p495) target = $region28
        $region27: #{tpu_custom_call.1} parent=19 // pred_region
          %s498 = sand.u32 %s43, 1
          %s499 = scalar_lea.sflag [#allocation8], %s498
          %s500 = sand.u32 %s100, 1
          %s501 = scalar_lea.vmem [#allocation7], %s500
          %503 = vsyncadd %s499, 0
          %s504 = scalar_lea.hbm %s3, %s43
          %s506 = sshll.u32 %s504, 4
          %s507 = int_to_ptr.hbm [resolvable:$true] %s506
          %s508 = sshll.u32 %s501, 4
          %s509 = int_to_ptr.vmem [resolvable:$true] %s508
          %511 = dma.hbm_to_vmem [thread:$0]  %s507, 16, %s509, %s499
        $region28: #{tpu_custom_call.1} parent=19 // pred_fallthru
          _
        // Predicated region
        $region29: #{tpu_custom_call.1} parent=19 // pred_check
          %p512 = pneg %p136
        $region30: #{tpu_custom_call.1} parent=19 // pred_check_branch
          %514 = sbr.rel (%p512) target = $region32
        $region31: #{tpu_custom_call.1} parent=19 // pred_region
          %p515 = scmp.lt.s32.totalorder %s43, 2
          %s516 = scalar_select %p515, %s43, 2
          %s517 = smul.addr %s516, 4
          %s518 = smul.addr %s517, 4
          %s519 = scalar_lea.vmem %s4, %s518
        $region32: #{tpu_custom_call.1} parent=19 // pred_fallthru
          _
        // Predicated region
        $region33: #{tpu_custom_call.1} parent=19 // pred_check
          %p520 = pneg %p162
        $region34: #{tpu_custom_call.1} parent=19 // pred_check_branch
          %522 = sbr.rel (%p520) target = $region36
        $region35: #{tpu_custom_call.1} parent=19 // pred_region
          %p523 = scmp.lt.s32.totalorder %s43, 2
          %s524 = scalar_select %p523, %s43, 2
          %s525 = scalar_lea.vmem %s5, %s524
        $region36: #{tpu_custom_call.1} parent=19 // pred_fallthru
          _
        // Predicated region
        $region37: #{tpu_custom_call.1} parent=19 // pred_check
          %p526 = pneg %p188
        $region38: #{tpu_custom_call.1} parent=19 // pred_check_branch
          %528 = sbr.rel (%p526) target = $region40
        $region39: #{tpu_custom_call.1} parent=19 // pred_region
          %p529 = scmp.lt.s32.totalorder %s43, 2
          %s530 = scalar_select %p529, %s43, 2
          %s531 = smul.addr %s530, 4
          %s532 = smul.addr %s531, 4
          %s533 = scalar_lea.vmem %s6, %s532
        $region40: #{tpu_custom_call.1} parent=19 // pred_fallthru
          _
        // Predicated region
        $region41: #{tpu_custom_call.1} parent=19 // pred_check
          %p534 = pneg %p214
        $region42: #{tpu_custom_call.1} parent=19 // pred_check_branch
          %536 = sbr.rel (%p534) target = $region44
        $region43: #{tpu_custom_call.1} parent=19 // pred_region
          %s537 = sand.u32 %s43, 1
          %s538 = scalar_lea.sflag [#allocation8], %s537
          %s539 = sand.u32 %s204, 1
          %s540 = scalar_lea.vmem [#allocation9], %s539
          %542 = vsyncadd %s538, 0
          %s543 = scalar_lea.hbm %s7, %s43
          %s545 = sshll.u32 %s543, 4
          %s546 = int_to_ptr.hbm [resolvable:$true] %s545
          %s547 = sshll.u32 %s540, 4
          %s548 = int_to_ptr.vmem [resolvable:$true] %s547
          %550 = dma.hbm_to_vmem [thread:$0]  %s546, 16, %s548, %s538
        $region44: #{tpu_custom_call.1} parent=19 // pred_fallthru
          _
        // Predicated region
        $region45: #{tpu_custom_call.1} parent=19 // pred_check
          %p551 = pneg %p240
        $region46: #{tpu_custom_call.1} parent=19 // pred_check_branch
          %553 = sbr.rel (%p551) target = $region48
        $region47: #{tpu_custom_call.1} parent=19 // pred_region
          %p554 = scmp.lt.s32.totalorder %s43, 2
          %s555 = scalar_select %p554, %s43, 2
          %s556 = smul.addr %s555, 8
          %s557 = smul.addr %s556, 4
          %s558 = scalar_lea.vmem %s8, %s557
        $region48: #{tpu_custom_call.1} parent=19 // pred_fallthru
          _
        // Predicated region
        $region49: #{tpu_custom_call.1} parent=19 // pred_check
          %p559 = pneg %p266
        $region50: #{tpu_custom_call.1} parent=19 // pred_check_branch
          %561 = sbr.rel (%p559) target = $region52
        $region51: #{tpu_custom_call.1} parent=19 // pred_region
          %p562 = scmp.lt.s32.totalorder %s43, 2
          %s563 = scalar_select %p562, %s43, 2
          %s564 = scalar_lea.vmem %s9, %s563
        $region52: #{tpu_custom_call.1} parent=19 // pred_fallthru
          _
        // Predicated region
        $region53: #{tpu_custom_call.1} parent=19 // pred_check
          %p565 = pneg %p292
        $region54: #{tpu_custom_call.1} parent=19 // pred_check_branch
          %567 = sbr.rel (%p565) target = $region56
        $region55: #{tpu_custom_call.1} parent=19 // pred_region
          %p568 = scmp.lt.s32.totalorder %s43, 2
          %s569 = scalar_select %p568, %s43, 2
          %s570 = scalar_lea.vmem %s10, %s569
        $region56: #{tpu_custom_call.1} parent=19 // pred_fallthru
          _
        // Predicated region
        $region57: #{tpu_custom_call.1} parent=19 // pred_check
          %p571 = pneg %p318
        $region58: #{tpu_custom_call.1} parent=19 // pred_check_branch
          %573 = sbr.rel (%p571) target = $region60
        $region59: #{tpu_custom_call.1} parent=19 // pred_region
          %s574 = sand.u32 %s43, 1
          %s575 = scalar_lea.sflag [#allocation11], %s574
          %s576 = sand.u32 %s308, 1
          %s577 = scalar_lea.vmem [#allocation10], %s576
          %579 = vsyncadd %s575, 0
          %s580 = scalar_lea.hbm %s11, %s43
          %s582 = sshll.u32 %s580, 4
          %s583 = int_to_ptr.hbm [resolvable:$true] %s582
          %s584 = sshll.u32 %s577, 4
          %s585 = int_to_ptr.vmem [resolvable:$true] %s584
          %587 = dma.hbm_to_vmem [thread:$0]  %s583, 16, %s585, %s575
        $region60: #{tpu_custom_call.1} parent=19 // pred_fallthru
          _
        // Predicated region
        $region61: #{tpu_custom_call.1} parent=19 // pred_check
          %p588 = pneg %p344
        $region62: #{tpu_custom_call.1} parent=19 // pred_check_branch
          %590 = sbr.rel (%p588) target = $region64
        $region63: #{tpu_custom_call.1} parent=19 // pred_region
          %s591 = sand.u32 %s43, 1
          %s592 = scalar_lea.sflag [#allocation11], %s591
          %s593 = sand.u32 %s334, 1
          %s594 = scalar_lea.vmem [#allocation12], %s593
          %596 = vsyncadd %s592, 0
          %s597 = scalar_lea.hbm %s12, %s43
          %s599 = sshll.u32 %s597, 4
          %s600 = int_to_ptr.hbm [resolvable:$true] %s599
          %s601 = sshll.u32 %s594, 4
          %s602 = int_to_ptr.vmem [resolvable:$true] %s601
          %604 = dma.hbm_to_vmem [thread:$0]  %s600, 16, %s602, %s592
        $region64: #{tpu_custom_call.1} parent=19 // pred_fallthru
          _
        // Predicated region
        $region65: #{tpu_custom_call.1} parent=19 // pred_check
          %p605 = pneg %p370
        $region66: #{tpu_custom_call.1} parent=19 // pred_check_branch
          %607 = sbr.rel (%p605) target = $region68
        $region67: #{tpu_custom_call.1} parent=19 // pred_region
          %s608 = sand.u32 %s43, 1
          %s609 = scalar_lea.sflag [#allocation14], %s608
          %s610 = sand.u32 %s360, 1
          %s611 = scalar_lea.vmem [#allocation13], %s610
          %613 = vsyncadd %s609, 0
          %s614 = scalar_lea.hbm %s13, %s43
          %s616 = sshll.u32 %s614, 4
          %s617 = int_to_ptr.hbm [resolvable:$true] %s616
          %s618 = sshll.u32 %s611, 4
          %s619 = int_to_ptr.vmem [resolvable:$true] %s618
          %621 = dma.hbm_to_vmem [thread:$0]  %s617, 16, %s619, %s609
        $region68: #{tpu_custom_call.1} parent=19 // pred_fallthru
          _
        // Predicated region
        $region69: #{tpu_custom_call.1} parent=19 // pred_check
          %p622 = pneg %p396
        $region70: #{tpu_custom_call.1} parent=19 // pred_check_branch
          %624 = sbr.rel (%p622) target = $region72
        $region71: #{tpu_custom_call.1} parent=19 // pred_region
          %p625 = scmp.lt.s32.totalorder %s43, 2
          %s626 = scalar_select %p625, %s43, 2
          %s627 = scalar_lea.vmem %s14, %s626
        $region72: #{tpu_custom_call.1} parent=19 // pred_fallthru
          _
        // Predicated region
        $region73: #{tpu_custom_call.1} parent=19 // pred_check
          %p628 = pneg %p422
        $region74: #{tpu_custom_call.1} parent=19 // pred_check_branch
          %630 = sbr.rel (%p628) target = $region76
        $region75: #{tpu_custom_call.1} parent=19 // pred_region
          %s631 = sand.u32 %s43, 1
          %s632 = scalar_lea.sflag [#allocation14], %s631
          %s633 = sand.u32 %s412, 1
          %s634 = scalar_lea.vmem [#allocation15], %s633
          %636 = vsyncadd %s632, 0
          %s637 = scalar_lea.hbm %s15, %s43
          %s639 = sshll.u32 %s637, 4
          %s640 = int_to_ptr.hbm [resolvable:$true] %s639
          %s641 = sshll.u32 %s634, 4
          %s642 = int_to_ptr.vmem [resolvable:$true] %s641
          %644 = dma.hbm_to_vmem [thread:$0]  %s640, 16, %s642, %s632
        $region76: #{tpu_custom_call.1} parent=19 // pred_fallthru
          _
      $region20: #{tpu_custom_call.1} parent=5 // pred_fallthru
        _
      %p645 = scmp.le.s32.totalorder 1, %s43
      %p646 = scmp.lt.s32.totalorder %s43, 4
      %p647 = pnand %p645, %p646
      %p648 = pneg %p647
      // Predicated region
      $region77: #{tpu_custom_call.1} parent=5 // pred_check
        _
      $region78: #{tpu_custom_call.1} parent=5 // pred_check_branch
        %650 = sbr.rel (%p647) target = $region80
      $region79: #{tpu_custom_call.1} parent=5 // pred_region
        %s651 = ssub.s32 %s43, 1
        // Predicated region
        $region81: #{tpu_custom_call.1} parent=79 // pred_check
          %p652 = pneg %p64
        $region82: #{tpu_custom_call.1} parent=79 // pred_check_branch
          %654 = sbr.rel (%p652) target = $region84
        $region83: #{tpu_custom_call.1} parent=79 // pred_region
          %656 = dma.done [#allocation5], 512
        $region84: #{tpu_custom_call.1} parent=79 // pred_fallthru
          _
        %s657 = sand.u32 %s48, 1
        %s658 = scalar_lea.sflag [#allocation8], %s657
        %s659 = sand.u32 %s103, 1
        %s660 = scalar_lea.vmem [#allocation7], %s659
        // Predicated region
        $region85: #{tpu_custom_call.1} parent=79 // pred_check
          %p661 = pneg %p116
        $region86: #{tpu_custom_call.1} parent=79 // pred_check_branch
          %663 = sbr.rel (%p661) target = $region88
        $region87: #{tpu_custom_call.1} parent=79 // pred_region
          %665 = dma.done %s658, 16
        $region88: #{tpu_custom_call.1} parent=79 // pred_fallthru
          _
        %s666 = sand.u32 %s48, 1
        %s667 = scalar_lea.sflag [#allocation8], %s666
        %s668 = sand.u32 %s207, 1
        %s669 = scalar_lea.vmem [#allocation9], %s668
        // Predicated region
        $region89: #{tpu_custom_call.1} parent=79 // pred_check
          %p670 = pneg %p220
        $region90: #{tpu_custom_call.1} parent=79 // pred_check_branch
          %672 = sbr.rel (%p670) target = $region92
        $region91: #{tpu_custom_call.1} parent=79 // pred_region
          %674 = dma.done %s667, 16
        $region92: #{tpu_custom_call.1} parent=79 // pred_fallthru
          _
        %s675 = sand.u32 %s48, 1
        %s676 = scalar_lea.sflag [#allocation11], %s675
        %s677 = sand.u32 %s311, 1
        %s678 = scalar_lea.vmem [#allocation10], %s677
        // Predicated region
        $region93: #{tpu_custom_call.1} parent=79 // pred_check
          %p679 = pneg %p324
        $region94: #{tpu_custom_call.1} parent=79 // pred_check_branch
          %681 = sbr.rel (%p679) target = $region96
        $region95: #{tpu_custom_call.1} parent=79 // pred_region
          %683 = dma.done %s676, 16
        $region96: #{tpu_custom_call.1} parent=79 // pred_fallthru
          _
        %s684 = sand.u32 %s48, 1
        %s685 = scalar_lea.sflag [#allocation11], %s684
        %s686 = sand.u32 %s337, 1
        %s687 = scalar_lea.vmem [#allocation12], %s686
        // Predicated region
        $region97: #{tpu_custom_call.1} parent=79 // pred_check
          %p688 = pneg %p350
        $region98: #{tpu_custom_call.1} parent=79 // pred_check_branch
          %690 = sbr.rel (%p688) target = $region100
        $region99: #{tpu_custom_call.1} parent=79 // pred_region
          %692 = dma.done %s685, 16
        $region100: #{tpu_custom_call.1} parent=79 // pred_fallthru
          _
        %s693 = sand.u32 %s48, 1
        %s694 = scalar_lea.sflag [#allocation14], %s693
        %s695 = sand.u32 %s363, 1
        %s696 = scalar_lea.vmem [#allocation13], %s695
        // Predicated region
        $region101: #{tpu_custom_call.1} parent=79 // pred_check
          %p697 = pneg %p376
        $region102: #{tpu_custom_call.1} parent=79 // pred_check_branch
          %699 = sbr.rel (%p697) target = $region104
        $region103: #{tpu_custom_call.1} parent=79 // pred_region
          %701 = dma.done %s694, 16
        $region104: #{tpu_custom_call.1} parent=79 // pred_fallthru
          _
        %s702 = sand.u32 %s48, 1
        %s703 = scalar_lea.sflag [#allocation14], %s702
        %s704 = sand.u32 %s415, 1
        %s705 = scalar_lea.vmem [#allocation15], %s704
        // Predicated region
        $region105: #{tpu_custom_call.1} parent=79 // pred_check
          %p706 = pneg %p428
        $region106: #{tpu_custom_call.1} parent=79 // pred_check_branch
          %708 = sbr.rel (%p706) target = $region108
        $region107: #{tpu_custom_call.1} parent=79 // pred_region
          %710 = dma.done %s703, 16
        $region108: #{tpu_custom_call.1} parent=79 // pred_fallthru
          _
        %p711 = pneg %p64
        %p712 = pneg %p61
        %p713 = scmp.lt.s32.totalorder %s48, 2
        %s714 = scalar_select %p713, %s48, 2
        %s715 = smul.addr %s714, 4
        %s716 = smul.addr %s715, 4
        %s717 = scalar_lea.vmem %s2, %s716
        %p718 = pneg %p90
        %p719 = pneg %p87
        %s720 = sand.u32 %s48, 1
        %s721 = scalar_lea.sflag [#allocation8], %s720
        %s722 = sand.u32 %s103, 1
        %s723 = scalar_lea.vmem [#allocation7], %s722
        %p724 = pneg %p116
        %p725 = pneg %p113
        %p726 = scmp.lt.s32.totalorder %s48, 2
        %s727 = scalar_select %p726, %s48, 2
        %s728 = smul.addr %s727, 4
        %s729 = smul.addr %s728, 4
        %s730 = scalar_lea.vmem %s4, %s729
        %p731 = pneg %p142
        %p732 = pneg %p139
        %p733 = scmp.lt.s32.totalorder %s48, 2
        %s734 = scalar_select %p733, %s48, 2
        %s735 = scalar_lea.vmem %s5, %s734
        %p736 = pneg %p168
        %p737 = pneg %p165
        %p738 = scmp.lt.s32.totalorder %s48, 2
        %s739 = scalar_select %p738, %s48, 2
        %s740 = smul.addr %s739, 4
        %s741 = smul.addr %s740, 4
        %s742 = scalar_lea.vmem %s6, %s741
        %p743 = pneg %p194
        %p744 = pneg %p191
        %s745 = sand.u32 %s48, 1
        %s746 = scalar_lea.sflag [#allocation8], %s745
        %s747 = sand.u32 %s207, 1
        %s748 = scalar_lea.vmem [#allocation9], %s747
        %p749 = pneg %p220
        %p750 = pneg %p217
        %p751 = scmp.lt.s32.totalorder %s48, 2
        %s752 = scalar_select %p751, %s48, 2
        %s753 = smul.addr %s752, 8
        %s754 = smul.addr %s753, 4
        %s755 = scalar_lea.vmem %s8, %s754
        %p756 = pneg %p246
        %p757 = pneg %p243
        %p758 = scmp.lt.s32.totalorder %s48, 2
        %s759 = scalar_select %p758, %s48, 2
        %s760 = scalar_lea.vmem %s9, %s759
        %p761 = pneg %p272
        %p762 = pneg %p269
        %p763 = scmp.lt.s32.totalorder %s48, 2
        %s764 = scalar_select %p763, %s48, 2
        %s765 = scalar_lea.vmem %s10, %s764
        %p766 = pneg %p298
        %p767 = pneg %p295
        %s768 = sand.u32 %s48, 1
        %s769 = scalar_lea.sflag [#allocation11], %s768
        %s770 = sand.u32 %s311, 1
        %s771 = scalar_lea.vmem [#allocation10], %s770
        %p772 = pneg %p324
        %p773 = pneg %p321
        %s774 = sand.u32 %s48, 1
        %s775 = scalar_lea.sflag [#allocation11], %s774
        %s776 = sand.u32 %s337, 1
        %s777 = scalar_lea.vmem [#allocation12], %s776
        %p778 = pneg %p350
        %p779 = pneg %p347
        %s780 = sand.u32 %s48, 1
        %s781 = scalar_lea.sflag [#allocation14], %s780
        %s782 = sand.u32 %s363, 1
        %s783 = scalar_lea.vmem [#allocation13], %s782
        %p784 = pneg %p376
        %p785 = pneg %p373
        %p786 = scmp.lt.s32.totalorder %s48, 2
        %s787 = scalar_select %p786, %s48, 2
        %s788 = scalar_lea.vmem %s14, %s787
        %p789 = pneg %p402
        %p790 = pneg %p399
        %s791 = sand.u32 %s48, 1
        %s792 = scalar_lea.sflag [#allocation14], %s791
        %s793 = sand.u32 %s415, 1
        %s794 = scalar_lea.vmem [#allocation15], %s793
        %p795 = pneg %p428
        %p796 = pneg %p425
        %p797 = pneg %p454
        %p798 = pneg %p451
        %s799 = sand.u32 %s441, 1
        %s800 = scalar_lea.sflag [#allocation6], %s799
        %s801 = sand.u32 %s441, 1
        %s802 = smul.addr %s801, 32
        %s803 = scalar_lea.vmem [#allocation16], %s802
        %p804 = scmp.lt.s32.totalorder %s48, 2
        %s805 = scalar_select %p804, %s48, 2
        %s806 = smul.addr %s805, 4
        %s807 = smul.addr %s806, 4
        %s808 = scalar_lea.vmem %s2, %s807
        %p809 = scmp.lt.s32.totalorder %s48, 2
        %s810 = scalar_select %p809, %s48, 2
        %s811 = smul.addr %s810, 4
        %s812 = smul.addr %s811, 4
        %s813 = scalar_lea.vmem %s4, %s812
        %p814 = scmp.lt.s32.totalorder %s48, 2
        %s815 = scalar_select %p814, %s48, 2
        %s816 = scalar_lea.vmem %s5, %s815
        %p817 = scmp.lt.s32.totalorder %s48, 2
        %s818 = scalar_select %p817, %s48, 2
        %s819 = smul.addr %s818, 4
        %s820 = smul.addr %s819, 4
        %s821 = scalar_lea.vmem %s6, %s820
        %p822 = scmp.lt.s32.totalorder %s48, 2
        %s823 = scalar_select %p822, %s48, 2
        %s824 = smul.addr %s823, 8
        %s825 = smul.addr %s824, 4
        %s826 = scalar_lea.vmem %s8, %s825
        %p827 = scmp.lt.s32.totalorder %s48, 2
        %s828 = scalar_select %p827, %s48, 2
        %s829 = scalar_lea.vmem %s9, %s828
        %p830 = scmp.lt.s32.totalorder %s48, 2
        %s831 = scalar_select %p830, %s48, 2
        %s832 = scalar_lea.vmem %s10, %s831
        %p833 = scmp.lt.s32.totalorder %s48, 2
        %s834 = scalar_select %p833, %s48, 2
        %s835 = scalar_lea.vmem %s14, %s834
        %s837 = sld [smem:[#allocation3 + %s48]]
        %v838 = vld [vmem:[#allocation4] sm:$0xff]
        %v839 = vld [vmem:[#allocation4 + $0x8] sm:$0xff]
        %v840 = vld [vmem:[#allocation4 + $0x10] sm:$0xff]
        %v841 = vld [vmem:[#allocation4 + $0x18] sm:$0xff]
        %v842 = vpack.c.bf16 %v839, %v838
        %v843 = vpack.c.bf16 %v841, %v840
        %v844 = vld [vmem:[%s808] sm:$0xf]
        %v845 = vld [vmem:[%s808 + $0x4] sm:$0xf]
        %v846 = vld [vmem:[%s808 + $0x8] sm:$0xf]
        %v847 = vld [vmem:[%s808 + $0xc] sm:$0xf]
        %v848 = vld [vmem:[%s660] sm:$0x1]
        %v850 = vperm.slane %v848, 0
        %v856 = vunpack.c.l.b16 %v844
        %v857 = vunpack.c.l.b16 %v845
        %v858 = vunpack.c.l.b16 %v846
        %v859 = vunpack.c.l.b16 %v847
        %v860 = vpack.c.b16 %v857, %v856
        %v861 = vpack.c.b16 %v859, %v858
        %vm864 = vcmask 261120
        %v866 = vsel %vm864, %v842, 0
        %v869 = vsel %vm864, %v843, 0
        %871 = vmatpush.bf16.msra.mxu0 0
        %872 = vmatpush.bf16.msra.mxu0 0
        %873 = vmatpush.bf16.msra.mxu0 0
        %874 = vmatpush.bf16.msra.mxu0 0
        %875 = vmatpush.bf16.msra.mxu0 0
        %876 = vmatpush.bf16.msra.mxu0 0
        %877 = vmatpush.bf16.msra.mxu0 %v861
        %878 = vmatpush.bf16.msra.mxu0 %v860
        %879 = vmatmul.bf16.gmra.mxu0 %v866
        %v880 = vpop.f32.mrf.mxu0
        %v881 = vadd.f32 %v850, %v880
        %v882 = vpop.f32.mrf.mxu0
        %v883 = vadd.f32 %v850, %v882
        %884 = vmatmul.bf16.gmra.mxu0 %v869
        %v885 = vpop.f32.mrf.mxu0
        %v886 = vadd.f32 %v850, %v885
        %v887 = vpop.f32.mrf.mxu0
        %v888 = vadd.f32 %v850, %v887
        %889 = vdwg.mxu0
        %894 = vrot.lane.b32.xlu0 %v881, 120
        %v895 = vpop.permute.xlu0 %894
        %896 = vrot.lane.b32.xlu0 %v883, 120
        %v897 = vpop.permute.xlu0 %896
        %898 = vrot.lane.b32.xlu0 %v886, 120
        %v899 = vpop.permute.xlu0 %898
        %900 = vrot.lane.b32.xlu0 %v888, 120
        %v901 = vpop.permute.xlu0 %900
        %906 = vrot.lane.b32.xlu0 %v881, 112
        %v907 = vpop.permute.xlu0 %906
        %908 = vrot.lane.b32.xlu0 %v883, 112
        %v909 = vpop.permute.xlu0 %908
        %910 = vrot.lane.b32.xlu0 %v886, 112
        %v911 = vpop.permute.xlu0 %910
        %912 = vrot.lane.b32.xlu0 %v888, 112
        %v913 = vpop.permute.xlu0 %912
        %918 = vrot.lane.b32.xlu0 %v881, 104
        %v919 = vpop.permute.xlu0 %918
        %920 = vrot.lane.b32.xlu0 %v883, 104
        %v921 = vpop.permute.xlu0 %920
        %922 = vrot.lane.b32.xlu0 %v886, 104
        %v923 = vpop.permute.xlu0 %922
        %924 = vrot.lane.b32.xlu0 %v888, 104
        %v925 = vpop.permute.xlu0 %924
        %v930 = vrot.slane %v907, 4
        %vm931 = vcmask 1047556
        %v932 = vsel %vm931, %v930, %v881
        %v933 = vrot.slane %v881, 4
        %v934 = vsel %vm931, %v907, %v933
        %v936 = vunpack.c.l.s4 1983009808
        %v937 = vunpack.c.0.s8 %v936
        %v938 = vperm.slane %v932, %v937
        %v940 = vunpack.c.l.s4 1983009808
        %v941 = vunpack.c.0.s8 %v940
        %v942 = vperm.slane %v934, %v941
        %v943 = vrot.slane %v919, 4
        %v944 = vsel %vm931, %v943, %v895
        %v945 = vrot.slane %v895, 4
        %v946 = vsel %vm931, %v919, %v945
        %v948 = vunpack.c.l.s4 1983009808
        %v949 = vunpack.c.0.s8 %v948
        %v950 = vperm.slane %v944, %v949
        %v952 = vunpack.c.l.s4 1983009808
        %v953 = vunpack.c.0.s8 %v952
        %v954 = vperm.slane %v946, %v953
        %v955 = vrot.slane %v950, 4
        %v956 = vsel %vm931, %v955, %v938
        %v957 = vrot.slane %v938, 4
        %v958 = vsel %vm931, %v950, %v957
        %v960 = vunpack.c.l.s4 1934713408
        %v961 = vunpack.c.0.s8 %v960
        %v962 = vperm.slane %v956, %v961
        %v964 = vunpack.c.l.s4 1934713408
        %v965 = vunpack.c.0.s8 %v964
        %v966 = vperm.slane %v958, %v965
        %v967 = vrot.slane %v954, 4
        %v968 = vsel %vm931, %v967, %v942
        %v969 = vrot.slane %v942, 4
        %v970 = vsel %vm931, %v954, %v969
        %v972 = vunpack.c.l.s4 1934713408
        %v973 = vunpack.c.0.s8 %v972
        %v974 = vperm.slane %v968, %v973
        %v976 = vunpack.c.l.s4 1934713408
        %v977 = vunpack.c.0.s8 %v976
        %v978 = vperm.slane %v970, %v977
        %v979 = vrot.slane %v962, 4
        %v980 = vsel %vm931, 0.0, %v979
        %v981 = vrot.slane %v966, 4
        %v982 = vsel %vm931, 0.0, %v981
        %v983 = vrot.slane %v974, 4
        %v984 = vsel %vm931, 0.0, %v983
        %v985 = vrot.slane %v978, 4
        %v986 = vsel %vm931, 0.0, %v985
        %v987 = vrot.slane %v909, 4
        %v988 = vsel %vm931, %v987, %v883
        %v989 = vrot.slane %v883, 4
        %v990 = vsel %vm931, %v909, %v989
        %v992 = vunpack.c.l.s4 1983009808
        %v993 = vunpack.c.0.s8 %v992
        %v994 = vperm.slane %v988, %v993
        %v996 = vunpack.c.l.s4 1983009808
        %v997 = vunpack.c.0.s8 %v996
        %v998 = vperm.slane %v990, %v997
        %v999 = vrot.slane %v921, 4
        %v1000 = vsel %vm931, %v999, %v897
        %v1001 = vrot.slane %v897, 4
        %v1002 = vsel %vm931, %v921, %v1001
        %v1004 = vunpack.c.l.s4 1983009808
        %v1005 = vunpack.c.0.s8 %v1004
        %v1006 = vperm.slane %v1000, %v1005
        %v1008 = vunpack.c.l.s4 1983009808
        %v1009 = vunpack.c.0.s8 %v1008
        %v1010 = vperm.slane %v1002, %v1009
        %v1011 = vrot.slane %v1006, 4
        %v1012 = vsel %vm931, %v1011, %v994
        %v1013 = vrot.slane %v994, 4
        %v1014 = vsel %vm931, %v1006, %v1013
        %v1016 = vunpack.c.l.s4 1934713408
        %v1017 = vunpack.c.0.s8 %v1016
        %v1018 = vperm.slane %v1012, %v1017
        %v1020 = vunpack.c.l.s4 1934713408
        %v1021 = vunpack.c.0.s8 %v1020
        %v1022 = vperm.slane %v1014, %v1021
        %v1023 = vrot.slane %v1010, 4
        %v1024 = vsel %vm931, %v1023, %v998
        %v1025 = vrot.slane %v998, 4
        %v1026 = vsel %vm931, %v1010, %v1025
        %v1028 = vunpack.c.l.s4 1934713408
        %v1029 = vunpack.c.0.s8 %v1028
        %v1030 = vperm.slane %v1024, %v1029
        %v1032 = vunpack.c.l.s4 1934713408
        %v1033 = vunpack.c.0.s8 %v1032
        %v1034 = vperm.slane %v1026, %v1033
        %v1035 = vrot.slane %v1018, 4
        %v1036 = vsel %vm931, 0.0, %v1035
        %v1037 = vrot.slane %v1022, 4
        %v1038 = vsel %vm931, 0.0, %v1037
        %v1039 = vrot.slane %v1030, 4
        %v1040 = vsel %vm931, 0.0, %v1039
        %v1041 = vrot.slane %v1034, 4
        %v1042 = vsel %vm931, 0.0, %v1041
        %v1043 = vrot.slane %v911, 4
        %v1044 = vsel %vm931, %v1043, %v886
        %v1045 = vrot.slane %v886, 4
        %v1046 = vsel %vm931, %v911, %v1045
        %v1048 = vunpack.c.l.s4 1983009808
        %v1049 = vunpack.c.0.s8 %v1048
        %v1050 = vperm.slane %v1044, %v1049
        %v1052 = vunpack.c.l.s4 1983009808
        %v1053 = vunpack.c.0.s8 %v1052
        %v1054 = vperm.slane %v1046, %v1053
        %v1055 = vrot.slane %v923, 4
        %v1056 = vsel %vm931, %v1055, %v899
        %v1057 = vrot.slane %v899, 4
        %v1058 = vsel %vm931, %v923, %v1057
        %v1060 = vunpack.c.l.s4 1983009808
        %v1061 = vunpack.c.0.s8 %v1060
        %v1062 = vperm.slane %v1056, %v1061
        %v1064 = vunpack.c.l.s4 1983009808
        %v1065 = vunpack.c.0.s8 %v1064
        %v1066 = vperm.slane %v1058, %v1065
        %v1067 = vrot.slane %v1062, 4
        %v1068 = vsel %vm931, %v1067, %v1050
        %v1069 = vrot.slane %v1050, 4
        %v1070 = vsel %vm931, %v1062, %v1069
        %v1072 = vunpack.c.l.s4 1934713408
        %v1073 = vunpack.c.0.s8 %v1072
        %v1074 = vperm.slane %v1068, %v1073
        %v1076 = vunpack.c.l.s4 1934713408
        %v1077 = vunpack.c.0.s8 %v1076
        %v1078 = vperm.slane %v1070, %v1077
        %v1079 = vrot.slane %v1066, 4
        %v1080 = vsel %vm931, %v1079, %v1054
        %v1081 = vrot.slane %v1054, 4
        %v1082 = vsel %vm931, %v1066, %v1081
        %v1084 = vunpack.c.l.s4 1934713408
        %v1085 = vunpack.c.0.s8 %v1084
        %v1086 = vperm.slane %v1080, %v1085
        %v1088 = vunpack.c.l.s4 1934713408
        %v1089 = vunpack.c.0.s8 %v1088
        %v1090 = vperm.slane %v1082, %v1089
        %v1091 = vrot.slane %v1074, 4
        %v1092 = vsel %vm931, 0.0, %v1091
        %v1093 = vrot.slane %v1078, 4
        %v1094 = vsel %vm931, 0.0, %v1093
        %v1095 = vrot.slane %v1086, 4
        %v1096 = vsel %vm931, 0.0, %v1095
        %v1097 = vrot.slane %v1090, 4
        %v1098 = vsel %vm931, 0.0, %v1097
        %v1099 = vrot.slane %v913, 4
        %v1100 = vsel %vm931, %v1099, %v888
        %v1101 = vrot.slane %v888, 4
        %v1102 = vsel %vm931, %v913, %v1101
        %v1104 = vunpack.c.l.s4 1983009808
        %v1105 = vunpack.c.0.s8 %v1104
        %v1106 = vperm.slane %v1100, %v1105
        %v1108 = vunpack.c.l.s4 1983009808
        %v1109 = vunpack.c.0.s8 %v1108
        %v1110 = vperm.slane %v1102, %v1109
        %v1111 = vrot.slane %v925, 4
        %v1112 = vsel %vm931, %v1111, %v901
        %v1113 = vrot.slane %v901, 4
        %v1114 = vsel %vm931, %v925, %v1113
        %v1116 = vunpack.c.l.s4 1983009808
        %v1117 = vunpack.c.0.s8 %v1116
        %v1118 = vperm.slane %v1112, %v1117
        %v1120 = vunpack.c.l.s4 1983009808
        %v1121 = vunpack.c.0.s8 %v1120
        %v1122 = vperm.slane %v1114, %v1121
        %v1123 = vrot.slane %v1118, 4
        %v1124 = vsel %vm931, %v1123, %v1106
        %v1125 = vrot.slane %v1106, 4
        %v1126 = vsel %vm931, %v1118, %v1125
        %v1128 = vunpack.c.l.s4 1934713408
        %v1129 = vunpack.c.0.s8 %v1128
        %v1130 = vperm.slane %v1124, %v1129
        %v1132 = vunpack.c.l.s4 1934713408
        %v1133 = vunpack.c.0.s8 %v1132
        %v1134 = vperm.slane %v1126, %v1133
        %v1135 = vrot.slane %v1122, 4
        %v1136 = vsel %vm931, %v1135, %v1110
        %v1137 = vrot.slane %v1110, 4
        %v1138 = vsel %vm931, %v1122, %v1137
        %v1140 = vunpack.c.l.s4 1934713408
        %v1141 = vunpack.c.0.s8 %v1140
        %v1142 = vperm.slane %v1136, %v1141
        %v1144 = vunpack.c.l.s4 1934713408
        %v1145 = vunpack.c.0.s8 %v1144
        %v1146 = vperm.slane %v1138, %v1145
        %v1147 = vrot.slane %v1130, 4
        %v1148 = vsel %vm931, 0.0, %v1147
        %v1149 = vrot.slane %v1134, 4
        %v1150 = vsel %vm931, 0.0, %v1149
        %v1151 = vrot.slane %v1142, 4
        %v1152 = vsel %vm931, 0.0, %v1151
        %v1153 = vrot.slane %v1146, 4
        %v1154 = vsel %vm931, 0.0, %v1153
        %v1155 = vsel %vm931, %v981, %v962
        %v1157 = vunpack.c.l.s4 1983009808
        %v1158 = vunpack.c.0.s8 %v1157
        %v1159 = vperm.slane %v1155, %v1158
        %v1160 = vrot.slane %v982, 4
        %v1161 = vsel %vm931, %v1160, %v980
        %v1163 = vunpack.c.l.s4 1983009808
        %v1164 = vunpack.c.0.s8 %v1163
        %v1165 = vperm.slane %v1161, %v1164
        %v1166 = vsel %vm931, %v985, %v974
        %v1168 = vunpack.c.l.s4 1983009808
        %v1169 = vunpack.c.0.s8 %v1168
        %v1170 = vperm.slane %v1166, %v1169
        %v1171 = vrot.slane %v986, 4
        %v1172 = vsel %vm931, %v1171, %v984
        %v1174 = vunpack.c.l.s4 1983009808
        %v1175 = vunpack.c.0.s8 %v1174
        %v1176 = vperm.slane %v1172, %v1175
        %v1177 = vrot.slane %v1165, 4
        %v1178 = vsel %vm931, %v1177, %v1159
        %v1179 = vrot.slane %v1159, 4
        %v1180 = vsel %vm931, %v1165, %v1179
        %v1182 = vunpack.c.l.s4 1934713408
        %v1183 = vunpack.c.0.s8 %v1182
        %v1184 = vperm.slane %v1178, %v1183
        %v1186 = vunpack.c.l.s4 1934713408
        %v1187 = vunpack.c.0.s8 %v1186
        %v1188 = vperm.slane %v1180, %v1187
        %v1189 = vrot.slane %v1176, 4
        %v1190 = vsel %vm931, %v1189, %v1170
        %v1191 = vrot.slane %v1170, 4
        %v1192 = vsel %vm931, %v1176, %v1191
        %v1194 = vunpack.c.l.s4 1934713408
        %v1195 = vunpack.c.0.s8 %v1194
        %v1196 = vperm.slane %v1190, %v1195
        %v1198 = vunpack.c.l.s4 1934713408
        %v1199 = vunpack.c.0.s8 %v1198
        %v1200 = vperm.slane %v1192, %v1199
        %v1201 = vrot.slane %v1196, 4
        %v1202 = vsel %vm931, %v1201, %v1184
        %v1203 = vrot.slane %v1184, 4
        %v1204 = vsel %vm931, %v1196, %v1203
        %v1205 = vrot.slane %v1200, 4
        %v1206 = vsel %vm931, %v1205, %v1188
        %v1207 = vrot.slane %v1188, 4
        %v1208 = vsel %vm931, %v1200, %v1207
        %v1209 = vsel %vm931, %v1037, %v1018
        %v1211 = vunpack.c.l.s4 1983009808
        %v1212 = vunpack.c.0.s8 %v1211
        %v1213 = vperm.slane %v1209, %v1212
        %v1214 = vrot.slane %v1038, 4
        %v1215 = vsel %vm931, %v1214, %v1036
        %v1217 = vunpack.c.l.s4 1983009808
        %v1218 = vunpack.c.0.s8 %v1217
        %v1219 = vperm.slane %v1215, %v1218
        %v1220 = vsel %vm931, %v1041, %v1030
        %v1222 = vunpack.c.l.s4 1983009808
        %v1223 = vunpack.c.0.s8 %v1222
        %v1224 = vperm.slane %v1220, %v1223
        %v1225 = vrot.slane %v1042, 4
        %v1226 = vsel %vm931, %v1225, %v1040
        %v1228 = vunpack.c.l.s4 1983009808
        %v1229 = vunpack.c.0.s8 %v1228
        %v1230 = vperm.slane %v1226, %v1229
        %v1231 = vrot.slane %v1219, 4
        %v1232 = vsel %vm931, %v1231, %v1213
        %v1233 = vrot.slane %v1213, 4
        %v1234 = vsel %vm931, %v1219, %v1233
        %v1236 = vunpack.c.l.s4 1934713408
        %v1237 = vunpack.c.0.s8 %v1236
        %v1238 = vperm.slane %v1232, %v1237
        %v1240 = vunpack.c.l.s4 1934713408
        %v1241 = vunpack.c.0.s8 %v1240
        %v1242 = vperm.slane %v1234, %v1241
        %v1243 = vrot.slane %v1230, 4
        %v1244 = vsel %vm931, %v1243, %v1224
        %v1245 = vrot.slane %v1224, 4
        %v1246 = vsel %vm931, %v1230, %v1245
        %v1248 = vunpack.c.l.s4 1934713408
        %v1249 = vunpack.c.0.s8 %v1248
        %v1250 = vperm.slane %v1244, %v1249
        %v1252 = vunpack.c.l.s4 1934713408
        %v1253 = vunpack.c.0.s8 %v1252
        %v1254 = vperm.slane %v1246, %v1253
        %v1255 = vrot.slane %v1250, 4
        %v1256 = vsel %vm931, %v1255, %v1238
        %v1257 = vrot.slane %v1238, 4
        %v1258 = vsel %vm931, %v1250, %v1257
        %v1259 = vrot.slane %v1254, 4
        %v1260 = vsel %vm931, %v1259, %v1242
        %v1261 = vrot.slane %v1242, 4
        %v1262 = vsel %vm931, %v1254, %v1261
        %v1263 = vsel %vm931, %v1093, %v1074
        %v1265 = vunpack.c.l.s4 1983009808
        %v1266 = vunpack.c.0.s8 %v1265
        %v1267 = vperm.slane %v1263, %v1266
        %v1268 = vrot.slane %v1094, 4
        %v1269 = vsel %vm931, %v1268, %v1092
        %v1271 = vunpack.c.l.s4 1983009808
        %v1272 = vunpack.c.0.s8 %v1271
        %v1273 = vperm.slane %v1269, %v1272
        %v1274 = vsel %vm931, %v1097, %v1086
        %v1276 = vunpack.c.l.s4 1983009808
        %v1277 = vunpack.c.0.s8 %v1276
        %v1278 = vperm.slane %v1274, %v1277
        %v1279 = vrot.slane %v1098, 4
        %v1280 = vsel %vm931, %v1279, %v1096
        %v1282 = vunpack.c.l.s4 1983009808
        %v1283 = vunpack.c.0.s8 %v1282
        %v1284 = vperm.slane %v1280, %v1283
        %v1285 = vrot.slane %v1273, 4
        %v1286 = vsel %vm931, %v1285, %v1267
        %v1287 = vrot.slane %v1267, 4
        %v1288 = vsel %vm931, %v1273, %v1287
        %v1290 = vunpack.c.l.s4 1934713408
        %v1291 = vunpack.c.0.s8 %v1290
        %v1292 = vperm.slane %v1286, %v1291
        %v1294 = vunpack.c.l.s4 1934713408
        %v1295 = vunpack.c.0.s8 %v1294
        %v1296 = vperm.slane %v1288, %v1295
        %v1297 = vrot.slane %v1284, 4
        %v1298 = vsel %vm931, %v1297, %v1278
        %v1299 = vrot.slane %v1278, 4
        %v1300 = vsel %vm931, %v1284, %v1299
        %v1302 = vunpack.c.l.s4 1934713408
        %v1303 = vunpack.c.0.s8 %v1302
        %v1304 = vperm.slane %v1298, %v1303
        %v1306 = vunpack.c.l.s4 1934713408
        %v1307 = vunpack.c.0.s8 %v1306
        %v1308 = vperm.slane %v1300, %v1307
        %v1309 = vrot.slane %v1304, 4
        %v1310 = vsel %vm931, %v1309, %v1292
        %v1311 = vrot.slane %v1292, 4
        %v1312 = vsel %vm931, %v1304, %v1311
        %v1313 = vrot.slane %v1308, 4
        %v1314 = vsel %vm931, %v1313, %v1296
        %v1315 = vrot.slane %v1296, 4
        %v1316 = vsel %vm931, %v1308, %v1315
        %v1317 = vsel %vm931, %v1149, %v1130
        %v1319 = vunpack.c.l.s4 1983009808
        %v1320 = vunpack.c.0.s8 %v1319
        %v1321 = vperm.slane %v1317, %v1320
        %v1322 = vrot.slane %v1150, 4
        %v1323 = vsel %vm931, %v1322, %v1148
        %v1325 = vunpack.c.l.s4 1983009808
        %v1326 = vunpack.c.0.s8 %v1325
        %v1327 = vperm.slane %v1323, %v1326
        %v1328 = vsel %vm931, %v1153, %v1142
        %v1330 = vunpack.c.l.s4 1983009808
        %v1331 = vunpack.c.0.s8 %v1330
        %v1332 = vperm.slane %v1328, %v1331
        %v1333 = vrot.slane %v1154, 4
        %v1334 = vsel %vm931, %v1333, %v1152
        %v1336 = vunpack.c.l.s4 1983009808
        %v1337 = vunpack.c.0.s8 %v1336
        %v1338 = vperm.slane %v1334, %v1337
        %v1339 = vrot.slane %v1327, 4
        %v1340 = vsel %vm931, %v1339, %v1321
        %v1341 = vrot.slane %v1321, 4
        %v1342 = vsel %vm931, %v1327, %v1341
        %v1344 = vunpack.c.l.s4 1934713408
        %v1345 = vunpack.c.0.s8 %v1344
        %v1346 = vperm.slane %v1340, %v1345
        %v1348 = vunpack.c.l.s4 1934713408
        %v1349 = vunpack.c.0.s8 %v1348
        %v1350 = vperm.slane %v1342, %v1349
        %v1351 = vrot.slane %v1338, 4
        %v1352 = vsel %vm931, %v1351, %v1332
        %v1353 = vrot.slane %v1332, 4
        %v1354 = vsel %vm931, %v1338, %v1353
        %v1356 = vunpack.c.l.s4 1934713408
        %v1357 = vunpack.c.0.s8 %v1356
        %v1358 = vperm.slane %v1352, %v1357
        %v1360 = vunpack.c.l.s4 1934713408
        %v1361 = vunpack.c.0.s8 %v1360
        %v1362 = vperm.slane %v1354, %v1361
        %v1363 = vrot.slane %v1358, 4
        %v1364 = vsel %vm931, %v1363, %v1346
        %v1365 = vrot.slane %v1346, 4
        %v1366 = vsel %vm931, %v1358, %v1365
        %v1367 = vrot.slane %v1362, 4
        %v1368 = vsel %vm931, %v1367, %v1350
        %v1369 = vrot.slane %v1350, 4
        %v1370 = vsel %vm931, %v1362, %v1369
        %v1371 = vpack.c.bf16 %v1202, %v1202
        %v1372 = vpack.c.bf16 %v1256, %v1256
        %v1373 = vpack.c.bf16 %v1204, %v1204
        %v1374 = vpack.c.bf16 %v1258, %v1258
        %v1375 = vpack.c.bf16 %v1206, %v1206
        %v1376 = vpack.c.bf16 %v1260, %v1260
        %v1377 = vpack.c.bf16 %v1208, %v1208
        %v1378 = vpack.c.bf16 %v1262, %v1262
        %v1379 = vpack.c.bf16 %v1310, %v1310
        %v1380 = vpack.c.bf16 %v1364, %v1364
        %v1381 = vpack.c.bf16 %v1312, %v1312
        %v1382 = vpack.c.bf16 %v1366, %v1366
        %v1383 = vpack.c.bf16 %v1314, %v1314
        %v1384 = vpack.c.bf16 %v1368, %v1368
        %v1385 = vpack.c.bf16 %v1316, %v1316
        %v1386 = vpack.c.bf16 %v1370, %v1370
        %1387 = vrot.lane.b32.xlu0 %v881, 96
        %v1388 = vpop.permute.xlu0 %1387
        %1389 = vrot.lane.b32.xlu0 %v883, 96
        %v1390 = vpop.permute.xlu0 %1389
        %1391 = vrot.lane.b32.xlu0 %v886, 96
        %v1392 = vpop.permute.xlu0 %1391
        %1393 = vrot.lane.b32.xlu0 %v888, 96
        %v1394 = vpop.permute.xlu0 %1393
        %1395 = vrot.lane.b32.xlu0 %v895, 96
        %v1396 = vpop.permute.xlu0 %1395
        %1397 = vrot.lane.b32.xlu0 %v897, 96
        %v1398 = vpop.permute.xlu0 %1397
        %1399 = vrot.lane.b32.xlu0 %v899, 96
        %v1400 = vpop.permute.xlu0 %1399
        %1401 = vrot.lane.b32.xlu0 %v901, 96
        %v1402 = vpop.permute.xlu0 %1401
        %1403 = vrot.lane.b32.xlu0 %v907, 96
        %v1404 = vpop.permute.xlu0 %1403
        %1405 = vrot.lane.b32.xlu0 %v909, 96
        %v1406 = vpop.permute.xlu0 %1405
        %1407 = vrot.lane.b32.xlu0 %v911, 96
        %v1408 = vpop.permute.xlu0 %1407
        %1409 = vrot.lane.b32.xlu0 %v913, 96
        %v1410 = vpop.permute.xlu0 %1409
        %1411 = vrot.lane.b32.xlu0 %v919, 96
        %v1412 = vpop.permute.xlu0 %1411
        %1413 = vrot.lane.b32.xlu0 %v921, 96
        %v1414 = vpop.permute.xlu0 %1413
        %1415 = vrot.lane.b32.xlu0 %v923, 96
        %v1416 = vpop.permute.xlu0 %1415
        %1417 = vrot.lane.b32.xlu0 %v925, 96
        %v1418 = vpop.permute.xlu0 %1417
        %v1435 = vrot.slane %v1404, 4
        %v1436 = vsel %vm931, %v1435, %v1388
        %v1437 = vrot.slane %v1388, 4
        %v1438 = vsel %vm931, %v1404, %v1437
        %v1440 = vunpack.c.l.s4 1983009808
        %v1441 = vunpack.c.0.s8 %v1440
        %v1442 = vperm.slane %v1436, %v1441
        %v1444 = vunpack.c.l.s4 1983009808
        %v1445 = vunpack.c.0.s8 %v1444
        %v1446 = vperm.slane %v1438, %v1445
        %v1447 = vrot.slane %v1412, 4
        %v1448 = vsel %vm931, %v1447, %v1396
        %v1449 = vrot.slane %v1396, 4
        %v1450 = vsel %vm931, %v1412, %v1449
        %v1452 = vunpack.c.l.s4 1983009808
        %v1453 = vunpack.c.0.s8 %v1452
        %v1454 = vperm.slane %v1448, %v1453
        %v1456 = vunpack.c.l.s4 1983009808
        %v1457 = vunpack.c.0.s8 %v1456
        %v1458 = vperm.slane %v1450, %v1457
        %v1459 = vrot.slane %v1454, 4
        %v1460 = vsel %vm931, %v1459, %v1442
        %v1461 = vrot.slane %v1442, 4
        %v1462 = vsel %vm931, %v1454, %v1461
        %v1464 = vunpack.c.l.s4 1934713408
        %v1465 = vunpack.c.0.s8 %v1464
        %v1466 = vperm.slane %v1460, %v1465
        %v1468 = vunpack.c.l.s4 1934713408
        %v1469 = vunpack.c.0.s8 %v1468
        %v1470 = vperm.slane %v1462, %v1469
        %v1471 = vrot.slane %v1458, 4
        %v1472 = vsel %vm931, %v1471, %v1446
        %v1473 = vrot.slane %v1446, 4
        %v1474 = vsel %vm931, %v1458, %v1473
        %v1476 = vunpack.c.l.s4 1934713408
        %v1477 = vunpack.c.0.s8 %v1476
        %v1478 = vperm.slane %v1472, %v1477
        %v1480 = vunpack.c.l.s4 1934713408
        %v1481 = vunpack.c.0.s8 %v1480
        %v1482 = vperm.slane %v1474, %v1481
        %v1483 = vrot.slane %v1466, 4
        %v1484 = vsel %vm931, 0.0, %v1483
        %v1485 = vrot.slane %v1470, 4
        %v1486 = vsel %vm931, 0.0, %v1485
        %v1487 = vrot.slane %v1478, 4
        %v1488 = vsel %vm931, 0.0, %v1487
        %v1489 = vrot.slane %v1482, 4
        %v1490 = vsel %vm931, 0.0, %v1489
        %v1491 = vrot.slane %v1406, 4
        %v1492 = vsel %vm931, %v1491, %v1390
        %v1493 = vrot.slane %v1390, 4
        %v1494 = vsel %vm931, %v1406, %v1493
        %v1496 = vunpack.c.l.s4 1983009808
        %v1497 = vunpack.c.0.s8 %v1496
        %v1498 = vperm.slane %v1492, %v1497
        %v1500 = vunpack.c.l.s4 1983009808
        %v1501 = vunpack.c.0.s8 %v1500
        %v1502 = vperm.slane %v1494, %v1501
        %v1503 = vrot.slane %v1414, 4
        %v1504 = vsel %vm931, %v1503, %v1398
        %v1505 = vrot.slane %v1398, 4
        %v1506 = vsel %vm931, %v1414, %v1505
        %v1508 = vunpack.c.l.s4 1983009808
        %v1509 = vunpack.c.0.s8 %v1508
        %v1510 = vperm.slane %v1504, %v1509
        %v1512 = vunpack.c.l.s4 1983009808
        %v1513 = vunpack.c.0.s8 %v1512
        %v1514 = vperm.slane %v1506, %v1513
        %v1515 = vrot.slane %v1510, 4
        %v1516 = vsel %vm931, %v1515, %v1498
        %v1517 = vrot.slane %v1498, 4
        %v1518 = vsel %vm931, %v1510, %v1517
        %v1520 = vunpack.c.l.s4 1934713408
        %v1521 = vunpack.c.0.s8 %v1520
        %v1522 = vperm.slane %v1516, %v1521
        %v1524 = vunpack.c.l.s4 1934713408
        %v1525 = vunpack.c.0.s8 %v1524
        %v1526 = vperm.slane %v1518, %v1525
        %v1527 = vrot.slane %v1514, 4
        %v1528 = vsel %vm931, %v1527, %v1502
        %v1529 = vrot.slane %v1502, 4
        %v1530 = vsel %vm931, %v1514, %v1529
        %v1532 = vunpack.c.l.s4 1934713408
        %v1533 = vunpack.c.0.s8 %v1532
        %v1534 = vperm.slane %v1528, %v1533
        %v1536 = vunpack.c.l.s4 1934713408
        %v1537 = vunpack.c.0.s8 %v1536
        %v1538 = vperm.slane %v1530, %v1537
        %v1539 = vrot.slane %v1522, 4
        %v1540 = vsel %vm931, 0.0, %v1539
        %v1541 = vrot.slane %v1526, 4
        %v1542 = vsel %vm931, 0.0, %v1541
        %v1543 = vrot.slane %v1534, 4
        %v1544 = vsel %vm931, 0.0, %v1543
        %v1545 = vrot.slane %v1538, 4
        %v1546 = vsel %vm931, 0.0, %v1545
        %v1547 = vrot.slane %v1408, 4
        %v1548 = vsel %vm931, %v1547, %v1392
        %v1549 = vrot.slane %v1392, 4
        %v1550 = vsel %vm931, %v1408, %v1549
        %v1552 = vunpack.c.l.s4 1983009808
        %v1553 = vunpack.c.0.s8 %v1552
        %v1554 = vperm.slane %v1548, %v1553
        %v1556 = vunpack.c.l.s4 1983009808
        %v1557 = vunpack.c.0.s8 %v1556
        %v1558 = vperm.slane %v1550, %v1557
        %v1559 = vrot.slane %v1416, 4
        %v1560 = vsel %vm931, %v1559, %v1400
        %v1561 = vrot.slane %v1400, 4
        %v1562 = vsel %vm931, %v1416, %v1561
        %v1564 = vunpack.c.l.s4 1983009808
        %v1565 = vunpack.c.0.s8 %v1564
        %v1566 = vperm.slane %v1560, %v1565
        %v1568 = vunpack.c.l.s4 1983009808
        %v1569 = vunpack.c.0.s8 %v1568
        %v1570 = vperm.slane %v1562, %v1569
        %v1571 = vrot.slane %v1566, 4
        %v1572 = vsel %vm931, %v1571, %v1554
        %v1573 = vrot.slane %v1554, 4
        %v1574 = vsel %vm931, %v1566, %v1573
        %v1576 = vunpack.c.l.s4 1934713408
        %v1577 = vunpack.c.0.s8 %v1576
        %v1578 = vperm.slane %v1572, %v1577
        %v1580 = vunpack.c.l.s4 1934713408
        %v1581 = vunpack.c.0.s8 %v1580
        %v1582 = vperm.slane %v1574, %v1581
        %v1583 = vrot.slane %v1570, 4
        %v1584 = vsel %vm931, %v1583, %v1558
        %v1585 = vrot.slane %v1558, 4
        %v1586 = vsel %vm931, %v1570, %v1585
        %v1588 = vunpack.c.l.s4 1934713408
        %v1589 = vunpack.c.0.s8 %v1588
        %v1590 = vperm.slane %v1584, %v1589
        %v1592 = vunpack.c.l.s4 1934713408
        %v1593 = vunpack.c.0.s8 %v1592
        %v1594 = vperm.slane %v1586, %v1593
        %v1595 = vrot.slane %v1578, 4
        %v1596 = vsel %vm931, 0.0, %v1595
        %v1597 = vrot.slane %v1582, 4
        %v1598 = vsel %vm931, 0.0, %v1597
        %v1599 = vrot.slane %v1590, 4
        %v1600 = vsel %vm931, 0.0, %v1599
        %v1601 = vrot.slane %v1594, 4
        %v1602 = vsel %vm931, 0.0, %v1601
        %v1603 = vrot.slane %v1410, 4
        %v1604 = vsel %vm931, %v1603, %v1394
        %v1605 = vrot.slane %v1394, 4
        %v1606 = vsel %vm931, %v1410, %v1605
        %v1608 = vunpack.c.l.s4 1983009808
        %v1609 = vunpack.c.0.s8 %v1608
        %v1610 = vperm.slane %v1604, %v1609
        %v1612 = vunpack.c.l.s4 1983009808
        %v1613 = vunpack.c.0.s8 %v1612
        %v1614 = vperm.slane %v1606, %v1613
        %v1615 = vrot.slane %v1418, 4
        %v1616 = vsel %vm931, %v1615, %v1402
        %v1617 = vrot.slane %v1402, 4
        %v1618 = vsel %vm931, %v1418, %v1617
        %v1620 = vunpack.c.l.s4 1983009808
        %v1621 = vunpack.c.0.s8 %v1620
        %v1622 = vperm.slane %v1616, %v1621
        %v1624 = vunpack.c.l.s4 1983009808
        %v1625 = vunpack.c.0.s8 %v1624
        %v1626 = vperm.slane %v1618, %v1625
        %v1627 = vrot.slane %v1622, 4
        %v1628 = vsel %vm931, %v1627, %v1610
        %v1629 = vrot.slane %v1610, 4
        %v1630 = vsel %vm931, %v1622, %v1629
        %v1632 = vunpack.c.l.s4 1934713408
        %v1633 = vunpack.c.0.s8 %v1632
        %v1634 = vperm.slane %v1628, %v1633
        %v1636 = vunpack.c.l.s4 1934713408
        %v1637 = vunpack.c.0.s8 %v1636
        %v1638 = vperm.slane %v1630, %v1637
        %v1639 = vrot.slane %v1626, 4
        %v1640 = vsel %vm931, %v1639, %v1614
        %v1641 = vrot.slane %v1614, 4
        %v1642 = vsel %vm931, %v1626, %v1641
        %v1644 = vunpack.c.l.s4 1934713408
        %v1645 = vunpack.c.0.s8 %v1644
        %v1646 = vperm.slane %v1640, %v1645
        %v1648 = vunpack.c.l.s4 1934713408
        %v1649 = vunpack.c.0.s8 %v1648
        %v1650 = vperm.slane %v1642, %v1649
        %v1651 = vrot.slane %v1634, 4
        %v1652 = vsel %vm931, 0.0, %v1651
        %v1653 = vrot.slane %v1638, 4
        %v1654 = vsel %vm931, 0.0, %v1653
        %v1655 = vrot.slane %v1646, 4
        %v1656 = vsel %vm931, 0.0, %v1655
        %v1657 = vrot.slane %v1650, 4
        %v1658 = vsel %vm931, 0.0, %v1657
        %v1659 = vsel %vm931, %v1485, %v1466
        %v1661 = vunpack.c.l.s4 1983009808
        %v1662 = vunpack.c.0.s8 %v1661
        %v1663 = vperm.slane %v1659, %v1662
        %v1664 = vrot.slane %v1486, 4
        %v1665 = vsel %vm931, %v1664, %v1484
        %v1667 = vunpack.c.l.s4 1983009808
        %v1668 = vunpack.c.0.s8 %v1667
        %v1669 = vperm.slane %v1665, %v1668
        %v1670 = vsel %vm931, %v1489, %v1478
        %v1672 = vunpack.c.l.s4 1983009808
        %v1673 = vunpack.c.0.s8 %v1672
        %v1674 = vperm.slane %v1670, %v1673
        %v1675 = vrot.slane %v1490, 4
        %v1676 = vsel %vm931, %v1675, %v1488
        %v1678 = vunpack.c.l.s4 1983009808
        %v1679 = vunpack.c.0.s8 %v1678
        %v1680 = vperm.slane %v1676, %v1679
        %v1681 = vrot.slane %v1669, 4
        %v1682 = vsel %vm931, %v1681, %v1663
        %v1683 = vrot.slane %v1663, 4
        %v1684 = vsel %vm931, %v1669, %v1683
        %v1686 = vunpack.c.l.s4 1934713408
        %v1687 = vunpack.c.0.s8 %v1686
        %v1688 = vperm.slane %v1682, %v1687
        %v1690 = vunpack.c.l.s4 1934713408
        %v1691 = vunpack.c.0.s8 %v1690
        %v1692 = vperm.slane %v1684, %v1691
        %v1693 = vrot.slane %v1680, 4
        %v1694 = vsel %vm931, %v1693, %v1674
        %v1695 = vrot.slane %v1674, 4
        %v1696 = vsel %vm931, %v1680, %v1695
        %v1698 = vunpack.c.l.s4 1934713408
        %v1699 = vunpack.c.0.s8 %v1698
        %v1700 = vperm.slane %v1694, %v1699
        %v1702 = vunpack.c.l.s4 1934713408
        %v1703 = vunpack.c.0.s8 %v1702
        %v1704 = vperm.slane %v1696, %v1703
        %v1705 = vrot.slane %v1700, 4
        %v1706 = vsel %vm931, %v1705, %v1688
        %v1707 = vrot.slane %v1688, 4
        %v1708 = vsel %vm931, %v1700, %v1707
        %v1709 = vrot.slane %v1704, 4
        %v1710 = vsel %vm931, %v1709, %v1692
        %v1711 = vrot.slane %v1692, 4
        %v1712 = vsel %vm931, %v1704, %v1711
        %v1713 = vsel %vm931, %v1541, %v1522
        %v1715 = vunpack.c.l.s4 1983009808
        %v1716 = vunpack.c.0.s8 %v1715
        %v1717 = vperm.slane %v1713, %v1716
        %v1718 = vrot.slane %v1542, 4
        %v1719 = vsel %vm931, %v1718, %v1540
        %v1721 = vunpack.c.l.s4 1983009808
        %v1722 = vunpack.c.0.s8 %v1721
        %v1723 = vperm.slane %v1719, %v1722
        %v1724 = vsel %vm931, %v1545, %v1534
        %v1726 = vunpack.c.l.s4 1983009808
        %v1727 = vunpack.c.0.s8 %v1726
        %v1728 = vperm.slane %v1724, %v1727
        %v1729 = vrot.slane %v1546, 4
        %v1730 = vsel %vm931, %v1729, %v1544
        %v1732 = vunpack.c.l.s4 1983009808
        %v1733 = vunpack.c.0.s8 %v1732
        %v1734 = vperm.slane %v1730, %v1733
        %v1735 = vrot.slane %v1723, 4
        %v1736 = vsel %vm931, %v1735, %v1717
        %v1737 = vrot.slane %v1717, 4
        %v1738 = vsel %vm931, %v1723, %v1737
        %v1740 = vunpack.c.l.s4 1934713408
        %v1741 = vunpack.c.0.s8 %v1740
        %v1742 = vperm.slane %v1736, %v1741
        %v1744 = vunpack.c.l.s4 1934713408
        %v1745 = vunpack.c.0.s8 %v1744
        %v1746 = vperm.slane %v1738, %v1745
        %v1747 = vrot.slane %v1734, 4
        %v1748 = vsel %vm931, %v1747, %v1728
        %v1749 = vrot.slane %v1728, 4
        %v1750 = vsel %vm931, %v1734, %v1749
        %v1752 = vunpack.c.l.s4 1934713408
        %v1753 = vunpack.c.0.s8 %v1752
        %v1754 = vperm.slane %v1748, %v1753
        %v1756 = vunpack.c.l.s4 1934713408
        %v1757 = vunpack.c.0.s8 %v1756
        %v1758 = vperm.slane %v1750, %v1757
        %v1759 = vrot.slane %v1754, 4
        %v1760 = vsel %vm931, %v1759, %v1742
        %v1761 = vrot.slane %v1742, 4
        %v1762 = vsel %vm931, %v1754, %v1761
        %v1763 = vrot.slane %v1758, 4
        %v1764 = vsel %vm931, %v1763, %v1746
        %v1765 = vrot.slane %v1746, 4
        %v1766 = vsel %vm931, %v1758, %v1765
        %v1767 = vsel %vm931, %v1597, %v1578
        %v1769 = vunpack.c.l.s4 1983009808
        %v1770 = vunpack.c.0.s8 %v1769
        %v1771 = vperm.slane %v1767, %v1770
        %v1772 = vrot.slane %v1598, 4
        %v1773 = vsel %vm931, %v1772, %v1596
        %v1775 = vunpack.c.l.s4 1983009808
        %v1776 = vunpack.c.0.s8 %v1775
        %v1777 = vperm.slane %v1773, %v1776
        %v1778 = vsel %vm931, %v1601, %v1590
        %v1780 = vunpack.c.l.s4 1983009808
        %v1781 = vunpack.c.0.s8 %v1780
        %v1782 = vperm.slane %v1778, %v1781
        %v1783 = vrot.slane %v1602, 4
        %v1784 = vsel %vm931, %v1783, %v1600
        %v1786 = vunpack.c.l.s4 1983009808
        %v1787 = vunpack.c.0.s8 %v1786
        %v1788 = vperm.slane %v1784, %v1787
        %v1789 = vrot.slane %v1777, 4
        %v1790 = vsel %vm931, %v1789, %v1771
        %v1791 = vrot.slane %v1771, 4
        %v1792 = vsel %vm931, %v1777, %v1791
        %v1794 = vunpack.c.l.s4 1934713408
        %v1795 = vunpack.c.0.s8 %v1794
        %v1796 = vperm.slane %v1790, %v1795
        %v1798 = vunpack.c.l.s4 1934713408
        %v1799 = vunpack.c.0.s8 %v1798
        %v1800 = vperm.slane %v1792, %v1799
        %v1801 = vrot.slane %v1788, 4
        %v1802 = vsel %vm931, %v1801, %v1782
        %v1803 = vrot.slane %v1782, 4
        %v1804 = vsel %vm931, %v1788, %v1803
        %v1806 = vunpack.c.l.s4 1934713408
        %v1807 = vunpack.c.0.s8 %v1806
        %v1808 = vperm.slane %v1802, %v1807
        %v1810 = vunpack.c.l.s4 1934713408
        %v1811 = vunpack.c.0.s8 %v1810
        %v1812 = vperm.slane %v1804, %v1811
        %v1813 = vrot.slane %v1808, 4
        %v1814 = vsel %vm931, %v1813, %v1796
        %v1815 = vrot.slane %v1796, 4
        %v1816 = vsel %vm931, %v1808, %v1815
        %v1817 = vrot.slane %v1812, 4
        %v1818 = vsel %vm931, %v1817, %v1800
        %v1819 = vrot.slane %v1800, 4
        %v1820 = vsel %vm931, %v1812, %v1819
        %v1821 = vsel %vm931, %v1653, %v1634
        %v1823 = vunpack.c.l.s4 1983009808
        %v1824 = vunpack.c.0.s8 %v1823
        %v1825 = vperm.slane %v1821, %v1824
        %v1826 = vrot.slane %v1654, 4
        %v1827 = vsel %vm931, %v1826, %v1652
        %v1829 = vunpack.c.l.s4 1983009808
        %v1830 = vunpack.c.0.s8 %v1829
        %v1831 = vperm.slane %v1827, %v1830
        %v1832 = vsel %vm931, %v1657, %v1646
        %v1834 = vunpack.c.l.s4 1983009808
        %v1835 = vunpack.c.0.s8 %v1834
        %v1836 = vperm.slane %v1832, %v1835
        %v1837 = vrot.slane %v1658, 4
        %v1838 = vsel %vm931, %v1837, %v1656
        %v1840 = vunpack.c.l.s4 1983009808
        %v1841 = vunpack.c.0.s8 %v1840
        %v1842 = vperm.slane %v1838, %v1841
        %v1843 = vrot.slane %v1831, 4
        %v1844 = vsel %vm931, %v1843, %v1825
        %v1845 = vrot.slane %v1825, 4
        %v1846 = vsel %vm931, %v1831, %v1845
        %v1848 = vunpack.c.l.s4 1934713408
        %v1849 = vunpack.c.0.s8 %v1848
        %v1850 = vperm.slane %v1844, %v1849
        %v1852 = vunpack.c.l.s4 1934713408
        %v1853 = vunpack.c.0.s8 %v1852
        %v1854 = vperm.slane %v1846, %v1853
        %v1855 = vrot.slane %v1842, 4
        %v1856 = vsel %vm931, %v1855, %v1836
        %v1857 = vrot.slane %v1836, 4
        %v1858 = vsel %vm931, %v1842, %v1857
        %v1860 = vunpack.c.l.s4 1934713408
        %v1861 = vunpack.c.0.s8 %v1860
        %v1862 = vperm.slane %v1856, %v1861
        %v1864 = vunpack.c.l.s4 1934713408
        %v1865 = vunpack.c.0.s8 %v1864
        %v1866 = vperm.slane %v1858, %v1865
        %v1867 = vrot.slane %v1862, 4
        %v1868 = vsel %vm931, %v1867, %v1850
        %v1869 = vrot.slane %v1850, 4
        %v1870 = vsel %vm931, %v1862, %v1869
        %v1871 = vrot.slane %v1866, 4
        %v1872 = vsel %vm931, %v1871, %v1854
        %v1873 = vrot.slane %v1854, 4
        %v1874 = vsel %vm931, %v1866, %v1873
        %v1875 = vpack.c.bf16 %v1706, %v1706
        %v1876 = vpack.c.bf16 %v1760, %v1760
        %v1877 = vpack.c.bf16 %v1708, %v1708
        %v1878 = vpack.c.bf16 %v1762, %v1762
        %v1879 = vpack.c.bf16 %v1710, %v1710
        %v1880 = vpack.c.bf16 %v1764, %v1764
        %v1881 = vpack.c.bf16 %v1712, %v1712
        %v1882 = vpack.c.bf16 %v1766, %v1766
        %v1883 = vpack.c.bf16 %v1814, %v1814
        %v1884 = vpack.c.bf16 %v1868, %v1868
        %v1885 = vpack.c.bf16 %v1816, %v1816
        %v1886 = vpack.c.bf16 %v1870, %v1870
        %v1887 = vpack.c.bf16 %v1818, %v1818
        %v1888 = vpack.c.bf16 %v1872, %v1872
        %v1889 = vpack.c.bf16 %v1820, %v1820
        %v1890 = vpack.c.bf16 %v1874, %v1874
        %1891 = vrot.lane.b32.xlu0 %v881, 64
        %v1892 = vpop.permute.xlu0 %1891
        %1893 = vrot.lane.b32.xlu0 %v883, 64
        %v1894 = vpop.permute.xlu0 %1893
        %1895 = vrot.lane.b32.xlu0 %v886, 64
        %v1896 = vpop.permute.xlu0 %1895
        %1897 = vrot.lane.b32.xlu0 %v888, 64
        %v1898 = vpop.permute.xlu0 %1897
        %1899 = vrot.lane.b32.xlu0 %v895, 64
        %v1900 = vpop.permute.xlu0 %1899
        %1901 = vrot.lane.b32.xlu0 %v897, 64
        %v1902 = vpop.permute.xlu0 %1901
        %1903 = vrot.lane.b32.xlu0 %v899, 64
        %v1904 = vpop.permute.xlu0 %1903
        %1905 = vrot.lane.b32.xlu0 %v901, 64
        %v1906 = vpop.permute.xlu0 %1905
        %1907 = vrot.lane.b32.xlu0 %v907, 64
        %v1908 = vpop.permute.xlu0 %1907
        %1909 = vrot.lane.b32.xlu0 %v909, 64
        %v1910 = vpop.permute.xlu0 %1909
        %1911 = vrot.lane.b32.xlu0 %v911, 64
        %v1912 = vpop.permute.xlu0 %1911
        %1913 = vrot.lane.b32.xlu0 %v913, 64
        %v1914 = vpop.permute.xlu0 %1913
        %1915 = vrot.lane.b32.xlu0 %v919, 64
        %v1916 = vpop.permute.xlu0 %1915
        %1917 = vrot.lane.b32.xlu0 %v921, 64
        %v1918 = vpop.permute.xlu0 %1917
        %1919 = vrot.lane.b32.xlu0 %v923, 64
        %v1920 = vpop.permute.xlu0 %1919
        %1921 = vrot.lane.b32.xlu0 %v925, 64
        %v1922 = vpop.permute.xlu0 %1921
        %v1939 = vrot.slane %v1908, 4
        %v1940 = vsel %vm931, %v1939, %v1892
        %v1941 = vrot.slane %v1892, 4
        %v1942 = vsel %vm931, %v1908, %v1941
        %v1944 = vunpack.c.l.s4 1983009808
        %v1945 = vunpack.c.0.s8 %v1944
        %v1946 = vperm.slane %v1940, %v1945
        %v1948 = vunpack.c.l.s4 1983009808
        %v1949 = vunpack.c.0.s8 %v1948
        %v1950 = vperm.slane %v1942, %v1949
        %v1951 = vrot.slane %v1916, 4
        %v1952 = vsel %vm931, %v1951, %v1900
        %v1953 = vrot.slane %v1900, 4
        %v1954 = vsel %vm931, %v1916, %v1953
        %v1956 = vunpack.c.l.s4 1983009808
        %v1957 = vunpack.c.0.s8 %v1956
        %v1958 = vperm.slane %v1952, %v1957
        %v1960 = vunpack.c.l.s4 1983009808
        %v1961 = vunpack.c.0.s8 %v1960
        %v1962 = vperm.slane %v1954, %v1961
        %v1963 = vrot.slane %v1958, 4
        %v1964 = vsel %vm931, %v1963, %v1946
        %v1965 = vrot.slane %v1946, 4
        %v1966 = vsel %vm931, %v1958, %v1965
        %v1968 = vunpack.c.l.s4 1934713408
        %v1969 = vunpack.c.0.s8 %v1968
        %v1970 = vperm.slane %v1964, %v1969
        %v1972 = vunpack.c.l.s4 1934713408
        %v1973 = vunpack.c.0.s8 %v1972
        %v1974 = vperm.slane %v1966, %v1973
        %v1975 = vrot.slane %v1962, 4
        %v1976 = vsel %vm931, %v1975, %v1950
        %v1977 = vrot.slane %v1950, 4
        %v1978 = vsel %vm931, %v1962, %v1977
        %v1980 = vunpack.c.l.s4 1934713408
        %v1981 = vunpack.c.0.s8 %v1980
        %v1982 = vperm.slane %v1976, %v1981
        %v1984 = vunpack.c.l.s4 1934713408
        %v1985 = vunpack.c.0.s8 %v1984
        %v1986 = vperm.slane %v1978, %v1985
        %v1987 = vrot.slane %v1970, 4
        %v1988 = vsel %vm931, 0.0, %v1987
        %v1989 = vrot.slane %v1974, 4
        %v1990 = vsel %vm931, 0.0, %v1989
        %v1991 = vrot.slane %v1982, 4
        %v1992 = vsel %vm931, 0.0, %v1991
        %v1993 = vrot.slane %v1986, 4
        %v1994 = vsel %vm931, 0.0, %v1993
        %v1995 = vrot.slane %v1910, 4
        %v1996 = vsel %vm931, %v1995, %v1894
        %v1997 = vrot.slane %v1894, 4
        %v1998 = vsel %vm931, %v1910, %v1997
        %v2000 = vunpack.c.l.s4 1983009808
        %v2001 = vunpack.c.0.s8 %v2000
        %v2002 = vperm.slane %v1996, %v2001
        %v2004 = vunpack.c.l.s4 1983009808
        %v2005 = vunpack.c.0.s8 %v2004
        %v2006 = vperm.slane %v1998, %v2005
        %v2007 = vrot.slane %v1918, 4
        %v2008 = vsel %vm931, %v2007, %v1902
        %v2009 = vrot.slane %v1902, 4
        %v2010 = vsel %vm931, %v1918, %v2009
        %v2012 = vunpack.c.l.s4 1983009808
        %v2013 = vunpack.c.0.s8 %v2012
        %v2014 = vperm.slane %v2008, %v2013
        %v2016 = vunpack.c.l.s4 1983009808
        %v2017 = vunpack.c.0.s8 %v2016
        %v2018 = vperm.slane %v2010, %v2017
        %v2019 = vrot.slane %v2014, 4
        %v2020 = vsel %vm931, %v2019, %v2002
        %v2021 = vrot.slane %v2002, 4
        %v2022 = vsel %vm931, %v2014, %v2021
        %v2024 = vunpack.c.l.s4 1934713408
        %v2025 = vunpack.c.0.s8 %v2024
        %v2026 = vperm.slane %v2020, %v2025
        %v2028 = vunpack.c.l.s4 1934713408
        %v2029 = vunpack.c.0.s8 %v2028
        %v2030 = vperm.slane %v2022, %v2029
        %v2031 = vrot.slane %v2018, 4
        %v2032 = vsel %vm931, %v2031, %v2006
        %v2033 = vrot.slane %v2006, 4
        %v2034 = vsel %vm931, %v2018, %v2033
        %v2036 = vunpack.c.l.s4 1934713408
        %v2037 = vunpack.c.0.s8 %v2036
        %v2038 = vperm.slane %v2032, %v2037
        %v2040 = vunpack.c.l.s4 1934713408
        %v2041 = vunpack.c.0.s8 %v2040
        %v2042 = vperm.slane %v2034, %v2041
        %v2043 = vrot.slane %v2026, 4
        %v2044 = vsel %vm931, 0.0, %v2043
        %v2045 = vrot.slane %v2030, 4
        %v2046 = vsel %vm931, 0.0, %v2045
        %v2047 = vrot.slane %v2038, 4
        %v2048 = vsel %vm931, 0.0, %v2047
        %v2049 = vrot.slane %v2042, 4
        %v2050 = vsel %vm931, 0.0, %v2049
        %v2051 = vrot.slane %v1912, 4
        %v2052 = vsel %vm931, %v2051, %v1896
        %v2053 = vrot.slane %v1896, 4
        %v2054 = vsel %vm931, %v1912, %v2053
        %v2056 = vunpack.c.l.s4 1983009808
        %v2057 = vunpack.c.0.s8 %v2056
        %v2058 = vperm.slane %v2052, %v2057
        %v2060 = vunpack.c.l.s4 1983009808
        %v2061 = vunpack.c.0.s8 %v2060
        %v2062 = vperm.slane %v2054, %v2061
        %v2063 = vrot.slane %v1920, 4
        %v2064 = vsel %vm931, %v2063, %v1904
        %v2065 = vrot.slane %v1904, 4
        %v2066 = vsel %vm931, %v1920, %v2065
        %v2068 = vunpack.c.l.s4 1983009808
        %v2069 = vunpack.c.0.s8 %v2068
        %v2070 = vperm.slane %v2064, %v2069
        %v2072 = vunpack.c.l.s4 1983009808
        %v2073 = vunpack.c.0.s8 %v2072
        %v2074 = vperm.slane %v2066, %v2073
        %v2075 = vrot.slane %v2070, 4
        %v2076 = vsel %vm931, %v2075, %v2058
        %v2077 = vrot.slane %v2058, 4
        %v2078 = vsel %vm931, %v2070, %v2077
        %v2080 = vunpack.c.l.s4 1934713408
        %v2081 = vunpack.c.0.s8 %v2080
        %v2082 = vperm.slane %v2076, %v2081
        %v2084 = vunpack.c.l.s4 1934713408
        %v2085 = vunpack.c.0.s8 %v2084
        %v2086 = vperm.slane %v2078, %v2085
        %v2087 = vrot.slane %v2074, 4
        %v2088 = vsel %vm931, %v2087, %v2062
        %v2089 = vrot.slane %v2062, 4
        %v2090 = vsel %vm931, %v2074, %v2089
        %v2092 = vunpack.c.l.s4 1934713408
        %v2093 = vunpack.c.0.s8 %v2092
        %v2094 = vperm.slane %v2088, %v2093
        %v2096 = vunpack.c.l.s4 1934713408
        %v2097 = vunpack.c.0.s8 %v2096
        %v2098 = vperm.slane %v2090, %v2097
        %v2099 = vrot.slane %v2082, 4
        %v2100 = vsel %vm931, 0.0, %v2099
        %v2101 = vrot.slane %v2086, 4
        %v2102 = vsel %vm931, 0.0, %v2101
        %v2103 = vrot.slane %v2094, 4
        %v2104 = vsel %vm931, 0.0, %v2103
        %v2105 = vrot.slane %v2098, 4
        %v2106 = vsel %vm931, 0.0, %v2105
        %v2107 = vrot.slane %v1914, 4
        %v2108 = vsel %vm931, %v2107, %v1898
        %v2109 = vrot.slane %v1898, 4
        %v2110 = vsel %vm931, %v1914, %v2109
        %v2112 = vunpack.c.l.s4 1983009808
        %v2113 = vunpack.c.0.s8 %v2112
        %v2114 = vperm.slane %v2108, %v2113
        %v2116 = vunpack.c.l.s4 1983009808
        %v2117 = vunpack.c.0.s8 %v2116
        %v2118 = vperm.slane %v2110, %v2117
        %v2119 = vrot.slane %v1922, 4
        %v2120 = vsel %vm931, %v2119, %v1906
        %v2121 = vrot.slane %v1906, 4
        %v2122 = vsel %vm931, %v1922, %v2121
        %v2124 = vunpack.c.l.s4 1983009808
        %v2125 = vunpack.c.0.s8 %v2124
        %v2126 = vperm.slane %v2120, %v2125
        %v2128 = vunpack.c.l.s4 1983009808
        %v2129 = vunpack.c.0.s8 %v2128
        %v2130 = vperm.slane %v2122, %v2129
        %v2131 = vrot.slane %v2126, 4
        %v2132 = vsel %vm931, %v2131, %v2114
        %v2133 = vrot.slane %v2114, 4
        %v2134 = vsel %vm931, %v2126, %v2133
        %v2136 = vunpack.c.l.s4 1934713408
        %v2137 = vunpack.c.0.s8 %v2136
        %v2138 = vperm.slane %v2132, %v2137
        %v2140 = vunpack.c.l.s4 1934713408
        %v2141 = vunpack.c.0.s8 %v2140
        %v2142 = vperm.slane %v2134, %v2141
        %v2143 = vrot.slane %v2130, 4
        %v2144 = vsel %vm931, %v2143, %v2118
        %v2145 = vrot.slane %v2118, 4
        %v2146 = vsel %vm931, %v2130, %v2145
        %v2148 = vunpack.c.l.s4 1934713408
        %v2149 = vunpack.c.0.s8 %v2148
        %v2150 = vperm.slane %v2144, %v2149
        %v2152 = vunpack.c.l.s4 1934713408
        %v2153 = vunpack.c.0.s8 %v2152
        %v2154 = vperm.slane %v2146, %v2153
        %v2155 = vrot.slane %v2138, 4
        %v2156 = vsel %vm931, 0.0, %v2155
        %v2157 = vrot.slane %v2142, 4
        %v2158 = vsel %vm931, 0.0, %v2157
        %v2159 = vrot.slane %v2150, 4
        %v2160 = vsel %vm931, 0.0, %v2159
        %v2161 = vrot.slane %v2154, 4
        %v2162 = vsel %vm931, 0.0, %v2161
        %v2163 = vsel %vm931, %v1989, %v1970
        %v2165 = vunpack.c.l.s4 1983009808
        %v2166 = vunpack.c.0.s8 %v2165
        %v2167 = vperm.slane %v2163, %v2166
        %v2168 = vrot.slane %v1990, 4
        %v2169 = vsel %vm931, %v2168, %v1988
        %v2171 = vunpack.c.l.s4 1983009808
        %v2172 = vunpack.c.0.s8 %v2171
        %v2173 = vperm.slane %v2169, %v2172
        %v2174 = vsel %vm931, %v1993, %v1982
        %v2176 = vunpack.c.l.s4 1983009808
        %v2177 = vunpack.c.0.s8 %v2176
        %v2178 = vperm.slane %v2174, %v2177
        %v2179 = vrot.slane %v1994, 4
        %v2180 = vsel %vm931, %v2179, %v1992
        %v2182 = vunpack.c.l.s4 1983009808
        %v2183 = vunpack.c.0.s8 %v2182
        %v2184 = vperm.slane %v2180, %v2183
        %v2185 = vrot.slane %v2173, 4
        %v2186 = vsel %vm931, %v2185, %v2167
        %v2187 = vrot.slane %v2167, 4
        %v2188 = vsel %vm931, %v2173, %v2187
        %v2190 = vunpack.c.l.s4 1934713408
        %v2191 = vunpack.c.0.s8 %v2190
        %v2192 = vperm.slane %v2186, %v2191
        %v2194 = vunpack.c.l.s4 1934713408
        %v2195 = vunpack.c.0.s8 %v2194
        %v2196 = vperm.slane %v2188, %v2195
        %v2197 = vrot.slane %v2184, 4
        %v2198 = vsel %vm931, %v2197, %v2178
        %v2199 = vrot.slane %v2178, 4
        %v2200 = vsel %vm931, %v2184, %v2199
        %v2202 = vunpack.c.l.s4 1934713408
        %v2203 = vunpack.c.0.s8 %v2202
        %v2204 = vperm.slane %v2198, %v2203
        %v2206 = vunpack.c.l.s4 1934713408
        %v2207 = vunpack.c.0.s8 %v2206
        %v2208 = vperm.slane %v2200, %v2207
        %v2209 = vrot.slane %v2204, 4
        %v2210 = vsel %vm931, %v2209, %v2192
        %v2211 = vrot.slane %v2192, 4
        %v2212 = vsel %vm931, %v2204, %v2211
        %v2213 = vrot.slane %v2208, 4
        %v2214 = vsel %vm931, %v2213, %v2196
        %v2215 = vrot.slane %v2196, 4
        %v2216 = vsel %vm931, %v2208, %v2215
        %v2217 = vsel %vm931, %v2045, %v2026
        %v2219 = vunpack.c.l.s4 1983009808
        %v2220 = vunpack.c.0.s8 %v2219
        %v2221 = vperm.slane %v2217, %v2220
        %v2222 = vrot.slane %v2046, 4
        %v2223 = vsel %vm931, %v2222, %v2044
        %v2225 = vunpack.c.l.s4 1983009808
        %v2226 = vunpack.c.0.s8 %v2225
        %v2227 = vperm.slane %v2223, %v2226
        %v2228 = vsel %vm931, %v2049, %v2038
        %v2230 = vunpack.c.l.s4 1983009808
        %v2231 = vunpack.c.0.s8 %v2230
        %v2232 = vperm.slane %v2228, %v2231
        %v2233 = vrot.slane %v2050, 4
        %v2234 = vsel %vm931, %v2233, %v2048
        %v2236 = vunpack.c.l.s4 1983009808
        %v2237 = vunpack.c.0.s8 %v2236
        %v2238 = vperm.slane %v2234, %v2237
        %v2239 = vrot.slane %v2227, 4
        %v2240 = vsel %vm931, %v2239, %v2221
        %v2241 = vrot.slane %v2221, 4
        %v2242 = vsel %vm931, %v2227, %v2241
        %v2244 = vunpack.c.l.s4 1934713408
        %v2245 = vunpack.c.0.s8 %v2244
        %v2246 = vperm.slane %v2240, %v2245
        %v2248 = vunpack.c.l.s4 1934713408
        %v2249 = vunpack.c.0.s8 %v2248
        %v2250 = vperm.slane %v2242, %v2249
        %v2251 = vrot.slane %v2238, 4
        %v2252 = vsel %vm931, %v2251, %v2232
        %v2253 = vrot.slane %v2232, 4
        %v2254 = vsel %vm931, %v2238, %v2253
        %v2256 = vunpack.c.l.s4 1934713408
        %v2257 = vunpack.c.0.s8 %v2256
        %v2258 = vperm.slane %v2252, %v2257
        %v2260 = vunpack.c.l.s4 1934713408
        %v2261 = vunpack.c.0.s8 %v2260
        %v2262 = vperm.slane %v2254, %v2261
        %v2263 = vrot.slane %v2258, 4
        %v2264 = vsel %vm931, %v2263, %v2246
        %v2265 = vrot.slane %v2246, 4
        %v2266 = vsel %vm931, %v2258, %v2265
        %v2267 = vrot.slane %v2262, 4
        %v2268 = vsel %vm931, %v2267, %v2250
        %v2269 = vrot.slane %v2250, 4
        %v2270 = vsel %vm931, %v2262, %v2269
        %v2271 = vsel %vm931, %v2101, %v2082
        %v2273 = vunpack.c.l.s4 1983009808
        %v2274 = vunpack.c.0.s8 %v2273
        %v2275 = vperm.slane %v2271, %v2274
        %v2276 = vrot.slane %v2102, 4
        %v2277 = vsel %vm931, %v2276, %v2100
        %v2279 = vunpack.c.l.s4 1983009808
        %v2280 = vunpack.c.0.s8 %v2279
        %v2281 = vperm.slane %v2277, %v2280
        %v2282 = vsel %vm931, %v2105, %v2094
        %v2284 = vunpack.c.l.s4 1983009808
        %v2285 = vunpack.c.0.s8 %v2284
        %v2286 = vperm.slane %v2282, %v2285
        %v2287 = vrot.slane %v2106, 4
        %v2288 = vsel %vm931, %v2287, %v2104
        %v2290 = vunpack.c.l.s4 1983009808
        %v2291 = vunpack.c.0.s8 %v2290
        %v2292 = vperm.slane %v2288, %v2291
        %v2293 = vrot.slane %v2281, 4
        %v2294 = vsel %vm931, %v2293, %v2275
        %v2295 = vrot.slane %v2275, 4
        %v2296 = vsel %vm931, %v2281, %v2295
        %v2298 = vunpack.c.l.s4 1934713408
        %v2299 = vunpack.c.0.s8 %v2298
        %v2300 = vperm.slane %v2294, %v2299
        %v2302 = vunpack.c.l.s4 1934713408
        %v2303 = vunpack.c.0.s8 %v2302
        %v2304 = vperm.slane %v2296, %v2303
        %v2305 = vrot.slane %v2292, 4
        %v2306 = vsel %vm931, %v2305, %v2286
        %v2307 = vrot.slane %v2286, 4
        %v2308 = vsel %vm931, %v2292, %v2307
        %v2310 = vunpack.c.l.s4 1934713408
        %v2311 = vunpack.c.0.s8 %v2310
        %v2312 = vperm.slane %v2306, %v2311
        %v2314 = vunpack.c.l.s4 1934713408
        %v2315 = vunpack.c.0.s8 %v2314
        %v2316 = vperm.slane %v2308, %v2315
        %v2317 = vrot.slane %v2312, 4
        %v2318 = vsel %vm931, %v2317, %v2300
        %v2319 = vrot.slane %v2300, 4
        %v2320 = vsel %vm931, %v2312, %v2319
        %v2321 = vrot.slane %v2316, 4
        %v2322 = vsel %vm931, %v2321, %v2304
        %v2323 = vrot.slane %v2304, 4
        %v2324 = vsel %vm931, %v2316, %v2323
        %v2325 = vsel %vm931, %v2157, %v2138
        %v2327 = vunpack.c.l.s4 1983009808
        %v2328 = vunpack.c.0.s8 %v2327
        %v2329 = vperm.slane %v2325, %v2328
        %v2330 = vrot.slane %v2158, 4
        %v2331 = vsel %vm931, %v2330, %v2156
        %v2333 = vunpack.c.l.s4 1983009808
        %v2334 = vunpack.c.0.s8 %v2333
        %v2335 = vperm.slane %v2331, %v2334
        %v2336 = vsel %vm931, %v2161, %v2150
        %v2338 = vunpack.c.l.s4 1983009808
        %v2339 = vunpack.c.0.s8 %v2338
        %v2340 = vperm.slane %v2336, %v2339
        %v2341 = vrot.slane %v2162, 4
        %v2342 = vsel %vm931, %v2341, %v2160
        %v2344 = vunpack.c.l.s4 1983009808
        %v2345 = vunpack.c.0.s8 %v2344
        %v2346 = vperm.slane %v2342, %v2345
        %v2347 = vrot.slane %v2335, 4
        %v2348 = vsel %vm931, %v2347, %v2329
        %v2349 = vrot.slane %v2329, 4
        %v2350 = vsel %vm931, %v2335, %v2349
        %v2352 = vunpack.c.l.s4 1934713408
        %v2353 = vunpack.c.0.s8 %v2352
        %v2354 = vperm.slane %v2348, %v2353
        %v2356 = vunpack.c.l.s4 1934713408
        %v2357 = vunpack.c.0.s8 %v2356
        %v2358 = vperm.slane %v2350, %v2357
        %v2359 = vrot.slane %v2346, 4
        %v2360 = vsel %vm931, %v2359, %v2340
        %v2361 = vrot.slane %v2340, 4
        %v2362 = vsel %vm931, %v2346, %v2361
        %v2364 = vunpack.c.l.s4 1934713408
        %v2365 = vunpack.c.0.s8 %v2364
        %v2366 = vperm.slane %v2360, %v2365
        %v2368 = vunpack.c.l.s4 1934713408
        %v2369 = vunpack.c.0.s8 %v2368
        %v2370 = vperm.slane %v2362, %v2369
        %v2371 = vrot.slane %v2366, 4
        %v2372 = vsel %vm931, %v2371, %v2354
        %v2373 = vrot.slane %v2354, 4
        %v2374 = vsel %vm931, %v2366, %v2373
        %v2375 = vrot.slane %v2370, 4
        %v2376 = vsel %vm931, %v2375, %v2358
        %v2377 = vrot.slane %v2358, 4
        %v2378 = vsel %vm931, %v2370, %v2377
        %v2379 = vpack.c.bf16 %v2210, %v2210
        %v2380 = vpack.c.bf16 %v2264, %v2264
        %v2381 = vpack.c.bf16 %v2212, %v2212
        %v2382 = vpack.c.bf16 %v2266, %v2266
        %v2383 = vpack.c.bf16 %v2214, %v2214
        %v2384 = vpack.c.bf16 %v2268, %v2268
        %v2385 = vpack.c.bf16 %v2216, %v2216
        %v2386 = vpack.c.bf16 %v2270, %v2270
        %v2387 = vpack.c.bf16 %v2318, %v2318
        %v2388 = vpack.c.bf16 %v2372, %v2372
        %v2389 = vpack.c.bf16 %v2320, %v2320
        %v2390 = vpack.c.bf16 %v2374, %v2374
        %v2391 = vpack.c.bf16 %v2322, %v2322
        %v2392 = vpack.c.bf16 %v2376, %v2376
        %v2393 = vpack.c.bf16 %v2324, %v2324
        %v2394 = vpack.c.bf16 %v2378, %v2378
        %v2397 = vunpack.c.l.b16 %v1371
        %v2398 = vunpack.c.l.b16 %v1372
        %v2399 = vpack.c.b16 %v2398, %v2397
        %v2402 = vunpack.c.l.b16 %v1875
        %v2403 = vunpack.c.l.b16 %v1876
        %v2404 = vpack.c.b16 %v2403, %v2402
        %vm2405 = vcmask 64512
        %v2407 = vsel %vm2405, %v2399, 0
        %v2410 = vsel %vm2405, %v2404, 0
        %2412 = vmatpush.bf16.xpose.msra.mxu0 0
        %2413 = vmatpush.bf16.xpose.msra.mxu0 0
        %2414 = vmatpush.bf16.xpose.msra.mxu0 0
        %2415 = vmatpush.bf16.xpose.msra.mxu0 0
        %2416 = vmatpush.bf16.xpose.msra.mxu0 0
        %2417 = vmatpush.bf16.xpose.msra.mxu0 0
        %2418 = vmatpush.bf16.xpose.msra.mxu0 0
        %2419 = vmatpush.bf16.xpose.msra.mxu0 %v2410
        %2420 = vmatmul.bf16.gmra.mxu0 %v2407
        %v2421 = vpop.f32.mrf.mxu0
        %v2422 = vadd.f32 0.0, %v2421
        %v2423 = vpop.f32.mrf.mxu0
        %v2424 = vadd.f32 0.0, %v2423
        %2425 = vdwg.mxu0
        %v2428 = vunpack.c.l.b16 %v1373
        %v2429 = vunpack.c.l.b16 %v1374
        %v2430 = vpack.c.b16 %v2429, %v2428
        %v2433 = vunpack.c.l.b16 %v1877
        %v2434 = vunpack.c.l.b16 %v1878
        %v2435 = vpack.c.b16 %v2434, %v2433
        %v2437 = vsel %vm2405, %v2430, 0
        %v2440 = vsel %vm2405, %v2435, 0
        %2442 = vmatpush.bf16.xpose.msra.mxu0 0
        %2443 = vmatpush.bf16.xpose.msra.mxu0 0
        %2444 = vmatpush.bf16.xpose.msra.mxu0 0
        %2445 = vmatpush.bf16.xpose.msra.mxu0 0
        %2446 = vmatpush.bf16.xpose.msra.mxu0 0
        %2447 = vmatpush.bf16.xpose.msra.mxu0 0
        %2448 = vmatpush.bf16.xpose.msra.mxu0 0
        %2449 = vmatpush.bf16.xpose.msra.mxu0 %v2440
        %2450 = vmatmul.bf16.gmra.mxu0 %v2437
        %v2451 = vpop.f32.mrf.mxu0
        %v2452 = vadd.f32 0.0, %v2451
        %v2453 = vpop.f32.mrf.mxu0
        %v2454 = vadd.f32 0.0, %v2453
        %2455 = vdwg.mxu0
        %v2458 = vunpack.c.l.b16 %v1375
        %v2459 = vunpack.c.l.b16 %v1376
        %v2460 = vpack.c.b16 %v2459, %v2458
        %v2463 = vunpack.c.l.b16 %v1879
        %v2464 = vunpack.c.l.b16 %v1880
        %v2465 = vpack.c.b16 %v2464, %v2463
        %v2467 = vsel %vm2405, %v2460, 0
        %v2470 = vsel %vm2405, %v2465, 0
        %2472 = vmatpush.bf16.xpose.msra.mxu0 0
        %2473 = vmatpush.bf16.xpose.msra.mxu0 0
        %2474 = vmatpush.bf16.xpose.msra.mxu0 0
        %2475 = vmatpush.bf16.xpose.msra.mxu0 0
        %2476 = vmatpush.bf16.xpose.msra.mxu0 0
        %2477 = vmatpush.bf16.xpose.msra.mxu0 0
        %2478 = vmatpush.bf16.xpose.msra.mxu0 0
        %2479 = vmatpush.bf16.xpose.msra.mxu0 %v2470
        %2480 = vmatmul.bf16.gmra.mxu0 %v2467
        %v2481 = vpop.f32.mrf.mxu0
        %v2482 = vadd.f32 0.0, %v2481
        %v2483 = vpop.f32.mrf.mxu0
        %v2484 = vadd.f32 0.0, %v2483
        %2485 = vdwg.mxu0
        %v2488 = vunpack.c.l.b16 %v1377
        %v2489 = vunpack.c.l.b16 %v1378
        %v2490 = vpack.c.b16 %v2489, %v2488
        %v2493 = vunpack.c.l.b16 %v1881
        %v2494 = vunpack.c.l.b16 %v1882
        %v2495 = vpack.c.b16 %v2494, %v2493
        %v2497 = vsel %vm2405, %v2490, 0
        %v2500 = vsel %vm2405, %v2495, 0
        %2502 = vmatpush.bf16.xpose.msra.mxu0 0
        %2503 = vmatpush.bf16.xpose.msra.mxu0 0
        %2504 = vmatpush.bf16.xpose.msra.mxu0 0
        %2505 = vmatpush.bf16.xpose.msra.mxu0 0
        %2506 = vmatpush.bf16.xpose.msra.mxu0 0
        %2507 = vmatpush.bf16.xpose.msra.mxu0 0
        %2508 = vmatpush.bf16.xpose.msra.mxu0 0
        %2509 = vmatpush.bf16.xpose.msra.mxu0 %v2500
        %2510 = vmatmul.bf16.gmra.mxu0 %v2497
        %v2511 = vpop.f32.mrf.mxu0
        %v2512 = vadd.f32 0.0, %v2511
        %v2513 = vpop.f32.mrf.mxu0
        %v2514 = vadd.f32 0.0, %v2513
        %2515 = vdwg.mxu0
        %v2518 = vunpack.c.l.b16 %v1379
        %v2519 = vunpack.c.l.b16 %v1380
        %v2520 = vpack.c.b16 %v2519, %v2518
        %v2523 = vunpack.c.l.b16 %v1883
        %v2524 = vunpack.c.l.b16 %v1884
        %v2525 = vpack.c.b16 %v2524, %v2523
        %v2527 = vsel %vm2405, %v2520, 0
        %v2530 = vsel %vm2405, %v2525, 0
        %2532 = vmatpush.bf16.xpose.msra.mxu0 0
        %2533 = vmatpush.bf16.xpose.msra.mxu0 0
        %2534 = vmatpush.bf16.xpose.msra.mxu0 0
        %2535 = vmatpush.bf16.xpose.msra.mxu0 0
        %2536 = vmatpush.bf16.xpose.msra.mxu0 0
        %2537 = vmatpush.bf16.xpose.msra.mxu0 0
        %2538 = vmatpush.bf16.xpose.msra.mxu0 0
        %2539 = vmatpush.bf16.xpose.msra.mxu0 %v2530
        %2540 = vmatmul.bf16.gmra.mxu0 %v2527
        %v2541 = vpop.f32.mrf.mxu0
        %v2542 = vadd.f32 0.0, %v2541
        %v2543 = vpop.f32.mrf.mxu0
        %v2544 = vadd.f32 0.0, %v2543
        %2545 = vdwg.mxu0
        %v2548 = vunpack.c.l.b16 %v1381
        %v2549 = vunpack.c.l.b16 %v1382
        %v2550 = vpack.c.b16 %v2549, %v2548
        %v2553 = vunpack.c.l.b16 %v1885
        %v2554 = vunpack.c.l.b16 %v1886
        %v2555 = vpack.c.b16 %v2554, %v2553
        %v2557 = vsel %vm2405, %v2550, 0
        %v2560 = vsel %vm2405, %v2555, 0
        %2562 = vmatpush.bf16.xpose.msra.mxu0 0
        %2563 = vmatpush.bf16.xpose.msra.mxu0 0
        %2564 = vmatpush.bf16.xpose.msra.mxu0 0
        %2565 = vmatpush.bf16.xpose.msra.mxu0 0
        %2566 = vmatpush.bf16.xpose.msra.mxu0 0
        %2567 = vmatpush.bf16.xpose.msra.mxu0 0
        %2568 = vmatpush.bf16.xpose.msra.mxu0 0
        %2569 = vmatpush.bf16.xpose.msra.mxu0 %v2560
        %2570 = vmatmul.bf16.gmra.mxu0 %v2557
        %v2571 = vpop.f32.mrf.mxu0
        %v2572 = vadd.f32 0.0, %v2571
        %v2573 = vpop.f32.mrf.mxu0
        %v2574 = vadd.f32 0.0, %v2573
        %2575 = vdwg.mxu0
        %v2578 = vunpack.c.l.b16 %v1383
        %v2579 = vunpack.c.l.b16 %v1384
        %v2580 = vpack.c.b16 %v2579, %v2578
        %v2583 = vunpack.c.l.b16 %v1887
        %v2584 = vunpack.c.l.b16 %v1888
        %v2585 = vpack.c.b16 %v2584, %v2583
        %v2587 = vsel %vm2405, %v2580, 0
        %v2590 = vsel %vm2405, %v2585, 0
        %2592 = vmatpush.bf16.xpose.msra.mxu0 0
        %2593 = vmatpush.bf16.xpose.msra.mxu0 0
        %2594 = vmatpush.bf16.xpose.msra.mxu0 0
        %2595 = vmatpush.bf16.xpose.msra.mxu0 0
        %2596 = vmatpush.bf16.xpose.msra.mxu0 0
        %2597 = vmatpush.bf16.xpose.msra.mxu0 0
        %2598 = vmatpush.bf16.xpose.msra.mxu0 0
        %2599 = vmatpush.bf16.xpose.msra.mxu0 %v2590
        %2600 = vmatmul.bf16.gmra.mxu0 %v2587
        %v2601 = vpop.f32.mrf.mxu0
        %v2602 = vadd.f32 0.0, %v2601
        %v2603 = vpop.f32.mrf.mxu0
        %v2604 = vadd.f32 0.0, %v2603
        %2605 = vdwg.mxu0
        %v2608 = vunpack.c.l.b16 %v1385
        %v2609 = vunpack.c.l.b16 %v1386
        %v2610 = vpack.c.b16 %v2609, %v2608
        %v2613 = vunpack.c.l.b16 %v1889
        %v2614 = vunpack.c.l.b16 %v1890
        %v2615 = vpack.c.b16 %v2614, %v2613
        %v2617 = vsel %vm2405, %v2610, 0
        %v2620 = vsel %vm2405, %v2615, 0
        %2622 = vmatpush.bf16.xpose.msra.mxu0 0
        %2623 = vmatpush.bf16.xpose.msra.mxu0 0
        %2624 = vmatpush.bf16.xpose.msra.mxu0 0
        %2625 = vmatpush.bf16.xpose.msra.mxu0 0
        %2626 = vmatpush.bf16.xpose.msra.mxu0 0
        %2627 = vmatpush.bf16.xpose.msra.mxu0 0
        %2628 = vmatpush.bf16.xpose.msra.mxu0 0
        %2629 = vmatpush.bf16.xpose.msra.mxu0 %v2620
        %2630 = vmatmul.bf16.gmra.mxu0 %v2617
        %v2631 = vpop.f32.mrf.mxu0
        %v2632 = vadd.f32 0.0, %v2631
        %v2633 = vpop.f32.mrf.mxu0
        %v2634 = vadd.f32 0.0, %v2633
        %2635 = vdwg.mxu0
        %v2636 = vlaneseq
        %v2637 = vand.u32 %v2636, 127
        %v2638 = vstv %s837
        %vm2639 = vcmp.ge.s32.totalorder %v2637, %v2638
        %v2640 = vsel %vm2639, %v2422, -1e+30
        %v2641 = vsel %vm2639, %v2424, -1e+30
        %v2642 = vsel %vm2639, %v2452, -1e+30
        %v2643 = vsel %vm2639, %v2454, -1e+30
        %v2644 = vsel %vm2639, %v2482, -1e+30
        %v2645 = vsel %vm2639, %v2484, -1e+30
        %v2646 = vsel %vm2639, %v2512, -1e+30
        %v2647 = vsel %vm2639, %v2514, -1e+30
        %v2648 = vsel %vm2639, %v2542, -1e+30
        %v2649 = vsel %vm2639, %v2544, -1e+30
        %v2650 = vsel %vm2639, %v2572, -1e+30
        %v2651 = vsel %vm2639, %v2574, -1e+30
        %v2652 = vsel %vm2639, %v2602, -1e+30
        %v2653 = vsel %vm2639, %v2604, -1e+30
        %v2654 = vsel %vm2639, %v2632, -1e+30
        %v2655 = vsel %vm2639, %v2634, -1e+30
        %vm2656 = vcmask 130048
        %v2657 = vsel %vm2656, %v2640, -inf
        %2658 = vmax.xlane.f32.xlu0 %v2657
        %v2659 = vpop.xlane.xlu0 %2658
        %v2660 = vsel %vm2656, %v2641, -inf
        %2661 = vmax.xlane.f32.xlu0 %v2660
        %v2662 = vpop.xlane.xlu0 %2661
        %v2663 = vsel %vm2656, %v2642, -inf
        %2664 = vmax.xlane.f32.xlu0 %v2663
        %v2665 = vpop.xlane.xlu0 %2664
        %v2666 = vsel %vm2656, %v2643, -inf
        %2667 = vmax.xlane.f32.xlu0 %v2666
        %v2668 = vpop.xlane.xlu0 %2667
        %v2669 = vsel %vm2656, %v2644, -inf
        %2670 = vmax.xlane.f32.xlu0 %v2669
        %v2671 = vpop.xlane.xlu0 %2670
        %v2672 = vsel %vm2656, %v2645, -inf
        %2673 = vmax.xlane.f32.xlu0 %v2672
        %v2674 = vpop.xlane.xlu0 %2673
        %v2675 = vsel %vm2656, %v2646, -inf
        %2676 = vmax.xlane.f32.xlu0 %v2675
        %v2677 = vpop.xlane.xlu0 %2676
        %v2678 = vsel %vm2656, %v2647, -inf
        %2679 = vmax.xlane.f32.xlu0 %v2678
        %v2680 = vpop.xlane.xlu0 %2679
        %v2681 = vsel %vm2656, %v2648, -inf
        %2682 = vmax.xlane.f32.xlu0 %v2681
        %v2683 = vpop.xlane.xlu0 %2682
        %v2684 = vsel %vm2656, %v2649, -inf
        %2685 = vmax.xlane.f32.xlu0 %v2684
        %v2686 = vpop.xlane.xlu0 %2685
        %v2687 = vsel %vm2656, %v2650, -inf
        %2688 = vmax.xlane.f32.xlu0 %v2687
        %v2689 = vpop.xlane.xlu0 %2688
        %v2690 = vsel %vm2656, %v2651, -inf
        %2691 = vmax.xlane.f32.xlu0 %v2690
        %v2692 = vpop.xlane.xlu0 %2691
        %v2693 = vsel %vm2656, %v2652, -inf
        %2694 = vmax.xlane.f32.xlu0 %v2693
        %v2695 = vpop.xlane.xlu0 %2694
        %v2696 = vsel %vm2656, %v2653, -inf
        %2697 = vmax.xlane.f32.xlu0 %v2696
        %v2698 = vpop.xlane.xlu0 %2697
        %v2699 = vsel %vm2656, %v2654, -inf
        %2700 = vmax.xlane.f32.xlu0 %v2699
        %v2701 = vpop.xlane.xlu0 %2700
        %v2702 = vsel %vm2656, %v2655, -inf
        %2703 = vmax.xlane.f32.xlu0 %v2702
        %v2704 = vpop.xlane.xlu0 %2703
        %v2705 = vsub.f32 %v2640, %v2659
        %v2706 = vsub.f32 %v2641, %v2662
        %v2707 = vsub.f32 %v2642, %v2665
        %v2708 = vsub.f32 %v2643, %v2668
        %v2709 = vsub.f32 %v2644, %v2671
        %v2710 = vsub.f32 %v2645, %v2674
        %v2711 = vsub.f32 %v2646, %v2677
        %v2712 = vsub.f32 %v2647, %v2680
        %v2713 = vsub.f32 %v2648, %v2683
        %v2714 = vsub.f32 %v2649, %v2686
        %v2715 = vsub.f32 %v2650, %v2689
        %v2716 = vsub.f32 %v2651, %v2692
        %v2717 = vsub.f32 %v2652, %v2695
        %v2718 = vsub.f32 %v2653, %v2698
        %v2719 = vsub.f32 %v2654, %v2701
        %v2720 = vsub.f32 %v2655, %v2704
        %v2721 = vmul.f32 %v2705, 1.442695
        %v2722 = vpow.pop %v2721
        %v2723 = vmul.f32 %v2706, 1.442695
        %v2724 = vpow.pop %v2723
        %v2725 = vmul.f32 %v2707, 1.442695
        %v2726 = vpow.pop %v2725
        %v2727 = vmul.f32 %v2708, 1.442695
        %v2728 = vpow.pop %v2727
        %v2729 = vmul.f32 %v2709, 1.442695
        %v2730 = vpow.pop %v2729
        %v2731 = vmul.f32 %v2710, 1.442695
        %v2732 = vpow.pop %v2731
        %v2733 = vmul.f32 %v2711, 1.442695
        %v2734 = vpow.pop %v2733
        %v2735 = vmul.f32 %v2712, 1.442695
        %v2736 = vpow.pop %v2735
        %v2737 = vmul.f32 %v2713, 1.442695
        %v2738 = vpow.pop %v2737
        %v2739 = vmul.f32 %v2714, 1.442695
        %v2740 = vpow.pop %v2739
        %v2741 = vmul.f32 %v2715, 1.442695
        %v2742 = vpow.pop %v2741
        %v2743 = vmul.f32 %v2716, 1.442695
        %v2744 = vpow.pop %v2743
        %v2745 = vmul.f32 %v2717, 1.442695
        %v2746 = vpow.pop %v2745
        %v2747 = vmul.f32 %v2718, 1.442695
        %v2748 = vpow.pop %v2747
        %v2749 = vmul.f32 %v2719, 1.442695
        %v2750 = vpow.pop %v2749
        %v2751 = vmul.f32 %v2720, 1.442695
        %v2752 = vpow.pop %v2751
        %v2753 = vsel %vm2656, %v2722, 0.0
        %2754 = vadd.xlane.f32.xlu0 %v2753
        %v2755 = vpop.xlane.xlu0 %2754
        %v2756 = vsel %vm2656, %v2724, 0.0
        %2757 = vadd.xlane.f32.xlu0 %v2756
        %v2758 = vpop.xlane.xlu0 %2757
        %v2759 = vsel %vm2656, %v2726, 0.0
        %2760 = vadd.xlane.f32.xlu0 %v2759
        %v2761 = vpop.xlane.xlu0 %2760
        %v2762 = vsel %vm2656, %v2728, 0.0
        %2763 = vadd.xlane.f32.xlu0 %v2762
        %v2764 = vpop.xlane.xlu0 %2763
        %v2765 = vsel %vm2656, %v2730, 0.0
        %2766 = vadd.xlane.f32.xlu0 %v2765
        %v2767 = vpop.xlane.xlu0 %2766
        %v2768 = vsel %vm2656, %v2732, 0.0
        %2769 = vadd.xlane.f32.xlu0 %v2768
        %v2770 = vpop.xlane.xlu0 %2769
        %v2771 = vsel %vm2656, %v2734, 0.0
        %2772 = vadd.xlane.f32.xlu0 %v2771
        %v2773 = vpop.xlane.xlu0 %2772
        %v2774 = vsel %vm2656, %v2736, 0.0
        %2775 = vadd.xlane.f32.xlu0 %v2774
        %v2776 = vpop.xlane.xlu0 %2775
        %v2777 = vsel %vm2656, %v2738, 0.0
        %2778 = vadd.xlane.f32.xlu0 %v2777
        %v2779 = vpop.xlane.xlu0 %2778
        %v2780 = vsel %vm2656, %v2740, 0.0
        %2781 = vadd.xlane.f32.xlu0 %v2780
        %v2782 = vpop.xlane.xlu0 %2781
        %v2783 = vsel %vm2656, %v2742, 0.0
        %2784 = vadd.xlane.f32.xlu0 %v2783
        %v2785 = vpop.xlane.xlu0 %2784
        %v2786 = vsel %vm2656, %v2744, 0.0
        %2787 = vadd.xlane.f32.xlu0 %v2786
        %v2788 = vpop.xlane.xlu0 %2787
        %v2789 = vsel %vm2656, %v2746, 0.0
        %2790 = vadd.xlane.f32.xlu0 %v2789
        %v2791 = vpop.xlane.xlu0 %2790
        %v2792 = vsel %vm2656, %v2748, 0.0
        %2793 = vadd.xlane.f32.xlu0 %v2792
        %v2794 = vpop.xlane.xlu0 %2793
        %v2795 = vsel %vm2656, %v2750, 0.0
        %2796 = vadd.xlane.f32.xlu0 %v2795
        %v2797 = vpop.xlane.xlu0 %2796
        %v2798 = vsel %vm2656, %v2752, 0.0
        %2799 = vadd.xlane.f32.xlu0 %v2798
        %v2800 = vpop.xlane.xlu0 %2799
        %v2801 = vrcp.pop %v2755
        %v2802 = vrcp.pop %v2758
        %v2803 = vrcp.pop %v2761
        %v2804 = vrcp.pop %v2764
        %v2805 = vrcp.pop %v2767
        %v2806 = vrcp.pop %v2770
        %v2807 = vrcp.pop %v2773
        %v2808 = vrcp.pop %v2776
        %v2809 = vrcp.pop %v2779
        %v2810 = vrcp.pop %v2782
        %v2811 = vrcp.pop %v2785
        %v2812 = vrcp.pop %v2788
        %v2813 = vrcp.pop %v2791
        %v2814 = vrcp.pop %v2794
        %v2815 = vrcp.pop %v2797
        %v2816 = vrcp.pop %v2800
        %v2817 = vmul.f32 %v2722, %v2801
        %v2818 = vmul.f32 %v2724, %v2802
        %v2819 = vmul.f32 %v2726, %v2803
        %v2820 = vmul.f32 %v2728, %v2804
        %v2821 = vmul.f32 %v2730, %v2805
        %v2822 = vmul.f32 %v2732, %v2806
        %v2823 = vmul.f32 %v2734, %v2807
        %v2824 = vmul.f32 %v2736, %v2808
        %v2825 = vmul.f32 %v2738, %v2809
        %v2826 = vmul.f32 %v2740, %v2810
        %v2827 = vmul.f32 %v2742, %v2811
        %v2828 = vmul.f32 %v2744, %v2812
        %v2829 = vmul.f32 %v2746, %v2813
        %v2830 = vmul.f32 %v2748, %v2814
        %v2831 = vmul.f32 %v2750, %v2815
        %v2832 = vmul.f32 %v2752, %v2816
        %v2833 = vpack.c.bf16 %v2817, %v2817
        %v2834 = vpack.c.bf16 %v2818, %v2818
        %v2835 = vpack.c.bf16 %v2819, %v2819
        %v2836 = vpack.c.bf16 %v2820, %v2820
        %v2837 = vpack.c.bf16 %v2821, %v2821
        %v2838 = vpack.c.bf16 %v2822, %v2822
        %v2839 = vpack.c.bf16 %v2823, %v2823
        %v2840 = vpack.c.bf16 %v2824, %v2824
        %v2841 = vpack.c.bf16 %v2825, %v2825
        %v2842 = vpack.c.bf16 %v2826, %v2826
        %v2843 = vpack.c.bf16 %v2827, %v2827
        %v2844 = vpack.c.bf16 %v2828, %v2828
        %v2845 = vpack.c.bf16 %v2829, %v2829
        %v2846 = vpack.c.bf16 %v2830, %v2830
        %v2847 = vpack.c.bf16 %v2831, %v2831
        %v2848 = vpack.c.bf16 %v2832, %v2832
        %v2851 = vunpack.c.l.b16 %v2833
        %v2852 = vunpack.c.l.b16 %v2834
        %v2853 = vpack.c.b16 %v2852, %v2851
        %v2856 = vunpack.c.l.b16 %v2379
        %v2857 = vunpack.c.l.b16 %v2380
        %v2858 = vpack.c.b16 %v2857, %v2856
        %v2861 = vsel %vm2656, %v2853, 0
        %2863 = vmatpush.bf16.msra.mxu0 0
        %2864 = vmatpush.bf16.msra.mxu0 0
        %2865 = vmatpush.bf16.msra.mxu0 0
        %2866 = vmatpush.bf16.msra.mxu0 0
        %2867 = vmatpush.bf16.msra.mxu0 0
        %2868 = vmatpush.bf16.msra.mxu0 0
        %2869 = vmatpush.bf16.msra.mxu0 0
        %2870 = vmatpush.bf16.msra.mxu0 %v2858
        %2871 = vmatmul.bf16.gmra.mxu0 %v2861
        %v2872 = vpop.f32.mrf.mxu0
        %v2873 = vadd.f32 0.0, %v2872
        %v2874 = vpop.f32.mrf.mxu0
        %v2875 = vadd.f32 0.0, %v2874
        %2876 = vdwg.mxu0
        %v2879 = vunpack.c.l.b16 %v2835
        %v2880 = vunpack.c.l.b16 %v2836
        %v2881 = vpack.c.b16 %v2880, %v2879
        %v2884 = vunpack.c.l.b16 %v2381
        %v2885 = vunpack.c.l.b16 %v2382
        %v2886 = vpack.c.b16 %v2885, %v2884
        %v2889 = vsel %vm2656, %v2881, 0
        %2891 = vmatpush.bf16.msra.mxu0 0
        %2892 = vmatpush.bf16.msra.mxu0 0
        %2893 = vmatpush.bf16.msra.mxu0 0
        %2894 = vmatpush.bf16.msra.mxu0 0
        %2895 = vmatpush.bf16.msra.mxu0 0
        %2896 = vmatpush.bf16.msra.mxu0 0
        %2897 = vmatpush.bf16.msra.mxu0 0
        %2898 = vmatpush.bf16.msra.mxu0 %v2886
        %2899 = vmatmul.bf16.gmra.mxu0 %v2889
        %v2900 = vpop.f32.mrf.mxu0
        %v2901 = vadd.f32 0.0, %v2900
        %v2902 = vpop.f32.mrf.mxu0
        %v2903 = vadd.f32 0.0, %v2902
        %2904 = vdwg.mxu0
        %v2907 = vunpack.c.l.b16 %v2837
        %v2908 = vunpack.c.l.b16 %v2838
        %v2909 = vpack.c.b16 %v2908, %v2907
        %v2912 = vunpack.c.l.b16 %v2383
        %v2913 = vunpack.c.l.b16 %v2384
        %v2914 = vpack.c.b16 %v2913, %v2912
        %v2917 = vsel %vm2656, %v2909, 0
        %2919 = vmatpush.bf16.msra.mxu0 0
        %2920 = vmatpush.bf16.msra.mxu0 0
        %2921 = vmatpush.bf16.msra.mxu0 0
        %2922 = vmatpush.bf16.msra.mxu0 0
        %2923 = vmatpush.bf16.msra.mxu0 0
        %2924 = vmatpush.bf16.msra.mxu0 0
        %2925 = vmatpush.bf16.msra.mxu0 0
        %2926 = vmatpush.bf16.msra.mxu0 %v2914
        %2927 = vmatmul.bf16.gmra.mxu0 %v2917
        %v2928 = vpop.f32.mrf.mxu0
        %v2929 = vadd.f32 0.0, %v2928
        %v2930 = vpop.f32.mrf.mxu0
        %v2931 = vadd.f32 0.0, %v2930
        %2932 = vdwg.mxu0
        %v2935 = vunpack.c.l.b16 %v2839
        %v2936 = vunpack.c.l.b16 %v2840
        %v2937 = vpack.c.b16 %v2936, %v2935
        %v2940 = vunpack.c.l.b16 %v2385
        %v2941 = vunpack.c.l.b16 %v2386
        %v2942 = vpack.c.b16 %v2941, %v2940
        %v2945 = vsel %vm2656, %v2937, 0
        %2947 = vmatpush.bf16.msra.mxu0 0
        %2948 = vmatpush.bf16.msra.mxu0 0
        %2949 = vmatpush.bf16.msra.mxu0 0
        %2950 = vmatpush.bf16.msra.mxu0 0
        %2951 = vmatpush.bf16.msra.mxu0 0
        %2952 = vmatpush.bf16.msra.mxu0 0
        %2953 = vmatpush.bf16.msra.mxu0 0
        %2954 = vmatpush.bf16.msra.mxu0 %v2942
        %2955 = vmatmul.bf16.gmra.mxu0 %v2945
        %v2956 = vpop.f32.mrf.mxu0
        %v2957 = vadd.f32 0.0, %v2956
        %v2958 = vpop.f32.mrf.mxu0
        %v2959 = vadd.f32 0.0, %v2958
        %2960 = vdwg.mxu0
        %v2963 = vunpack.c.l.b16 %v2841
        %v2964 = vunpack.c.l.b16 %v2842
        %v2965 = vpack.c.b16 %v2964, %v2963
        %v2968 = vunpack.c.l.b16 %v2387
        %v2969 = vunpack.c.l.b16 %v2388
        %v2970 = vpack.c.b16 %v2969, %v2968
        %v2973 = vsel %vm2656, %v2965, 0
        %2975 = vmatpush.bf16.msra.mxu0 0
        %2976 = vmatpush.bf16.msra.mxu0 0
        %2977 = vmatpush.bf16.msra.mxu0 0
        %2978 = vmatpush.bf16.msra.mxu0 0
        %2979 = vmatpush.bf16.msra.mxu0 0
        %2980 = vmatpush.bf16.msra.mxu0 0
        %2981 = vmatpush.bf16.msra.mxu0 0
        %2982 = vmatpush.bf16.msra.mxu0 %v2970
        %2983 = vmatmul.bf16.gmra.mxu0 %v2973
        %v2984 = vpop.f32.mrf.mxu0
        %v2985 = vadd.f32 0.0, %v2984
        %v2986 = vpop.f32.mrf.mxu0
        %v2987 = vadd.f32 0.0, %v2986
        %2988 = vdwg.mxu0
        %v2991 = vunpack.c.l.b16 %v2843
        %v2992 = vunpack.c.l.b16 %v2844
        %v2993 = vpack.c.b16 %v2992, %v2991
        %v2996 = vunpack.c.l.b16 %v2389
        %v2997 = vunpack.c.l.b16 %v2390
        %v2998 = vpack.c.b16 %v2997, %v2996
        %v3001 = vsel %vm2656, %v2993, 0
        %3003 = vmatpush.bf16.msra.mxu0 0
        %3004 = vmatpush.bf16.msra.mxu0 0
        %3005 = vmatpush.bf16.msra.mxu0 0
        %3006 = vmatpush.bf16.msra.mxu0 0
        %3007 = vmatpush.bf16.msra.mxu0 0
        %3008 = vmatpush.bf16.msra.mxu0 0
        %3009 = vmatpush.bf16.msra.mxu0 0
        %3010 = vmatpush.bf16.msra.mxu0 %v2998
        %3011 = vmatmul.bf16.gmra.mxu0 %v3001
        %v3012 = vpop.f32.mrf.mxu0
        %v3013 = vadd.f32 0.0, %v3012
        %v3014 = vpop.f32.mrf.mxu0
        %v3015 = vadd.f32 0.0, %v3014
        %3016 = vdwg.mxu0
        %v3019 = vunpack.c.l.b16 %v2845
        %v3020 = vunpack.c.l.b16 %v2846
        %v3021 = vpack.c.b16 %v3020, %v3019
        %v3024 = vunpack.c.l.b16 %v2391
        %v3025 = vunpack.c.l.b16 %v2392
        %v3026 = vpack.c.b16 %v3025, %v3024
        %v3029 = vsel %vm2656, %v3021, 0
        %3031 = vmatpush.bf16.msra.mxu0 0
        %3032 = vmatpush.bf16.msra.mxu0 0
        %3033 = vmatpush.bf16.msra.mxu0 0
        %3034 = vmatpush.bf16.msra.mxu0 0
        %3035 = vmatpush.bf16.msra.mxu0 0
        %3036 = vmatpush.bf16.msra.mxu0 0
        %3037 = vmatpush.bf16.msra.mxu0 0
        %3038 = vmatpush.bf16.msra.mxu0 %v3026
        %3039 = vmatmul.bf16.gmra.mxu0 %v3029
        %v3040 = vpop.f32.mrf.mxu0
        %v3041 = vadd.f32 0.0, %v3040
        %v3042 = vpop.f32.mrf.mxu0
        %v3043 = vadd.f32 0.0, %v3042
        %3044 = vdwg.mxu0
        %v3047 = vunpack.c.l.b16 %v2847
        %v3048 = vunpack.c.l.b16 %v2848
        %v3049 = vpack.c.b16 %v3048, %v3047
        %v3052 = vunpack.c.l.b16 %v2393
        %v3053 = vunpack.c.l.b16 %v2394
        %v3054 = vpack.c.b16 %v3053, %v3052
        %v3057 = vsel %vm2656, %v3049, 0
        %3059 = vmatpush.bf16.msra.mxu0 0
        %3060 = vmatpush.bf16.msra.mxu0 0
        %3061 = vmatpush.bf16.msra.mxu0 0
        %3062 = vmatpush.bf16.msra.mxu0 0
        %3063 = vmatpush.bf16.msra.mxu0 0
        %3064 = vmatpush.bf16.msra.mxu0 0
        %3065 = vmatpush.bf16.msra.mxu0 0
        %3066 = vmatpush.bf16.msra.mxu0 %v3054
        %3067 = vmatmul.bf16.gmra.mxu0 %v3057
        %v3068 = vpop.f32.mrf.mxu0
        %v3069 = vadd.f32 0.0, %v3068
        %v3070 = vpop.f32.mrf.mxu0
        %v3071 = vadd.f32 0.0, %v3070
        %3072 = vdwg.mxu0
        %v3073 = vrot.slane %v2929, 4
        %v3074 = vsel %vm931, %v3073, %v2873
        %v3075 = vrot.slane %v2873, 4
        %v3076 = vsel %vm931, %v2929, %v3075
        %v3078 = vunpack.c.l.s4 1983009808
        %v3079 = vunpack.c.0.s8 %v3078
        %v3080 = vperm.slane %v3074, %v3079
        %v3082 = vunpack.c.l.s4 1983009808
        %v3083 = vunpack.c.0.s8 %v3082
        %v3084 = vperm.slane %v3076, %v3083
        %v3085 = vrot.slane %v2957, 4
        %v3086 = vsel %vm931, %v3085, %v2901
        %v3087 = vrot.slane %v2901, 4
        %v3088 = vsel %vm931, %v2957, %v3087
        %v3090 = vunpack.c.l.s4 1983009808
        %v3091 = vunpack.c.0.s8 %v3090
        %v3092 = vperm.slane %v3086, %v3091
        %v3094 = vunpack.c.l.s4 1983009808
        %v3095 = vunpack.c.0.s8 %v3094
        %v3096 = vperm.slane %v3088, %v3095
        %v3097 = vrot.slane %v3092, 4
        %v3098 = vsel %vm931, %v3097, %v3080
        %v3099 = vrot.slane %v3080, 4
        %v3100 = vsel %vm931, %v3092, %v3099
        %v3102 = vunpack.c.l.s4 1934713408
        %v3103 = vunpack.c.0.s8 %v3102
        %v3104 = vperm.slane %v3098, %v3103
        %v3106 = vunpack.c.l.s4 1934713408
        %v3107 = vunpack.c.0.s8 %v3106
        %v3108 = vperm.slane %v3100, %v3107
        %v3109 = vrot.slane %v3096, 4
        %v3110 = vsel %vm931, %v3109, %v3084
        %v3111 = vrot.slane %v3084, 4
        %v3112 = vsel %vm931, %v3096, %v3111
        %v3114 = vunpack.c.l.s4 1934713408
        %v3115 = vunpack.c.0.s8 %v3114
        %v3116 = vperm.slane %v3110, %v3115
        %v3118 = vunpack.c.l.s4 1934713408
        %v3119 = vunpack.c.0.s8 %v3118
        %v3120 = vperm.slane %v3112, %v3119
        %v3121 = vrot.slane %v3104, 4
        %v3122 = vsel %vm931, 0.0, %v3121
        %v3123 = vrot.slane %v3108, 4
        %v3124 = vsel %vm931, 0.0, %v3123
        %v3125 = vrot.slane %v3116, 4
        %v3126 = vsel %vm931, 0.0, %v3125
        %v3127 = vrot.slane %v3120, 4
        %v3128 = vsel %vm931, 0.0, %v3127
        %v3129 = vrot.slane %v2931, 4
        %v3130 = vsel %vm931, %v3129, %v2875
        %v3131 = vrot.slane %v2875, 4
        %v3132 = vsel %vm931, %v2931, %v3131
        %v3134 = vunpack.c.l.s4 1983009808
        %v3135 = vunpack.c.0.s8 %v3134
        %v3136 = vperm.slane %v3130, %v3135
        %v3138 = vunpack.c.l.s4 1983009808
        %v3139 = vunpack.c.0.s8 %v3138
        %v3140 = vperm.slane %v3132, %v3139
        %v3141 = vrot.slane %v2959, 4
        %v3142 = vsel %vm931, %v3141, %v2903
        %v3143 = vrot.slane %v2903, 4
        %v3144 = vsel %vm931, %v2959, %v3143
        %v3146 = vunpack.c.l.s4 1983009808
        %v3147 = vunpack.c.0.s8 %v3146
        %v3148 = vperm.slane %v3142, %v3147
        %v3150 = vunpack.c.l.s4 1983009808
        %v3151 = vunpack.c.0.s8 %v3150
        %v3152 = vperm.slane %v3144, %v3151
        %v3153 = vrot.slane %v3148, 4
        %v3154 = vsel %vm931, %v3153, %v3136
        %v3155 = vrot.slane %v3136, 4
        %v3156 = vsel %vm931, %v3148, %v3155
        %v3158 = vunpack.c.l.s4 1934713408
        %v3159 = vunpack.c.0.s8 %v3158
        %v3160 = vperm.slane %v3154, %v3159
        %v3162 = vunpack.c.l.s4 1934713408
        %v3163 = vunpack.c.0.s8 %v3162
        %v3164 = vperm.slane %v3156, %v3163
        %v3165 = vrot.slane %v3152, 4
        %v3166 = vsel %vm931, %v3165, %v3140
        %v3167 = vrot.slane %v3140, 4
        %v3168 = vsel %vm931, %v3152, %v3167
        %v3170 = vunpack.c.l.s4 1934713408
        %v3171 = vunpack.c.0.s8 %v3170
        %v3172 = vperm.slane %v3166, %v3171
        %v3174 = vunpack.c.l.s4 1934713408
        %v3175 = vunpack.c.0.s8 %v3174
        %v3176 = vperm.slane %v3168, %v3175
        %v3177 = vrot.slane %v3160, 4
        %v3178 = vsel %vm931, 0.0, %v3177
        %v3179 = vrot.slane %v3164, 4
        %v3180 = vsel %vm931, 0.0, %v3179
        %v3181 = vrot.slane %v3172, 4
        %v3182 = vsel %vm931, 0.0, %v3181
        %v3183 = vrot.slane %v3176, 4
        %v3184 = vsel %vm931, 0.0, %v3183
        %v3185 = vrot.slane %v3041, 4
        %v3186 = vsel %vm931, %v3185, %v2985
        %v3187 = vrot.slane %v2985, 4
        %v3188 = vsel %vm931, %v3041, %v3187
        %v3190 = vunpack.c.l.s4 1983009808
        %v3191 = vunpack.c.0.s8 %v3190
        %v3192 = vperm.slane %v3186, %v3191
        %v3194 = vunpack.c.l.s4 1983009808
        %v3195 = vunpack.c.0.s8 %v3194
        %v3196 = vperm.slane %v3188, %v3195
        %v3197 = vrot.slane %v3069, 4
        %v3198 = vsel %vm931, %v3197, %v3013
        %v3199 = vrot.slane %v3013, 4
        %v3200 = vsel %vm931, %v3069, %v3199
        %v3202 = vunpack.c.l.s4 1983009808
        %v3203 = vunpack.c.0.s8 %v3202
        %v3204 = vperm.slane %v3198, %v3203
        %v3206 = vunpack.c.l.s4 1983009808
        %v3207 = vunpack.c.0.s8 %v3206
        %v3208 = vperm.slane %v3200, %v3207
        %v3209 = vrot.slane %v3204, 4
        %v3210 = vsel %vm931, %v3209, %v3192
        %v3211 = vrot.slane %v3192, 4
        %v3212 = vsel %vm931, %v3204, %v3211
        %v3214 = vunpack.c.l.s4 1934713408
        %v3215 = vunpack.c.0.s8 %v3214
        %v3216 = vperm.slane %v3210, %v3215
        %v3218 = vunpack.c.l.s4 1934713408
        %v3219 = vunpack.c.0.s8 %v3218
        %v3220 = vperm.slane %v3212, %v3219
        %v3221 = vrot.slane %v3208, 4
        %v3222 = vsel %vm931, %v3221, %v3196
        %v3223 = vrot.slane %v3196, 4
        %v3224 = vsel %vm931, %v3208, %v3223
        %v3226 = vunpack.c.l.s4 1934713408
        %v3227 = vunpack.c.0.s8 %v3226
        %v3228 = vperm.slane %v3222, %v3227
        %v3230 = vunpack.c.l.s4 1934713408
        %v3231 = vunpack.c.0.s8 %v3230
        %v3232 = vperm.slane %v3224, %v3231
        %v3233 = vrot.slane %v3216, 4
        %v3234 = vsel %vm931, 0.0, %v3233
        %v3235 = vrot.slane %v3220, 4
        %v3236 = vsel %vm931, 0.0, %v3235
        %v3237 = vrot.slane %v3228, 4
        %v3238 = vsel %vm931, 0.0, %v3237
        %v3239 = vrot.slane %v3232, 4
        %v3240 = vsel %vm931, 0.0, %v3239
        %v3241 = vrot.slane %v3043, 4
        %v3242 = vsel %vm931, %v3241, %v2987
        %v3243 = vrot.slane %v2987, 4
        %v3244 = vsel %vm931, %v3043, %v3243
        %v3246 = vunpack.c.l.s4 1983009808
        %v3247 = vunpack.c.0.s8 %v3246
        %v3248 = vperm.slane %v3242, %v3247
        %v3250 = vunpack.c.l.s4 1983009808
        %v3251 = vunpack.c.0.s8 %v3250
        %v3252 = vperm.slane %v3244, %v3251
        %v3253 = vrot.slane %v3071, 4
        %v3254 = vsel %vm931, %v3253, %v3015
        %v3255 = vrot.slane %v3015, 4
        %v3256 = vsel %vm931, %v3071, %v3255
        %v3258 = vunpack.c.l.s4 1983009808
        %v3259 = vunpack.c.0.s8 %v3258
        %v3260 = vperm.slane %v3254, %v3259
        %v3262 = vunpack.c.l.s4 1983009808
        %v3263 = vunpack.c.0.s8 %v3262
        %v3264 = vperm.slane %v3256, %v3263
        %v3265 = vrot.slane %v3260, 4
        %v3266 = vsel %vm931, %v3265, %v3248
        %v3267 = vrot.slane %v3248, 4
        %v3268 = vsel %vm931, %v3260, %v3267
        %v3270 = vunpack.c.l.s4 1934713408
        %v3271 = vunpack.c.0.s8 %v3270
        %v3272 = vperm.slane %v3266, %v3271
        %v3274 = vunpack.c.l.s4 1934713408
        %v3275 = vunpack.c.0.s8 %v3274
        %v3276 = vperm.slane %v3268, %v3275
        %v3277 = vrot.slane %v3264, 4
        %v3278 = vsel %vm931, %v3277, %v3252
        %v3279 = vrot.slane %v3252, 4
        %v3280 = vsel %vm931, %v3264, %v3279
        %v3282 = vunpack.c.l.s4 1934713408
        %v3283 = vunpack.c.0.s8 %v3282
        %v3284 = vperm.slane %v3278, %v3283
        %v3286 = vunpack.c.l.s4 1934713408
        %v3287 = vunpack.c.0.s8 %v3286
        %v3288 = vperm.slane %v3280, %v3287
        %v3289 = vrot.slane %v3272, 4
        %v3290 = vsel %vm931, 0.0, %v3289
        %v3291 = vrot.slane %v3276, 4
        %v3292 = vsel %vm931, 0.0, %v3291
        %v3293 = vrot.slane %v3284, 4
        %v3294 = vsel %vm931, 0.0, %v3293
        %v3295 = vrot.slane %v3288, 4
        %v3296 = vsel %vm931, 0.0, %v3295
        %v3297 = vsel %vm931, %v3123, %v3104
        %v3299 = vunpack.c.l.s4 1983009808
        %v3300 = vunpack.c.0.s8 %v3299
        %v3301 = vperm.slane %v3297, %v3300
        %v3302 = vrot.slane %v3124, 4
        %v3303 = vsel %vm931, %v3302, %v3122
        %v3305 = vunpack.c.l.s4 1983009808
        %v3306 = vunpack.c.0.s8 %v3305
        %v3307 = vperm.slane %v3303, %v3306
        %v3308 = vsel %vm931, %v3127, %v3116
        %v3310 = vunpack.c.l.s4 1983009808
        %v3311 = vunpack.c.0.s8 %v3310
        %v3312 = vperm.slane %v3308, %v3311
        %v3313 = vrot.slane %v3128, 4
        %v3314 = vsel %vm931, %v3313, %v3126
        %v3316 = vunpack.c.l.s4 1983009808
        %v3317 = vunpack.c.0.s8 %v3316
        %v3318 = vperm.slane %v3314, %v3317
        %v3319 = vrot.slane %v3307, 4
        %v3320 = vsel %vm931, %v3319, %v3301
        %v3321 = vrot.slane %v3301, 4
        %v3322 = vsel %vm931, %v3307, %v3321
        %v3324 = vunpack.c.l.s4 1934713408
        %v3325 = vunpack.c.0.s8 %v3324
        %v3326 = vperm.slane %v3320, %v3325
        %v3328 = vunpack.c.l.s4 1934713408
        %v3329 = vunpack.c.0.s8 %v3328
        %v3330 = vperm.slane %v3322, %v3329
        %v3331 = vrot.slane %v3318, 4
        %v3332 = vsel %vm931, %v3331, %v3312
        %v3333 = vrot.slane %v3312, 4
        %v3334 = vsel %vm931, %v3318, %v3333
        %v3336 = vunpack.c.l.s4 1934713408
        %v3337 = vunpack.c.0.s8 %v3336
        %v3338 = vperm.slane %v3332, %v3337
        %v3340 = vunpack.c.l.s4 1934713408
        %v3341 = vunpack.c.0.s8 %v3340
        %v3342 = vperm.slane %v3334, %v3341
        %v3343 = vrot.slane %v3338, 4
        %v3344 = vsel %vm931, %v3343, %v3326
        %v3345 = vrot.slane %v3326, 4
        %v3346 = vsel %vm931, %v3338, %v3345
        %v3347 = vrot.slane %v3342, 4
        %v3348 = vsel %vm931, %v3347, %v3330
        %v3349 = vrot.slane %v3330, 4
        %v3350 = vsel %vm931, %v3342, %v3349
        %v3351 = vsel %vm931, %v3179, %v3160
        %v3353 = vunpack.c.l.s4 1983009808
        %v3354 = vunpack.c.0.s8 %v3353
        %v3355 = vperm.slane %v3351, %v3354
        %v3356 = vrot.slane %v3180, 4
        %v3357 = vsel %vm931, %v3356, %v3178
        %v3359 = vunpack.c.l.s4 1983009808
        %v3360 = vunpack.c.0.s8 %v3359
        %v3361 = vperm.slane %v3357, %v3360
        %v3362 = vsel %vm931, %v3183, %v3172
        %v3364 = vunpack.c.l.s4 1983009808
        %v3365 = vunpack.c.0.s8 %v3364
        %v3366 = vperm.slane %v3362, %v3365
        %v3367 = vrot.slane %v3184, 4
        %v3368 = vsel %vm931, %v3367, %v3182
        %v3370 = vunpack.c.l.s4 1983009808
        %v3371 = vunpack.c.0.s8 %v3370
        %v3372 = vperm.slane %v3368, %v3371
        %v3373 = vrot.slane %v3361, 4
        %v3374 = vsel %vm931, %v3373, %v3355
        %v3375 = vrot.slane %v3355, 4
        %v3376 = vsel %vm931, %v3361, %v3375
        %v3378 = vunpack.c.l.s4 1934713408
        %v3379 = vunpack.c.0.s8 %v3378
        %v3380 = vperm.slane %v3374, %v3379
        %v3382 = vunpack.c.l.s4 1934713408
        %v3383 = vunpack.c.0.s8 %v3382
        %v3384 = vperm.slane %v3376, %v3383
        %v3385 = vrot.slane %v3372, 4
        %v3386 = vsel %vm931, %v3385, %v3366
        %v3387 = vrot.slane %v3366, 4
        %v3388 = vsel %vm931, %v3372, %v3387
        %v3390 = vunpack.c.l.s4 1934713408
        %v3391 = vunpack.c.0.s8 %v3390
        %v3392 = vperm.slane %v3386, %v3391
        %v3394 = vunpack.c.l.s4 1934713408
        %v3395 = vunpack.c.0.s8 %v3394
        %v3396 = vperm.slane %v3388, %v3395
        %v3397 = vrot.slane %v3392, 4
        %v3398 = vsel %vm931, %v3397, %v3380
        %v3399 = vrot.slane %v3380, 4
        %v3400 = vsel %vm931, %v3392, %v3399
        %v3401 = vrot.slane %v3396, 4
        %v3402 = vsel %vm931, %v3401, %v3384
        %v3403 = vrot.slane %v3384, 4
        %v3404 = vsel %vm931, %v3396, %v3403
        %v3405 = vsel %vm931, %v3235, %v3216
        %v3407 = vunpack.c.l.s4 1983009808
        %v3408 = vunpack.c.0.s8 %v3407
        %v3409 = vperm.slane %v3405, %v3408
        %v3410 = vrot.slane %v3236, 4
        %v3411 = vsel %vm931, %v3410, %v3234
        %v3413 = vunpack.c.l.s4 1983009808
        %v3414 = vunpack.c.0.s8 %v3413
        %v3415 = vperm.slane %v3411, %v3414
        %v3416 = vsel %vm931, %v3239, %v3228
        %v3418 = vunpack.c.l.s4 1983009808
        %v3419 = vunpack.c.0.s8 %v3418
        %v3420 = vperm.slane %v3416, %v3419
        %v3421 = vrot.slane %v3240, 4
        %v3422 = vsel %vm931, %v3421, %v3238
        %v3424 = vunpack.c.l.s4 1983009808
        %v3425 = vunpack.c.0.s8 %v3424
        %v3426 = vperm.slane %v3422, %v3425
        %v3427 = vrot.slane %v3415, 4
        %v3428 = vsel %vm931, %v3427, %v3409
        %v3429 = vrot.slane %v3409, 4
        %v3430 = vsel %vm931, %v3415, %v3429
        %v3432 = vunpack.c.l.s4 1934713408
        %v3433 = vunpack.c.0.s8 %v3432
        %v3434 = vperm.slane %v3428, %v3433
        %v3436 = vunpack.c.l.s4 1934713408
        %v3437 = vunpack.c.0.s8 %v3436
        %v3438 = vperm.slane %v3430, %v3437
        %v3439 = vrot.slane %v3426, 4
        %v3440 = vsel %vm931, %v3439, %v3420
        %v3441 = vrot.slane %v3420, 4
        %v3442 = vsel %vm931, %v3426, %v3441
        %v3444 = vunpack.c.l.s4 1934713408
        %v3445 = vunpack.c.0.s8 %v3444
        %v3446 = vperm.slane %v3440, %v3445
        %v3448 = vunpack.c.l.s4 1934713408
        %v3449 = vunpack.c.0.s8 %v3448
        %v3450 = vperm.slane %v3442, %v3449
        %v3451 = vrot.slane %v3446, 4
        %v3452 = vsel %vm931, %v3451, %v3434
        %v3453 = vrot.slane %v3434, 4
        %v3454 = vsel %vm931, %v3446, %v3453
        %v3455 = vrot.slane %v3450, 4
        %v3456 = vsel %vm931, %v3455, %v3438
        %v3457 = vrot.slane %v3438, 4
        %v3458 = vsel %vm931, %v3450, %v3457
        %v3459 = vsel %vm931, %v3291, %v3272
        %v3461 = vunpack.c.l.s4 1983009808
        %v3462 = vunpack.c.0.s8 %v3461
        %v3463 = vperm.slane %v3459, %v3462
        %v3464 = vrot.slane %v3292, 4
        %v3465 = vsel %vm931, %v3464, %v3290
        %v3467 = vunpack.c.l.s4 1983009808
        %v3468 = vunpack.c.0.s8 %v3467
        %v3469 = vperm.slane %v3465, %v3468
        %v3470 = vsel %vm931, %v3295, %v3284
        %v3472 = vunpack.c.l.s4 1983009808
        %v3473 = vunpack.c.0.s8 %v3472
        %v3474 = vperm.slane %v3470, %v3473
        %v3475 = vrot.slane %v3296, 4
        %v3476 = vsel %vm931, %v3475, %v3294
        %v3478 = vunpack.c.l.s4 1983009808
        %v3479 = vunpack.c.0.s8 %v3478
        %v3480 = vperm.slane %v3476, %v3479
        %v3481 = vrot.slane %v3469, 4
        %v3482 = vsel %vm931, %v3481, %v3463
        %v3483 = vrot.slane %v3463, 4
        %v3484 = vsel %vm931, %v3469, %v3483
        %v3486 = vunpack.c.l.s4 1934713408
        %v3487 = vunpack.c.0.s8 %v3486
        %v3488 = vperm.slane %v3482, %v3487
        %v3490 = vunpack.c.l.s4 1934713408
        %v3491 = vunpack.c.0.s8 %v3490
        %v3492 = vperm.slane %v3484, %v3491
        %v3493 = vrot.slane %v3480, 4
        %v3494 = vsel %vm931, %v3493, %v3474
        %v3495 = vrot.slane %v3474, 4
        %v3496 = vsel %vm931, %v3480, %v3495
        %v3498 = vunpack.c.l.s4 1934713408
        %v3499 = vunpack.c.0.s8 %v3498
        %v3500 = vperm.slane %v3494, %v3499
        %v3502 = vunpack.c.l.s4 1934713408
        %v3503 = vunpack.c.0.s8 %v3502
        %v3504 = vperm.slane %v3496, %v3503
        %v3505 = vrot.slane %v3500, 4
        %v3506 = vsel %vm931, %v3505, %v3488
        %v3507 = vrot.slane %v3488, 4
        %v3508 = vsel %vm931, %v3500, %v3507
        %v3509 = vrot.slane %v3504, 4
        %v3510 = vsel %vm931, %v3509, %v3492
        %v3511 = vrot.slane %v3492, 4
        %v3512 = vsel %vm931, %v3504, %v3511
        %3517 = vrot.lane.b32.xlu0 %v3346, 8
        %v3518 = vpop.permute.xlu0 %3517
        %3519 = vrot.lane.b32.xlu0 %v3400, 8
        %v3520 = vpop.permute.xlu0 %3519
        %3521 = vrot.lane.b32.xlu0 %v3454, 8
        %v3522 = vpop.permute.xlu0 %3521
        %3523 = vrot.lane.b32.xlu0 %v3508, 8
        %v3524 = vpop.permute.xlu0 %3523
        %3533 = vrot.lane.b32.xlu0 %v3348, 16
        %v3534 = vpop.permute.xlu0 %3533
        %3535 = vrot.lane.b32.xlu0 %v3402, 16
        %v3536 = vpop.permute.xlu0 %3535
        %3537 = vrot.lane.b32.xlu0 %v3456, 16
        %v3538 = vpop.permute.xlu0 %3537
        %3539 = vrot.lane.b32.xlu0 %v3510, 16
        %v3540 = vpop.permute.xlu0 %3539
        %3549 = vrot.lane.b32.xlu0 %v3350, 24
        %v3550 = vpop.permute.xlu0 %3549
        %3551 = vrot.lane.b32.xlu0 %v3404, 24
        %v3552 = vpop.permute.xlu0 %3551
        %3553 = vrot.lane.b32.xlu0 %v3458, 24
        %v3554 = vpop.permute.xlu0 %3553
        %3555 = vrot.lane.b32.xlu0 %v3512, 24
        %v3556 = vpop.permute.xlu0 %3555
        %v3561 = vsel %vm2405, %v3344, %v3518
        %v3562 = vsel %vm2405, %v3398, %v3520
        %v3563 = vsel %vm2405, %v3452, %v3522
        %v3564 = vsel %vm2405, %v3506, %v3524
        %v3565 = vsel %vm2656, %v3561, %v3534
        %v3566 = vsel %vm2656, %v3562, %v3536
        %v3567 = vsel %vm2656, %v3563, %v3538
        %v3568 = vsel %vm2656, %v3564, %v3540
        %vm3569 = vcmask 195584
        %v3570 = vsel %vm3569, %v3565, %v3550
        %v3571 = vsel %vm3569, %v3566, %v3552
        %v3572 = vsel %vm3569, %v3567, %v3554
        %v3573 = vsel %vm3569, %v3568, %v3556
        %v3574 = vpack.c.bf16 %v3571, %v3570
        %v3575 = vpack.c.bf16 %v3573, %v3572
        %v3576 = vld [vmem:[%s813] sm:$0xf]
        %v3577 = vld [vmem:[%s813 + $0x4] sm:$0xf]
        %v3578 = vld [vmem:[%s813 + $0x8] sm:$0xf]
        %v3579 = vld [vmem:[%s813 + $0xc] sm:$0xf]
        %v3580 = vld [vmem:[%s816] sm:$0x1]
        %v3582 = vperm.slane %v3580, 0
        %v3588 = vunpack.c.l.b16 %v3576
        %v3589 = vunpack.c.l.b16 %v3577
        %v3590 = vunpack.c.l.b16 %v3578
        %v3591 = vunpack.c.l.b16 %v3579
        %v3592 = vpack.c.b16 %v3589, %v3588
        %v3593 = vpack.c.b16 %v3591, %v3590
        %v3597 = vsel %vm864, %v3574, 0
        %v3600 = vsel %vm864, %v3575, 0
        %3602 = vmatpush.bf16.msra.mxu0 0
        %3603 = vmatpush.bf16.msra.mxu0 0
        %3604 = vmatpush.bf16.msra.mxu0 0
        %3605 = vmatpush.bf16.msra.mxu0 0
        %3606 = vmatpush.bf16.msra.mxu0 0
        %3607 = vmatpush.bf16.msra.mxu0 0
        %3608 = vmatpush.bf16.msra.mxu0 %v3593
        %3609 = vmatpush.bf16.msra.mxu0 %v3592
        %3610 = vmatmul.bf16.gmra.mxu0 %v3597
        %v3611 = vpop.f32.mrf.mxu0
        %v3612 = vadd.f32 %v3582, %v3611
        %v3613 = vpop.f32.mrf.mxu0
        %v3614 = vadd.f32 %v3582, %v3613
        %3615 = vmatmul.bf16.gmra.mxu0 %v3600
        %v3616 = vpop.f32.mrf.mxu0
        %v3617 = vadd.f32 %v3582, %v3616
        %v3618 = vpop.f32.mrf.mxu0
        %v3619 = vadd.f32 %v3582, %v3618
        %3620 = vdwg.mxu0
        %v3621 = vadd.f32 %v838, %v3612
        %v3622 = vadd.f32 %v839, %v3614
        %v3623 = vadd.f32 %v840, %v3617
        %v3624 = vadd.f32 %v841, %v3619
        %v3625 = vld [vmem:[%s832] sm:$0x1]
        %v3626 = vld [vmem:[%s678] sm:$0x1]
        %v3627 = vsel %vm864, %v3621, 0.0
        %3628 = vadd.xlane.f32.xlu0 %v3627
        %v3629 = vpop.xlane.xlu0 %3628
        %v3630 = vsel %vm864, %v3622, 0.0
        %3631 = vadd.xlane.f32.xlu0 %v3630
        %v3632 = vpop.xlane.xlu0 %3631
        %v3633 = vsel %vm864, %v3623, 0.0
        %3634 = vadd.xlane.f32.xlu0 %v3633
        %v3635 = vpop.xlane.xlu0 %3634
        %v3636 = vsel %vm864, %v3624, 0.0
        %3637 = vadd.xlane.f32.xlu0 %v3636
        %v3638 = vpop.xlane.xlu0 %3637
        %v3639 = vrcp.pop 32.0
        %v3640 = vmul.f32 32.0, %v3639
        %v3641 = vsub.f32 1.0, %v3640
        %v3642 = vmul.f32 %v3639, %v3641
        %v3643 = vadd.f32 %v3639, %v3642
        %vm3644 = vweird.f32 %v3639
        %v3645 = vsel %vm3644, %v3639, %v3643
        %v3646 = vmul.f32 %v3629, %v3645
        %v3647 = vmul.f32 %v3632, %v3645
        %v3648 = vmul.f32 %v3635, %v3645
        %v3649 = vmul.f32 %v3638, %v3645
        %v3650 = vsub.f32 %v3621, %v3646
        %v3651 = vsub.f32 %v3622, %v3647
        %v3652 = vsub.f32 %v3623, %v3648
        %v3653 = vsub.f32 %v3624, %v3649
        %v3654 = vmul.f32 %v3650, %v3650
        %v3655 = vmul.f32 %v3651, %v3651
        %v3656 = vmul.f32 %v3652, %v3652
        %v3657 = vmul.f32 %v3653, %v3653
        %v3658 = vsel %vm864, %v3654, 0.0
        %3659 = vadd.xlane.f32.xlu0 %v3658
        %v3660 = vpop.xlane.xlu0 %3659
        %v3661 = vsel %vm864, %v3655, 0.0
        %3662 = vadd.xlane.f32.xlu0 %v3661
        %v3663 = vpop.xlane.xlu0 %3662
        %v3664 = vsel %vm864, %v3656, 0.0
        %3665 = vadd.xlane.f32.xlu0 %v3664
        %v3666 = vpop.xlane.xlu0 %3665
        %v3667 = vsel %vm864, %v3657, 0.0
        %3668 = vadd.xlane.f32.xlu0 %v3667
        %v3669 = vpop.xlane.xlu0 %3668
        %v3670 = vmul.f32 %v3660, %v3645
        %v3671 = vmul.f32 %v3663, %v3645
        %v3672 = vmul.f32 %v3666, %v3645
        %v3673 = vmul.f32 %v3669, %v3645
        %v3674 = vadd.f32 %v3670, 1e-05
        %v3675 = vadd.f32 %v3671, 1e-05
        %v3676 = vadd.f32 %v3672, 1e-05
        %v3677 = vadd.f32 %v3673, 1e-05
        %v3678 = vrsqrt.pop %v3674
        %v3679 = vmul.f32 %v3678, %v3674
        %v3680 = vmul.f32 %v3679, %v3678
        %v3681 = vmul.f32 0.5, %v3680
        %v3682 = vsub.f32 1.5, %v3681
        %v3683 = vmul.f32 %v3678, %v3682
        %vm3684 = vweird.f32 %v3674
        %vm3685 = vweird.f32 %v3678
        %vm3686 = vmor %vm3684, %vm3685
        %v3687 = vsel %vm3686, %v3678, %v3683
        %v3688 = vrsqrt.pop %v3675
        %v3689 = vmul.f32 %v3688, %v3675
        %v3690 = vmul.f32 %v3689, %v3688
        %v3691 = vmul.f32 0.5, %v3690
        %v3692 = vsub.f32 1.5, %v3691
        %v3693 = vmul.f32 %v3688, %v3692
        %vm3694 = vweird.f32 %v3675
        %vm3695 = vweird.f32 %v3688
        %vm3696 = vmor %vm3694, %vm3695
        %v3697 = vsel %vm3696, %v3688, %v3693
        %v3698 = vrsqrt.pop %v3676
        %v3699 = vmul.f32 %v3698, %v3676
        %v3700 = vmul.f32 %v3699, %v3698
        %v3701 = vmul.f32 0.5, %v3700
        %v3702 = vsub.f32 1.5, %v3701
        %v3703 = vmul.f32 %v3698, %v3702
        %vm3704 = vweird.f32 %v3676
        %vm3705 = vweird.f32 %v3698
        %vm3706 = vmor %vm3704, %vm3705
        %v3707 = vsel %vm3706, %v3698, %v3703
        %v3708 = vrsqrt.pop %v3677
        %v3709 = vmul.f32 %v3708, %v3677
        %v3710 = vmul.f32 %v3709, %v3708
        %v3711 = vmul.f32 0.5, %v3710
        %v3712 = vsub.f32 1.5, %v3711
        %v3713 = vmul.f32 %v3708, %v3712
        %vm3714 = vweird.f32 %v3677
        %vm3715 = vweird.f32 %v3708
        %vm3716 = vmor %vm3714, %vm3715
        %v3717 = vsel %vm3716, %v3708, %v3713
        %v3718 = vmul.f32 %v3650, %v3687
        %v3719 = vmul.f32 %v3651, %v3697
        %v3720 = vmul.f32 %v3652, %v3707
        %v3721 = vmul.f32 %v3653, %v3717
        %v3723 = vperm.slane %v3625, 0
        %v3725 = vmul.f32 %v3718, %v3723
        %v3726 = vmul.f32 %v3719, %v3723
        %v3727 = vmul.f32 %v3720, %v3723
        %v3728 = vmul.f32 %v3721, %v3723
        %v3730 = vperm.slane %v3626, 0
        %v3732 = vadd.f32 %v3725, %v3730
        %v3733 = vadd.f32 %v3726, %v3730
        %v3734 = vadd.f32 %v3727, %v3730
        %v3735 = vadd.f32 %v3728, %v3730
        %v3736 = vpack.c.bf16 %v3733, %v3732
        %v3737 = vpack.c.bf16 %v3735, %v3734
        %v3738 = vld [vmem:[%s821] sm:$0xf]
        %v3739 = vld [vmem:[%s821 + $0x4] sm:$0xf]
        %v3740 = vld [vmem:[%s821 + $0x8] sm:$0xf]
        %v3741 = vld [vmem:[%s821 + $0xc] sm:$0xf]
        %v3742 = vld [vmem:[%s669] sm:$0x1]
        %v3744 = vperm.slane %v3742, 0
        %v3750 = vunpack.c.l.b16 %v3738
        %v3751 = vunpack.c.l.b16 %v3739
        %v3752 = vunpack.c.l.b16 %v3740
        %v3753 = vunpack.c.l.b16 %v3741
        %v3754 = vpack.c.b16 %v3751, %v3750
        %v3755 = vpack.c.b16 %v3753, %v3752
        %v3759 = vsel %vm864, %v3736, 0
        %v3762 = vsel %vm864, %v3737, 0
        %3764 = vmatpush.bf16.msra.mxu0 0
        %3765 = vmatpush.bf16.msra.mxu0 0
        %3766 = vmatpush.bf16.msra.mxu0 0
        %3767 = vmatpush.bf16.msra.mxu0 0
        %3768 = vmatpush.bf16.msra.mxu0 0
        %3769 = vmatpush.bf16.msra.mxu0 0
        %3770 = vmatpush.bf16.msra.mxu0 %v3755
        %3771 = vmatpush.bf16.msra.mxu0 %v3754
        %3772 = vmatmul.bf16.gmra.mxu0 %v3759
        %v3773 = vpop.f32.mrf.mxu0
        %v3774 = vadd.f32 %v3744, %v3773
        %v3775 = vpop.f32.mrf.mxu0
        %v3776 = vadd.f32 %v3744, %v3775
        %3777 = vmatmul.bf16.gmra.mxu0 %v3762
        %v3778 = vpop.f32.mrf.mxu0
        %v3779 = vadd.f32 %v3744, %v3778
        %v3780 = vpop.f32.mrf.mxu0
        %v3781 = vadd.f32 %v3744, %v3780
        %3782 = vdwg.mxu0
        %v3783 = vmax.f32 %v3774, 0.0
        %v3784 = vmax.f32 %v3776, 0.0
        %v3785 = vmax.f32 %v3779, 0.0
        %v3786 = vmax.f32 %v3781, 0.0
        %v3787 = vpack.c.bf16 %v3784, %v3783
        %v3788 = vpack.c.bf16 %v3786, %v3785
        %v3789 = vld [vmem:[%s826] sm:$0xf]
        %v3790 = vld [vmem:[%s826 + $0x4] sm:$0xf]
        %v3791 = vld [vmem:[%s826 + $0x8] sm:$0xf]
        %v3792 = vld [vmem:[%s826 + $0xc] sm:$0xf]
        %v3793 = vld [vmem:[%s826 + $0x10] sm:$0xf]
        %v3794 = vld [vmem:[%s826 + $0x14] sm:$0xf]
        %v3795 = vld [vmem:[%s826 + $0x18] sm:$0xf]
        %v3796 = vld [vmem:[%s826 + $0x1c] sm:$0xf]
        %v3797 = vld [vmem:[%s829] sm:$0x1]
        %v3799 = vperm.slane %v3797, 0
        %v3809 = vunpack.c.l.b16 %v3789
        %v3810 = vunpack.c.l.b16 %v3790
        %v3811 = vunpack.c.l.b16 %v3791
        %v3812 = vunpack.c.l.b16 %v3792
        %v3813 = vunpack.c.l.b16 %v3793
        %v3814 = vunpack.c.l.b16 %v3794
        %v3815 = vunpack.c.l.b16 %v3795
        %v3816 = vunpack.c.l.b16 %v3796
        %v3817 = vpack.c.b16 %v3810, %v3809
        %v3818 = vpack.c.b16 %v3812, %v3811
        %v3819 = vpack.c.b16 %v3814, %v3813
        %v3820 = vpack.c.b16 %v3816, %v3815
        %vm3825 = vcmask 523264
        %v3827 = vsel %vm3825, %v3787, 0
        %v3830 = vsel %vm3825, %v3788, 0
        %3832 = vmatpush.bf16.msra.mxu0 0
        %3833 = vmatpush.bf16.msra.mxu0 0
        %3834 = vmatpush.bf16.msra.mxu0 0
        %3835 = vmatpush.bf16.msra.mxu0 0
        %3836 = vmatpush.bf16.msra.mxu0 %v3820
        %3837 = vmatpush.bf16.msra.mxu0 %v3819
        %3838 = vmatpush.bf16.msra.mxu0 %v3818
        %3839 = vmatpush.bf16.msra.mxu0 %v3817
        %3840 = vmatmul.bf16.gmra.mxu0 %v3827
        %v3841 = vpop.f32.mrf.mxu0
        %v3842 = vadd.f32 %v3799, %v3841
        %v3843 = vpop.f32.mrf.mxu0
        %v3844 = vadd.f32 %v3799, %v3843
        %3845 = vmatmul.bf16.gmra.mxu0 %v3830
        %v3846 = vpop.f32.mrf.mxu0
        %v3847 = vadd.f32 %v3799, %v3846
        %v3848 = vpop.f32.mrf.mxu0
        %v3849 = vadd.f32 %v3799, %v3848
        %3850 = vdwg.mxu0
        %v3851 = vadd.f32 %v3732, %v3842
        %v3852 = vadd.f32 %v3733, %v3844
        %v3853 = vadd.f32 %v3734, %v3847
        %v3854 = vadd.f32 %v3735, %v3849
        %v3855 = vld [vmem:[%s687] sm:$0x1]
        %v3856 = vld [vmem:[%s696] sm:$0x1]
        %v3857 = vsel %vm864, %v3851, 0.0
        %3858 = vadd.xlane.f32.xlu0 %v3857
        %v3859 = vpop.xlane.xlu0 %3858
        %v3860 = vsel %vm864, %v3852, 0.0
        %3861 = vadd.xlane.f32.xlu0 %v3860
        %v3862 = vpop.xlane.xlu0 %3861
        %v3863 = vsel %vm864, %v3853, 0.0
        %3864 = vadd.xlane.f32.xlu0 %v3863
        %v3865 = vpop.xlane.xlu0 %3864
        %v3866 = vsel %vm864, %v3854, 0.0
        %3867 = vadd.xlane.f32.xlu0 %v3866
        %v3868 = vpop.xlane.xlu0 %3867
        %v3869 = vmul.f32 %v3859, %v3645
        %v3870 = vmul.f32 %v3862, %v3645
        %v3871 = vmul.f32 %v3865, %v3645
        %v3872 = vmul.f32 %v3868, %v3645
        %v3873 = vsub.f32 %v3851, %v3869
        %v3874 = vsub.f32 %v3852, %v3870
        %v3875 = vsub.f32 %v3853, %v3871
        %v3876 = vsub.f32 %v3854, %v3872
        %v3877 = vmul.f32 %v3873, %v3873
        %v3878 = vmul.f32 %v3874, %v3874
        %v3879 = vmul.f32 %v3875, %v3875
        %v3880 = vmul.f32 %v3876, %v3876
        %v3881 = vsel %vm864, %v3877, 0.0
        %3882 = vadd.xlane.f32.xlu0 %v3881
        %v3883 = vpop.xlane.xlu0 %3882
        %v3884 = vsel %vm864, %v3878, 0.0
        %3885 = vadd.xlane.f32.xlu0 %v3884
        %v3886 = vpop.xlane.xlu0 %3885
        %v3887 = vsel %vm864, %v3879, 0.0
        %3888 = vadd.xlane.f32.xlu0 %v3887
        %v3889 = vpop.xlane.xlu0 %3888
        %v3890 = vsel %vm864, %v3880, 0.0
        %3891 = vadd.xlane.f32.xlu0 %v3890
        %v3892 = vpop.xlane.xlu0 %3891
        %v3893 = vmul.f32 %v3883, %v3645
        %v3894 = vmul.f32 %v3886, %v3645
        %v3895 = vmul.f32 %v3889, %v3645
        %v3896 = vmul.f32 %v3892, %v3645
        %v3897 = vadd.f32 %v3893, 1e-05
        %v3898 = vadd.f32 %v3894, 1e-05
        %v3899 = vadd.f32 %v3895, 1e-05
        %v3900 = vadd.f32 %v3896, 1e-05
        %v3901 = vrsqrt.pop %v3897
        %v3902 = vmul.f32 %v3901, %v3897
        %v3903 = vmul.f32 %v3902, %v3901
        %v3904 = vmul.f32 0.5, %v3903
        %v3905 = vsub.f32 1.5, %v3904
        %v3906 = vmul.f32 %v3901, %v3905
        %vm3907 = vweird.f32 %v3897
        %vm3908 = vweird.f32 %v3901
        %vm3909 = vmor %vm3907, %vm3908
        %v3910 = vsel %vm3909, %v3901, %v3906
        %v3911 = vrsqrt.pop %v3898
        %v3912 = vmul.f32 %v3911, %v3898
        %v3913 = vmul.f32 %v3912, %v3911
        %v3914 = vmul.f32 0.5, %v3913
        %v3915 = vsub.f32 1.5, %v3914
        %v3916 = vmul.f32 %v3911, %v3915
        %vm3917 = vweird.f32 %v3898
        %vm3918 = vweird.f32 %v3911
        %vm3919 = vmor %vm3917, %vm3918
        %v3920 = vsel %vm3919, %v3911, %v3916
        %v3921 = vrsqrt.pop %v3899
        %v3922 = vmul.f32 %v3921, %v3899
        %v3923 = vmul.f32 %v3922, %v3921
        %v3924 = vmul.f32 0.5, %v3923
        %v3925 = vsub.f32 1.5, %v3924
        %v3926 = vmul.f32 %v3921, %v3925
        %vm3927 = vweird.f32 %v3899
        %vm3928 = vweird.f32 %v3921
        %vm3929 = vmor %vm3927, %vm3928
        %v3930 = vsel %vm3929, %v3921, %v3926
        %v3931 = vrsqrt.pop %v3900
        %v3932 = vmul.f32 %v3931, %v3900
        %v3933 = vmul.f32 %v3932, %v3931
        %v3934 = vmul.f32 0.5, %v3933
        %v3935 = vsub.f32 1.5, %v3934
        %v3936 = vmul.f32 %v3931, %v3935
        %vm3937 = vweird.f32 %v3900
        %vm3938 = vweird.f32 %v3931
        %vm3939 = vmor %vm3937, %vm3938
        %v3940 = vsel %vm3939, %v3931, %v3936
        %v3941 = vmul.f32 %v3873, %v3910
        %v3942 = vmul.f32 %v3874, %v3920
        %v3943 = vmul.f32 %v3875, %v3930
        %v3944 = vmul.f32 %v3876, %v3940
        %v3946 = vperm.slane %v3855, 0
        %v3948 = vmul.f32 %v3941, %v3946
        %v3949 = vmul.f32 %v3942, %v3946
        %v3950 = vmul.f32 %v3943, %v3946
        %v3951 = vmul.f32 %v3944, %v3946
        %v3953 = vperm.slane %v3856, 0
        %v3955 = vadd.f32 %v3948, %v3953
        %v3956 = vadd.f32 %v3949, %v3953
        %v3957 = vadd.f32 %v3950, %v3953
        %v3958 = vadd.f32 %v3951, %v3953
        %v3959 = vld [vmem:[%s835] sm:$0x1]
        %v3960 = vld [vmem:[%s705] sm:$0x1]
        %v3961 = vsel %vm864, %v3955, 0.0
        %3962 = vadd.xlane.f32.xlu0 %v3961
        %v3963 = vpop.xlane.xlu0 %3962
        %v3964 = vsel %vm864, %v3956, 0.0
        %3965 = vadd.xlane.f32.xlu0 %v3964
        %v3966 = vpop.xlane.xlu0 %3965
        %v3967 = vsel %vm864, %v3957, 0.0
        %3968 = vadd.xlane.f32.xlu0 %v3967
        %v3969 = vpop.xlane.xlu0 %3968
        %v3970 = vsel %vm864, %v3958, 0.0
        %3971 = vadd.xlane.f32.xlu0 %v3970
        %v3972 = vpop.xlane.xlu0 %3971
        %v3973 = vmul.f32 %v3963, %v3645
        %v3974 = vmul.f32 %v3966, %v3645
        %v3975 = vmul.f32 %v3969, %v3645
        %v3976 = vmul.f32 %v3972, %v3645
        %v3977 = vsub.f32 %v3955, %v3973
        %v3978 = vsub.f32 %v3956, %v3974
        %v3979 = vsub.f32 %v3957, %v3975
        %v3980 = vsub.f32 %v3958, %v3976
        %v3981 = vmul.f32 %v3977, %v3977
        %v3982 = vmul.f32 %v3978, %v3978
        %v3983 = vmul.f32 %v3979, %v3979
        %v3984 = vmul.f32 %v3980, %v3980
        %v3985 = vsel %vm864, %v3981, 0.0
        %3986 = vadd.xlane.f32.xlu0 %v3985
        %v3987 = vpop.xlane.xlu0 %3986
        %v3988 = vsel %vm864, %v3982, 0.0
        %3989 = vadd.xlane.f32.xlu0 %v3988
        %v3990 = vpop.xlane.xlu0 %3989
        %v3991 = vsel %vm864, %v3983, 0.0
        %3992 = vadd.xlane.f32.xlu0 %v3991
        %v3993 = vpop.xlane.xlu0 %3992
        %v3994 = vsel %vm864, %v3984, 0.0
        %3995 = vadd.xlane.f32.xlu0 %v3994
        %v3996 = vpop.xlane.xlu0 %3995
        %v3997 = vmul.f32 %v3987, %v3645
        %v3998 = vmul.f32 %v3990, %v3645
        %v3999 = vmul.f32 %v3993, %v3645
        %v4000 = vmul.f32 %v3996, %v3645
        %v4001 = vadd.f32 %v3997, 1e-05
        %v4002 = vadd.f32 %v3998, 1e-05
        %v4003 = vadd.f32 %v3999, 1e-05
        %v4004 = vadd.f32 %v4000, 1e-05
        %v4005 = vrsqrt.pop %v4001
        %v4006 = vmul.f32 %v4005, %v4001
        %v4007 = vmul.f32 %v4006, %v4005
        %v4008 = vmul.f32 0.5, %v4007
        %v4009 = vsub.f32 1.5, %v4008
        %v4010 = vmul.f32 %v4005, %v4009
        %vm4011 = vweird.f32 %v4001
        %vm4012 = vweird.f32 %v4005
        %vm4013 = vmor %vm4011, %vm4012
        %v4014 = vsel %vm4013, %v4005, %v4010
        %v4015 = vrsqrt.pop %v4002
        %v4016 = vmul.f32 %v4015, %v4002
        %v4017 = vmul.f32 %v4016, %v4015
        %v4018 = vmul.f32 0.5, %v4017
        %v4019 = vsub.f32 1.5, %v4018
        %v4020 = vmul.f32 %v4015, %v4019
        %vm4021 = vweird.f32 %v4002
        %vm4022 = vweird.f32 %v4015
        %vm4023 = vmor %vm4021, %vm4022
        %v4024 = vsel %vm4023, %v4015, %v4020
        %v4025 = vrsqrt.pop %v4003
        %v4026 = vmul.f32 %v4025, %v4003
        %v4027 = vmul.f32 %v4026, %v4025
        %v4028 = vmul.f32 0.5, %v4027
        %v4029 = vsub.f32 1.5, %v4028
        %v4030 = vmul.f32 %v4025, %v4029
        %vm4031 = vweird.f32 %v4003
        %vm4032 = vweird.f32 %v4025
        %vm4033 = vmor %vm4031, %vm4032
        %v4034 = vsel %vm4033, %v4025, %v4030
        %v4035 = vrsqrt.pop %v4004
        %v4036 = vmul.f32 %v4035, %v4004
        %v4037 = vmul.f32 %v4036, %v4035
        %v4038 = vmul.f32 0.5, %v4037
        %v4039 = vsub.f32 1.5, %v4038
        %v4040 = vmul.f32 %v4035, %v4039
        %vm4041 = vweird.f32 %v4004
        %vm4042 = vweird.f32 %v4035
        %vm4043 = vmor %vm4041, %vm4042
        %v4044 = vsel %vm4043, %v4035, %v4040
        %v4045 = vmul.f32 %v3977, %v4014
        %v4046 = vmul.f32 %v3978, %v4024
        %v4047 = vmul.f32 %v3979, %v4034
        %v4048 = vmul.f32 %v3980, %v4044
        %v4050 = vperm.slane %v3959, 0
        %v4052 = vmul.f32 %v4045, %v4050
        %v4053 = vmul.f32 %v4046, %v4050
        %v4054 = vmul.f32 %v4047, %v4050
        %v4055 = vmul.f32 %v4048, %v4050
        %v4057 = vperm.slane %v3960, 0
        %v4059 = vadd.f32 %v4052, %v4057
        %v4060 = vadd.f32 %v4053, %v4057
        %v4061 = vadd.f32 %v4054, %v4057
        %v4062 = vadd.f32 %v4055, %v4057
        %4063 = vst.msk [vmem:[%s803] sm:$0xff] %vm864, %v4059
        %4064 = vst.msk [vmem:[%s803 + $0x8] sm:$0xff] %vm864, %v4060
        %4065 = vst.msk [vmem:[%s803 + $0x10] sm:$0xff] %vm864, %v4061
        %4066 = vst.msk [vmem:[%s803 + $0x18] sm:$0xff] %vm864, %v4062
        %s4067 = sand.u32 %s441, 1
        %s4068 = scalar_lea.sflag [#allocation6], %s4067
        %s4069 = sand.u32 %s441, 1
        %s4070 = smul.addr %s4069, 32
        %s4071 = scalar_lea.vmem [#allocation16], %s4070
        // Predicated region
        $region109: #{tpu_custom_call.1} parent=79 // pred_check
          %p4072 = pneg %p451
        $region110: #{tpu_custom_call.1} parent=79 // pred_check_branch
          %4074 = sbr.rel (%p4072) target = $region112
        $region111: #{tpu_custom_call.1} parent=79 // pred_region
          %4076 = vsyncadd %s4068, 0
          %s4077 = smul.addr %s48, 4
          %s4078 = smul.addr %s4077, 8
          %s4079 = scalar_lea.hbm %s16, %s4078
          %s4080 = sshll.u32 %s4071, 4
          %s4081 = int_to_ptr.vmem [resolvable:$true] %s4080
          %s4082 = sshll.u32 %s4079, 4
          %s4083 = int_to_ptr.hbm [resolvable:$true] %s4082
          %4088 = dma.vmem_to_hbm [thread:$0]  %s4081, 512, %s4083, %s4068, 128, 128, 8
        $region112: #{tpu_custom_call.1} parent=79 // pred_fallthru
          _
      $region80: #{tpu_custom_call.1} parent=5 // pred_fallthru
        _
      %p4089 = scmp.le.s32.totalorder 2, %s43
      // Predicated region
      $region113: #{tpu_custom_call.1} parent=5 // pred_check
        %p4090 = pneg %p4089
      $region114: #{tpu_custom_call.1} parent=5 // pred_check_branch
        %4092 = sbr.rel (%p4090) target = $region116
      $region115: #{tpu_custom_call.1} parent=5 // pred_region
        %s4093 = ssub.s32 %s43, 2
        // Predicated region
        $region117: #{tpu_custom_call.1} parent=115 // pred_check
          %p4094 = pneg %p457
        $region118: #{tpu_custom_call.1} parent=115 // pred_check_branch
          %4096 = sbr.rel (%p4094) target = $region120
        $region119: #{tpu_custom_call.1} parent=115 // pred_region
          %s4097 = sand.u32 %s442, 1
          %s4098 = scalar_lea.sflag [#allocation6], %s4097
          %s4099 = sand.u32 %s442, 1
          %s4100 = smul.addr %s4099, 32
          %s4101 = scalar_lea.vmem [#allocation16], %s4100
          %4103 = dma.done %s4098, 512
        $region120: #{tpu_custom_call.1} parent=115 // pred_fallthru
          _
      $region116: #{tpu_custom_call.1} parent=5 // pred_fallthru
        _
    $region6: #{tpu_custom_call.1} parent=1 // loop_footer
      %s47 = sadd.s32 1, %s43
    $region7: #{tpu_custom_call.1} parent=1 // loop_footer_branch
      %42 = sbr.rel target = $region3
    $region8: #{tpu_custom_call.1} parent=1 // loop_exit
      _
    %4104 = vsyncpa [#allocation5], 1
    %s4105 = scalar_lea.sflag [#allocation5], 1
    %4106 = vsyncpa %s4105, 1
    %4107 = vsyncpa [#allocation8], 1
    %s4108 = scalar_lea.sflag [#allocation8], 1
    %4109 = vsyncpa %s4108, 1
    %4110 = vsyncpa [#allocation11], 1
    %s4111 = scalar_lea.sflag [#allocation11], 1
    %4112 = vsyncpa %s4111, 1
    %4113 = vsyncpa [#allocation14], 1
    %s4114 = scalar_lea.sflag [#allocation14], 1
    %4115 = vsyncpa %s4114, 1
    %4116 = vsyncpa [#allocation6], 1
    %s4117 = scalar_lea.sflag [#allocation6], 1
    %4118 = vsyncpa %s4117, 1

</llo_original>
